<compile_context>
chip_gen: v5e
topology: v5e:2x2
jax: 0.10.0
libtpu: 0.0.40
codegen_flags: <defaults>
</compile_context>

<pallas_src>
import functools
import math

import jax
import jax.numpy as jnp
from jax import lax
from jax.experimental import pallas as pl
from jax.experimental.pallas import tpu as pltpu

_LANE = 128


# ------------------------------ small helpers ------------------------------
def _round_up(x, m):
    return (x + m - 1) // m * m


def _pad_axis(a, axis, new_size):
    pad = new_size - a.shape[axis]
    if pad == 0:
        return a
    widths = [(0, 0)] * a.ndim
    widths[axis] = (0, pad)
    return jnp.pad(a, widths)


@functools.lru_cache(maxsize=None)
def _vmem_limit_bytes():
    """Generation-aware scoped-VMEM limit (v7x has 64 MiB physical, v5e/v6e 128 MiB)."""
    cap = 64 << 20
    try:
        cap = int(getattr(pltpu.get_tpu_info(), "vmem_capacity_bytes", cap))
    except Exception:
        pass
    return int(min(max(cap - (16 << 20), 32 << 20), 100 << 20))


def _max_chunk(bs, hp, out_dim):
    """Largest timesteps-per-grid-step that fits the VMEM budget, accounting for the
    resident (double-buffered) hidden weights, fc head, biases and the hidden scratch."""
    limit = _vmem_limit_bytes()
    f32 = 4
    fixed = 2 * hp * 3 * hp * f32                       # fused hidden weights (x2 buffers)
    fixed += 2 * (hp * out_dim + out_dim + hp) * f32    # fc_w, fc_b, b_hn (x2 buffers)
    fixed += bs * hp * f32 + (2 << 20)                  # hidden scratch + headroom
    per_t = 2 * bs * 4 * hp * f32                       # GI (3*hp) + seq out (hp), x2 buffers
    cap = 512 if bs % 8 == 0 else 64                    # small-batch path is fully unrolled
    return int(max(1, min(cap, (limit - fixed) // per_t)))


def _plan_time(t, bs, hp, out_dim):
    """Pick (chunk, nchunks, tp). Prefers an exact factorization (tp == t => no wasted
    serial steps); falls back to a zero-padded tail (mathematically inert for this GRU)."""
    cmax = _max_chunk(bs, hp, out_dim)
    if t <= cmax:
        return t, 1, t
    align = 8 // math.gcd(bs, 8)
    n0 = -(-t // cmax)
    for n in range(n0, min(t, n0 + 64) + 1):            # bounded divisor search
        if t % n == 0:
            c = t // n
            if (c * bs) % 8 == 0:
                return c, n, t
    c = max(align, (cmax // align) * align)
    n = -(-t // c)
    return c, n, c * n


def _row_slice(i, bs):
    """Rows of timestep i in the flattened (time*batch, features) layout."""
    if isinstance(i, int):                               # static offset (small-batch path)
        return pl.ds(i * bs, bs)
    return pl.ds(pl.multiple_of(i * bs, 8), bs)          # dynamic, 8-aligned (bs % 8 == 0)


def _run_steps(chunk, bs, unroll, body, init):
    """Serial timestep loop. fori_loop (dynamic, 8-aligned slices) when bs % 8 == 0,
    otherwise a statically-unrolled Python loop so every sublane offset is static."""
    if bs % 8 == 0:
        return lax.fori_loop(0, chunk, body, init, unroll=unroll)
    carry = init
    for i in range(chunk):
        carry = body(i, carry)
    return carry


# ------------------------------ GRU cell (in-kernel) ------------------------------
def _gru_cell(gi, h_prev, w_h, b_hn, hp):
    """PyTorch GRU math; gi already contains the input projection (+ fused r/z biases).
    One fused (bs,Hp)@(Hp,3*Hp) MXU matmul per timestep; gates sliced at lane multiples."""
    gh = jnp.dot(h_prev, w_h, preferred_element_type=jnp.float32)
    r = jax.nn.sigmoid(gi[:, :hp] + gh[:, :hp])
    z = jax.nn.sigmoid(gi[:, hp:2 * hp] + gh[:, hp:2 * hp])
    n = jnp.tanh(gi[:, 2 * hp:] + r * (gh[:, 2 * hp:] + b_hn))
    return (1.0 - z) * n + z * h_prev


# ------------------------------ kernels ------------------------------
def _gru_seq_kernel(gi_ref, w_h_ref, b_hn_ref, out_ref, h_scr, *, bs, hp, chunk, unroll):
    """One grid step == `chunk` timesteps of one batch shard; h carried in VMEM scratch."""
    @pl.when(pl.program_id(1) == 0)
    def _():
        h_scr[...] = jnp.zeros_like(h_scr)               # h_0 = zeros (matches torch)

    w_h = w_h_ref[...]
    b_hn = b_hn_ref[...]

    def step(i, h):
        rows = _row_slice(i, bs)
        h_new = _gru_cell(gi_ref[rows, :], h, w_h, b_hn, hp)
        out_ref[rows, :] = h_new
        return h_new

    h_scr[...] = _run_steps(chunk, bs, unroll, step, h_scr[...])


def _gru_last_kernel(gi_ref, w_h_ref, b_hn_ref, fc_w_ref, fc_b_ref, out_ref, h_scr,
                     *, bs, hp, chunk, unroll, last_i, exact_end):
    """Last GRU layer: no (T,B,H) sequence output; the fc head is fused at t == T-1."""
    c = pl.program_id(1)

    @pl.when(c == 0)
    def _():
        h_scr[...] = jnp.zeros_like(h_scr)

    w_h = w_h_ref[...]
    b_hn = b_hn_ref[...]

    if exact_end:                                        # tp == T: no extra carry needed
        def step(i, h):
            return _gru_cell(gi_ref[_row_slice(i, bs), :], h, w_h, b_hn, hp)
        h_final = _run_steps(chunk, bs, unroll, step, h_scr[...])
        h_last = h_final
    else:                                                # padded tail: keep h at t == T-1
        def step(i, carry):
            h, h_keep = carry
            h_new = _gru_cell(gi_ref[_row_slice(i, bs), :], h, w_h, b_hn, hp)
            if isinstance(i, int):
                h_keep = h_new if i == last_i else h_keep
            else:
                h_keep = jnp.where(i == last_i, h_new, h_keep)
            return h_new, h_keep
        h0 = h_scr[...]
        h_final, h_last = _run_steps(chunk, bs, unroll, step, (h0, h0))

    h_scr[...] = h_final

    @pl.when(c == pl.num_programs(1) - 1)
    def _():
        out_ref[...] = (jnp.dot(h_last, fc_w_ref[...], preferred_element_type=jnp.float32)
                        + fc_b_ref[...]).astype(out_ref.dtype)


# ------------------------------ pallas_call wrappers ------------------------------
def _const_spec(shape):
    nd = len(shape)
    return pl.BlockSpec(shape, lambda p, c: (0,) * nd)   # grid-invariant (resident) operand


def _gru_layer_seq(gi, w_h, b_hn, *, nb, bs, chunk, nchunks, hp):
    rows = gi.shape[0]
    unroll = True if chunk <= 32 else 8
    kernel = functools.partial(_gru_seq_kernel, bs=bs, hp=hp, chunk=chunk, unroll=unroll)
    gi_spec = pl.BlockSpec((chunk * bs, 3 * hp), lambda p, c: (p * nchunks + c, 0))
    return pl.pallas_call(
        kernel,
        out_shape=jax.ShapeDtypeStruct((rows, hp), jnp.float32),
        grid_spec=pltpu.PrefetchScalarGridSpec(
            num_scalar_prefetch=0,
            grid=(nb, nchunks),
            in_specs=[gi_spec,
                      _const_spec((hp, 3 * hp)),
                      _const_spec((1, hp))],
            out_specs=pl.BlockSpec((chunk * bs, hp), lambda p, c: (p * nchunks + c, 0)),
            scratch_shapes=[pltpu.VMEM((bs, hp), jnp.float32)],
        ),
        compiler_params=pltpu.CompilerParams(
            dimension_semantics=("parallel", "arbitrary"),     # batch shards || , time serial
            vmem_limit_bytes=_vmem_limit_bytes()),
    )(gi, w_h, b_hn)


def _gru_layer_last(gi, w_h, b_hn, fc_w, fc_b, *, nb, bs, chunk, nchunks, hp, t_real, tp):
    o = fc_w.shape[1]
    unroll = True if chunk <= 32 else 8
    kernel = functools.partial(_gru_last_kernel, bs=bs, hp=hp, chunk=chunk, unroll=unroll,
                               last_i=(t_real - 1) % chunk, exact_end=(tp == t_real))
    gi_spec = pl.BlockSpec((chunk * bs, 3 * hp), lambda p, c: (p * nchunks + c, 0))
    return pl.pallas_call(
        kernel,
        out_shape=jax.ShapeDtypeStruct((nb * bs, o), jnp.float32),
        grid_spec=pltpu.PrefetchScalarGridSpec(
            num_scalar_prefetch=0,
            grid=(nb, nchunks),
            in_specs=[gi_spec,
                      _const_spec((hp, 3 * hp)),
                      _const_spec((1, hp)),
                      _const_spec((hp, o)),
                      _const_spec((1, o))],
            out_specs=pl.BlockSpec((bs, o), lambda p, c: (p, 0)),
            scratch_shapes=[pltpu.VMEM((bs, hp), jnp.float32)],
        ),
        compiler_params=pltpu.CompilerParams(
            dimension_semantics=("parallel", "arbitrary"),
            vmem_limit_bytes=_vmem_limit_bytes()),
    )(gi, w_h, b_hn, fc_w, fc_b)


# ------------------------------ one-time parameter packing ------------------------------
def pack_params(params):
    """Hoisted out of the forward: gate split / transpose / lane-pad / concat, done once."""
    h = params["layers"][0]["w_hh"].shape[1]
    hp = _round_up(h, _LANE)
    packed = {"layers": []}
    for l, lp in enumerate(params["layers"]):
        in_dim = lp["w_ih"].shape[1]
        in_pad = in_dim if l == 0 else hp                 # layers >=1 consume padded hidden

        def gate(w, k):                                   # PyTorch gate row order: [r, z, n]
            return w[k * h:(k + 1) * h]

        w_i = jnp.concatenate(
            [_pad_axis(_pad_axis(gate(lp["w_ih"], k).T, 0, in_pad), 1, hp) for k in range(3)],
            axis=1)                                        # (in_pad, 3*hp)
        # Fold b_ih + b_hh for r/z into the input-side bias (fewer adds on the serial
        # critical path); b_hn stays separate (it sits inside the r * (...) term).
        b_i = jnp.concatenate([
            _pad_axis(gate(lp["b_ih"], 0) + gate(lp["b_hh"], 0), 0, hp),
            _pad_axis(gate(lp["b_ih"], 1) + gate(lp["b_hh"], 1), 0, hp),
            _pad_axis(gate(lp["b_ih"], 2), 0, hp)], axis=0)          # (3*hp,)
        # Fused hidden weights: zero padding is inert for a GRU with h0 = 0.
        w_h = jnp.concatenate(
            [_pad_axis(_pad_axis(gate(lp["w_hh"], k).T, 0, hp), 1, hp) for k in range(3)],
            axis=1)                                        # (hp, 3*hp)
        b_hn = _pad_axis(gate(lp["b_hh"], 2), 0, hp).reshape(1, hp)
        packed["layers"].append(dict(w_i=w_i, b_i=b_i, w_h=w_h, b_hn=b_hn))
    packed["fc_w"] = _pad_axis(params["fc_w"].T, 0, hp)    # (hp, O); zero rows inert
    packed["fc_b"] = params["fc_b"].reshape(1, -1)
    return packed


# ------------------------------ full model ------------------------------
def init_params(key, input_size, hidden_size, output_dim, num_layers):
    """Deterministic init, mimicking PyTorch's U(-1/sqrt(H), 1/sqrt(H))."""
    params = {"layers": []}
    bound = 1.0 / jnp.sqrt(jnp.float32(hidden_size))
    for l in range(num_layers):
        in_feat = input_size if l == 0 else hidden_size
        key, k1, k2, k3, k4 = jax.random.split(key, 5)
        params["layers"].append(dict(
            w_ih=jax.random.uniform(k1, (3 * hidden_size, in_feat), jnp.float32, -bound, bound),
            w_hh=jax.random.uniform(k2, (3 * hidden_size, hidden_size), jnp.float32, -bound, bound),
            b_ih=jax.random.uniform(k3, (3 * hidden_size,), jnp.float32, -bound, bound),
            b_hh=jax.random.uniform(k4, (3 * hidden_size,), jnp.float32, -bound, bound),
        ))
    key, k1, k2 = jax.random.split(key, 3)
    params["fc_w"] = jax.random.uniform(k1, (output_dim, hidden_size), jnp.float32, -bound, bound)
    params["fc_b"] = jax.random.uniform(k2, (output_dim,), jnp.float32, -bound, bound)
    return params


@jax.jit
def model_forward(packed, x):
    """x: (B, T, input_size) batch_first, as in the PyTorch module. Returns (B, output_dim)."""
    bsz, t, _ = x.shape
    hp = packed["layers"][0]["w_h"].shape[0]
    out_dim = packed["fc_w"].shape[1]
    n_layers = len(packed["layers"])

    # v7x megacore: contiguous batch shards across the "parallel" grid axis (size 1 otherwise).
    nb = 2 if (bsz % 16 == 0 and bsz >= 16) else 1
    bs = bsz // nb
    chunk, nchunks, tp = _plan_time(t, bs, hp, out_dim)

    # Dense row layout: (shard, time, batch-within-shard) flattened onto the sublane axis.
    seq = x.astype(jnp.float32).reshape(nb, bs, t, -1).transpose(0, 2, 1, 3)
    if tp > t:
        seq = jnp.pad(seq, ((0, 0), (0, tp - t), (0, 0), (0, 0)))   # causal => inert
    seq = seq.reshape(nb * tp * bs, -1)

    out = None
    for l, lp in enumerate(packed["layers"]):
        # Input projection for ALL timesteps in one large matmul (off the serial path).
        gi = jnp.dot(seq, lp["w_i"], preferred_element_type=jnp.float32) + lp["b_i"]
        if l < n_layers - 1:
            seq = _gru_layer_seq(gi, lp["w_h"], lp["b_hn"],
                                 nb=nb, bs=bs, chunk=chunk, nchunks=nchunks, hp=hp)
        else:
            out = _gru_layer_last(gi, lp["w_h"], lp["b_hn"], packed["fc_w"], packed["fc_b"],
                                  nb=nb, bs=bs, chunk=chunk, nchunks=nchunks, hp=hp,
                                  t_real=t, tp=tp)
    return out


# --------------------------- pure-JAX reference -----------------------------
def _reference_forward(params, x):
    B = x.shape[0]
    h_seq = jnp.transpose(x, (1, 0, 2)).astype(jnp.float32)
    for lp in params["layers"]:
        H = lp["w_hh"].shape[1]
        h = jnp.zeros((B, H), jnp.float32)
        outs = []
        for t in range(h_seq.shape[0]):
            gi = h_seq[t] @ lp["w_ih"].T + lp["b_ih"]
            gh = h @ lp["w_hh"].T + lp["b_hh"]
            i_r, i_z, i_n = jnp.split(gi, 3, axis=1)
            h_r, h_z, h_n = jnp.split(gh, 3, axis=1)
            r = jax.nn.sigmoid(i_r + h_r)
            z = jax.nn.sigmoid(i_z + h_z)
            n = jnp.tanh(i_n + r * h_n)
            h = (1.0 - z) * n + z * h
            outs.append(h)
        h_seq = jnp.stack(outs, axis=0)
    return h_seq[-1] @ params["fc_w"].T + params["fc_b"]


if __name__ == "__main__":
    # Small shapes consistent with the module's forward.
    batch, seq_len = 2, 8
    input_size, hidden_size, output_dim, num_layers = 4, 32, 4, 2

    key = jax.random.PRNGKey(0)
    key, kx = jax.random.split(key)
    x = jax.random.normal(kx, (batch, seq_len, input_size), jnp.float32)

    params = init_params(key, input_size, hidden_size, output_dim, num_layers)
    packed = pack_params(params)        # one-time weight packing (hoisted off the forward)

    out = model_forward(packed, x)
    jax.block_until_ready(out)
    assert out.shape == (batch, output_dim)

    ref = _reference_forward(params, x)
    err = jnp.max(jnp.abs(out - ref))
    assert jnp.allclose(out, ref, rtol=2e-4, atol=2e-4), f"max abs err {err}"

    print("KERNEL_OK")
</pallas_src>

<mosaic_0001>
module attributes {stable_mosaic.version = 11 : i64} {
  func.func @_gru_seq_kernel(%arg0: i32, %arg1: i32, %arg2: memref<16x384xf32, #tpu.memory_space<vmem>>, %arg3: memref<128x384xf32, #tpu.memory_space<vmem>>, %arg4: memref<1x128xf32, #tpu.memory_space<vmem>>, %arg5: memref<16x128xf32, #tpu.memory_space<vmem>>, %arg6: memref<2x128xf32, #tpu.memory_space<vmem>>) attributes {dimension_semantics = [#tpu.dimension_semantics<parallel>, #tpu.dimension_semantics<arbitrary>], iteration_bounds = array<i64: 1, 1>, scalar_prefetch = 0 : i64, scratch_operands = 1 : i64, tpu.core_type = #tpu.core_type<tc>, window_params = [{transform_indices = @transform_0, window_bounds = array<i64: 16, 384>}, {pipeline_mode = #tpu.pipeline_mode<synchronous>, transform_indices = @transform_1, window_bounds = array<i64: 128, 384>}, {pipeline_mode = #tpu.pipeline_mode<synchronous>, transform_indices = @transform_2, window_bounds = array<i64: 1, 128>}, {transform_indices = @transform_3, window_bounds = array<i64: 16, 128>}]} {
    %c0_i32 = arith.constant 0 : i32
    %0 = arith.cmpi eq, %arg1, %c0_i32 : i32
    %1 = arith.extui %0 : i1 to i32
    %c0_i32_0 = arith.constant 0 : i32
    %2 = arith.cmpi ne, %1, %c0_i32_0 : i32
    scf.if %2 {
      %cst_64 = arith.constant 0.000000e+00 : f32
      %255 = vector.broadcast %cst_64 : f32 to vector<2x128xf32>
      %c0_65 = arith.constant 0 : index
      %c0_66 = arith.constant 0 : index
      %256 = vector.load %arg6[%c0_65, %c0_66] : memref<2x128xf32, #tpu.memory_space<vmem>>, vector<2x128xf32>
      tpu.vector_store %arg6[%c0_65, %c0_66], %255 {strides = array<i32>} : memref<2x128xf32, #tpu.memory_space<vmem>>, vector<2x128xf32>,
    } else {
    }
    %c0 = arith.constant 0 : index
    %c0_1 = arith.constant 0 : index
    %3 = vector.load %arg3[%c0, %c0_1] : memref<128x384xf32, #tpu.memory_space<vmem>>, vector<128x384xf32>
    %c0_2 = arith.constant 0 : index
    %c0_3 = arith.constant 0 : index
    %4 = vector.load %arg4[%c0_2, %c0_3] : memref<1x128xf32, #tpu.memory_space<vmem>>, vector<1x128xf32>
    %c0_4 = arith.constant 0 : index
    %c0_5 = arith.constant 0 : index
    %5 = vector.load %arg6[%c0_4, %c0_5] : memref<2x128xf32, #tpu.memory_space<vmem>>, vector<2x128xf32>
    %c0_6 = arith.constant 0 : index
    %c0_7 = arith.constant 0 : index
    %6 = vector.load %arg2[%c0_6, %c0_7] : memref<16x384xf32, #tpu.memory_space<vmem>>, vector<2x384xf32>
    %cst = arith.constant dense<0.000000e+00> : vector<2x384xf32>
    %7 = tpu.matmul %5, %3, %cst {dimension_numbers = #tpu.dot_dimension_numbers<[1], [0], [0], [1], [0, 0, 1, 1], [], []>} : vector<2x128xf32>, vector<128x384xf32>, vector<2x384xf32> -> vector<2x384xf32>
    %8 = vector.extract_strided_slice %6 {offsets = [0, 0], sizes = [2, 128], strides = [1, 1]} : vector<2x384xf32> to vector<2x128xf32>
    %9 = vector.extract_strided_slice %7 {offsets = [0, 0], sizes = [2, 128], strides = [1, 1]} : vector<2x384xf32> to vector<2x128xf32>
    %10 = arith.addf %8, %9 : vector<2x128xf32>
    %11 = arith.negf %10 : vector<2x128xf32>
    %12 = math.exp %11 : vector<2x128xf32>
    %cst_8 = arith.constant 1.000000e+00 : f32
    %13 = vector.broadcast %cst_8 : f32 to vector<2x128xf32>
    %14 = arith.addf %13, %12 : vector<2x128xf32>
    %15 = arith.divf %13, %14 : vector<2x128xf32>
    %16 = vector.extract_strided_slice %6 {offsets = [0, 128], sizes = [2, 128], strides = [1, 1]} : vector<2x384xf32> to vector<2x128xf32>
    %17 = vector.extract_strided_slice %7 {offsets = [0, 128], sizes = [2, 128], strides = [1, 1]} : vector<2x384xf32> to vector<2x128xf32>
    %18 = arith.addf %16, %17 : vector<2x128xf32>
    %19 = arith.negf %18 : vector<2x128xf32>
    %20 = math.exp %19 : vector<2x128xf32>
    %cst_9 = arith.constant 1.000000e+00 : f32
    %21 = vector.broadcast %cst_9 : f32 to vector<2x128xf32>
    %22 = arith.addf %21, %20 : vector<2x128xf32>
    %23 = arith.divf %21, %22 : vector<2x128xf32>
    %24 = vector.extract_strided_slice %6 {offsets = [0, 256], sizes = [2, 128], strides = [1, 1]} : vector<2x384xf32> to vector<2x128xf32>
    %25 = vector.extract_strided_slice %7 {offsets = [0, 256], sizes = [2, 128], strides = [1, 1]} : vector<2x384xf32> to vector<2x128xf32>
    %26 = vector.broadcast %4 : vector<1x128xf32> to vector<2x128xf32>
    %27 = arith.addf %25, %26 : vector<2x128xf32>
    %28 = arith.mulf %15, %27 : vector<2x128xf32>
    %29 = arith.addf %24, %28 : vector<2x128xf32>
    %30 = math.tanh %29 : vector<2x128xf32>
    %cst_10 = arith.constant 1.000000e+00 : f32
    %31 = vector.broadcast %cst_10 : f32 to vector<2x128xf32>
    %32 = arith.subf %31, %23 : vector<2x128xf32>
    %33 = arith.mulf %32, %30 : vector<2x128xf32>
    %34 = arith.mulf %23, %5 : vector<2x128xf32>
    %35 = arith.addf %33, %34 : vector<2x128xf32>
    %c0_11 = arith.constant 0 : index
    %c0_12 = arith.constant 0 : index
    %36 = vector.load %arg5[%c0_11, %c0_12] : memref<16x128xf32, #tpu.memory_space<vmem>>, vector<2x128xf32>
    tpu.vector_store %arg5[%c0_11, %c0_12], %35 {strides = array<i32>} : memref<16x128xf32, #tpu.memory_space<vmem>>, vector<2x128xf32>,
    %c2 = arith.constant 2 : index
    %c0_13 = arith.constant 0 : index
    %37 = vector.load %arg2[%c2, %c0_13] : memref<16x384xf32, #tpu.memory_space<vmem>>, vector<2x384xf32>
    %cst_14 = arith.constant dense<0.000000e+00> : vector<2x384xf32>
    %38 = tpu.matmul %35, %3, %cst_14 {dimension_numbers = #tpu.dot_dimension_numbers<[1], [0], [0], [1], [0, 0, 1, 1], [], []>} : vector<2x128xf32>, vector<128x384xf32>, vector<2x384xf32> -> vector<2x384xf32>
    %39 = vector.extract_strided_slice %37 {offsets = [0, 0], sizes = [2, 128], strides = [1, 1]} : vector<2x384xf32> to vector<2x128xf32>
    %40 = vector.extract_strided_slice %38 {offsets = [0, 0], sizes = [2, 128], strides = [1, 1]} : vector<2x384xf32> to vector<2x128xf32>
    %41 = arith.addf %39, %40 : vector<2x128xf32>
    %42 = arith.negf %41 : vector<2x128xf32>
    %43 = math.exp %42 : vector<2x128xf32>
    %cst_15 = arith.constant 1.000000e+00 : f32
    %44 = vector.broadcast %cst_15 : f32 to vector<2x128xf32>
    %45 = arith.addf %44, %43 : vector<2x128xf32>
    %46 = arith.divf %44, %45 : vector<2x128xf32>
    %47 = vector.extract_strided_slice %37 {offsets = [0, 128], sizes = [2, 128], strides = [1, 1]} : vector<2x384xf32> to vector<2x128xf32>
    %48 = vector.extract_strided_slice %38 {offsets = [0, 128], sizes = [2, 128], strides = [1, 1]} : vector<2x384xf32> to vector<2x128xf32>
    %49 = arith.addf %47, %48 : vector<2x128xf32>
    %50 = arith.negf %49 : vector<2x128xf32>
    %51 = math.exp %50 : vector<2x128xf32>
    %cst_16 = arith.constant 1.000000e+00 : f32
    %52 = vector.broadcast %cst_16 : f32 to vector<2x128xf32>
    %53 = arith.addf %52, %51 : vector<2x128xf32>
    %54 = arith.divf %52, %53 : vector<2x128xf32>
    %55 = vector.extract_strided_slice %37 {offsets = [0, 256], sizes = [2, 128], strides = [1, 1]} : vector<2x384xf32> to vector<2x128xf32>
    %56 = vector.extract_strided_slice %38 {offsets = [0, 256], sizes = [2, 128], strides = [1, 1]} : vector<2x384xf32> to vector<2x128xf32>
    %57 = vector.broadcast %4 : vector<1x128xf32> to vector<2x128xf32>
    %58 = arith.addf %56, %57 : vector<2x128xf32>
    %59 = arith.mulf %46, %58 : vector<2x128xf32>
    %60 = arith.addf %55, %59 : vector<2x128xf32>
    %61 = math.tanh %60 : vector<2x128xf32>
    %cst_17 = arith.constant 1.000000e+00 : f32
    %62 = vector.broadcast %cst_17 : f32 to vector<2x128xf32>
    %63 = arith.subf %62, %54 : vector<2x128xf32>
    %64 = arith.mulf %63, %61 : vector<2x128xf32>
    %65 = arith.mulf %54, %35 : vector<2x128xf32>
    %66 = arith.addf %64, %65 : vector<2x128xf32>
    %c2_18 = arith.constant 2 : index
    %c0_19 = arith.constant 0 : index
    %67 = vector.load %arg5[%c2_18, %c0_19] : memref<16x128xf32, #tpu.memory_space<vmem>>, vector<2x128xf32>
    tpu.vector_store %arg5[%c2_18, %c0_19], %66 {strides = array<i32>} : memref<16x128xf32, #tpu.memory_space<vmem>>, vector<2x128xf32>,
    %c4 = arith.constant 4 : index
    %c0_20 = arith.constant 0 : index
    %68 = vector.load %arg2[%c4, %c0_20] : memref<16x384xf32, #tpu.memory_space<vmem>>, vector<2x384xf32>
    %cst_21 = arith.constant dense<0.000000e+00> : vector<2x384xf32>
    %69 = tpu.matmul %66, %3, %cst_21 {dimension_numbers = #tpu.dot_dimension_numbers<[1], [0], [0], [1], [0, 0, 1, 1], [], []>} : vector<2x128xf32>, vector<128x384xf32>, vector<2x384xf32> -> vector<2x384xf32>
    %70 = vector.extract_strided_slice %68 {offsets = [0, 0], sizes = [2, 128], strides = [1, 1]} : vector<2x384xf32> to vector<2x128xf32>
    %71 = vector.extract_strided_slice %69 {offsets = [0, 0], sizes = [2, 128], strides = [1, 1]} : vector<2x384xf32> to vector<2x128xf32>
    %72 = arith.addf %70, %71 : vector<2x128xf32>
    %73 = arith.negf %72 : vector<2x128xf32>
    %74 = math.exp %73 : vector<2x128xf32>
    %cst_22 = arith.constant 1.000000e+00 : f32
    %75 = vector.broadcast %cst_22 : f32 to vector<2x128xf32>
    %76 = arith.addf %75, %74 : vector<2x128xf32>
    %77 = arith.divf %75, %76 : vector<2x128xf32>
    %78 = vector.extract_strided_slice %68 {offsets = [0, 128], sizes = [2, 128], strides = [1, 1]} : vector<2x384xf32> to vector<2x128xf32>
    %79 = vector.extract_strided_slice %69 {offsets = [0, 128], sizes = [2, 128], strides = [1, 1]} : vector<2x384xf32> to vector<2x128xf32>
    %80 = arith.addf %78, %79 : vector<2x128xf32>
    %81 = arith.negf %80 : vector<2x128xf32>
    %82 = math.exp %81 : vector<2x128xf32>
    %cst_23 = arith.constant 1.000000e+00 : f32
    %83 = vector.broadcast %cst_23 : f32 to vector<2x128xf32>
    %84 = arith.addf %83, %82 : vector<2x128xf32>
    %85 = arith.divf %83, %84 : vector<2x128xf32>
    %86 = vector.extract_strided_slice %68 {offsets = [0, 256], sizes = [2, 128], strides = [1, 1]} : vector<2x384xf32> to vector<2x128xf32>
    %87 = vector.extract_strided_slice %69 {offsets = [0, 256], sizes = [2, 128], strides = [1, 1]} : vector<2x384xf32> to vector<2x128xf32>
    %88 = vector.broadcast %4 : vector<1x128xf32> to vector<2x128xf32>
    %89 = arith.addf %87, %88 : vector<2x128xf32>
    %90 = arith.mulf %77, %89 : vector<2x128xf32>
    %91 = arith.addf %86, %90 : vector<2x128xf32>
    %92 = math.tanh %91 : vector<2x128xf32>
    %cst_24 = arith.constant 1.000000e+00 : f32
    %93 = vector.broadcast %cst_24 : f32 to vector<2x128xf32>
    %94 = arith.subf %93, %85 : vector<2x128xf32>
    %95 = arith.mulf %94, %92 : vector<2x128xf32>
    %96 = arith.mulf %85, %66 : vector<2x128xf32>
    %97 = arith.addf %95, %96 : vector<2x128xf32>
    %c4_25 = arith.constant 4 : index
    %c0_26 = arith.constant 0 : index
    %98 = vector.load %arg5[%c4_25, %c0_26] : memref<16x128xf32, #tpu.memory_space<vmem>>, vector<2x128xf32>
    tpu.vector_store %arg5[%c4_25, %c0_26], %97 {strides = array<i32>} : memref<16x128xf32, #tpu.memory_space<vmem>>, vector<2x128xf32>,
    %c6 = arith.constant 6 : index
    %c0_27 = arith.constant 0 : index
    %99 = vector.load %arg2[%c6, %c0_27] : memref<16x384xf32, #tpu.memory_space<vmem>>, vector<2x384xf32>
    %cst_28 = arith.constant dense<0.000000e+00> : vector<2x384xf32>
    %100 = tpu.matmul %97, %3, %cst_28 {dimension_numbers = #tpu.dot_dimension_numbers<[1], [0], [0], [1], [0, 0, 1, 1], [], []>} : vector<2x128xf32>, vector<128x384xf32>, vector<2x384xf32> -> vector<2x384xf32>
    %101 = vector.extract_strided_slice %99 {offsets = [0, 0], sizes = [2, 128], strides = [1, 1]} : vector<2x384xf32> to vector<2x128xf32>
    %102 = vector.extract_strided_slice %100 {offsets = [0, 0], sizes = [2, 128], strides = [1, 1]} : vector<2x384xf32> to vector<2x128xf32>
    %103 = arith.addf %101, %102 : vector<2x128xf32>
    %104 = arith.negf %103 : vector<2x128xf32>
    %105 = math.exp %104 : vector<2x128xf32>
    %cst_29 = arith.constant 1.000000e+00 : f32
    %106 = vector.broadcast %cst_29 : f32 to vector<2x128xf32>
    %107 = arith.addf %106, %105 : vector<2x128xf32>
    %108 = arith.divf %106, %107 : vector<2x128xf32>
    %109 = vector.extract_strided_slice %99 {offsets = [0, 128], sizes = [2, 128], strides = [1, 1]} : vector<2x384xf32> to vector<2x128xf32>
    %110 = vector.extract_strided_slice %100 {offsets = [0, 128], sizes = [2, 128], strides = [1, 1]} : vector<2x384xf32> to vector<2x128xf32>
    %111 = arith.addf %109, %110 : vector<2x128xf32>
    %112 = arith.negf %111 : vector<2x128xf32>
    %113 = math.exp %112 : vector<2x128xf32>
    %cst_30 = arith.constant 1.000000e+00 : f32
    %114 = vector.broadcast %cst_30 : f32 to vector<2x128xf32>
    %115 = arith.addf %114, %113 : vector<2x128xf32>
    %116 = arith.divf %114, %115 : vector<2x128xf32>
    %117 = vector.extract_strided_slice %99 {offsets = [0, 256], sizes = [2, 128], strides = [1, 1]} : vector<2x384xf32> to vector<2x128xf32>
    %118 = vector.extract_strided_slice %100 {offsets = [0, 256], sizes = [2, 128], strides = [1, 1]} : vector<2x384xf32> to vector<2x128xf32>
    %119 = vector.broadcast %4 : vector<1x128xf32> to vector<2x128xf32>
    %120 = arith.addf %118, %119 : vector<2x128xf32>
    %121 = arith.mulf %108, %120 : vector<2x128xf32>
    %122 = arith.addf %117, %121 : vector<2x128xf32>
    %123 = math.tanh %122 : vector<2x128xf32>
    %cst_31 = arith.constant 1.000000e+00 : f32
    %124 = vector.broadcast %cst_31 : f32 to vector<2x128xf32>
    %125 = arith.subf %124, %116 : vector<2x128xf32>
    %126 = arith.mulf %125, %123 : vector<2x128xf32>
    %127 = arith.mulf %116, %97 : vector<2x128xf32>
    %128 = arith.addf %126, %127 : vector<2x128xf32>
    %c6_32 = arith.constant 6 : index
    %c0_33 = arith.constant 0 : index
    %129 = vector.load %arg5[%c6_32, %c0_33] : memref<16x128xf32, #tpu.memory_space<vmem>>, vector<2x128xf32>
    tpu.vector_store %arg5[%c6_32, %c0_33], %128 {strides = array<i32>} : memref<16x128xf32, #tpu.memory_space<vmem>>, vector<2x128xf32>,
    %c8 = arith.constant 8 : index
    %c0_34 = arith.constant 0 : index
    %130 = vector.load %arg2[%c8, %c0_34] : memref<16x384xf32, #tpu.memory_space<vmem>>, vector<2x384xf32>
    %cst_35 = arith.constant dense<0.000000e+00> : vector<2x384xf32>
    %131 = tpu.matmul %128, %3, %cst_35 {dimension_numbers = #tpu.dot_dimension_numbers<[1], [0], [0], [1], [0, 0, 1, 1], [], []>} : vector<2x128xf32>, vector<128x384xf32>, vector<2x384xf32> -> vector<2x384xf32>
    %132 = vector.extract_strided_slice %130 {offsets = [0, 0], sizes = [2, 128], strides = [1, 1]} : vector<2x384xf32> to vector<2x128xf32>
    %133 = vector.extract_strided_slice %131 {offsets = [0, 0], sizes = [2, 128], strides = [1, 1]} : vector<2x384xf32> to vector<2x128xf32>
    %134 = arith.addf %132, %133 : vector<2x128xf32>
    %135 = arith.negf %134 : vector<2x128xf32>
    %136 = math.exp %135 : vector<2x128xf32>
    %cst_36 = arith.constant 1.000000e+00 : f32
    %137 = vector.broadcast %cst_36 : f32 to vector<2x128xf32>
    %138 = arith.addf %137, %136 : vector<2x128xf32>
    %139 = arith.divf %137, %138 : vector<2x128xf32>
    %140 = vector.extract_strided_slice %130 {offsets = [0, 128], sizes = [2, 128], strides = [1, 1]} : vector<2x384xf32> to vector<2x128xf32>
    %141 = vector.extract_strided_slice %131 {offsets = [0, 128], sizes = [2, 128], strides = [1, 1]} : vector<2x384xf32> to vector<2x128xf32>
    %142 = arith.addf %140, %141 : vector<2x128xf32>
    %143 = arith.negf %142 : vector<2x128xf32>
    %144 = math.exp %143 : vector<2x128xf32>
    %cst_37 = arith.constant 1.000000e+00 : f32
    %145 = vector.broadcast %cst_37 : f32 to vector<2x128xf32>
    %146 = arith.addf %145, %144 : vector<2x128xf32>
    %147 = arith.divf %145, %146 : vector<2x128xf32>
    %148 = vector.extract_strided_slice %130 {offsets = [0, 256], sizes = [2, 128], strides = [1, 1]} : vector<2x384xf32> to vector<2x128xf32>
    %149 = vector.extract_strided_slice %131 {offsets = [0, 256], sizes = [2, 128], strides = [1, 1]} : vector<2x384xf32> to vector<2x128xf32>
    %150 = vector.broadcast %4 : vector<1x128xf32> to vector<2x128xf32>
    %151 = arith.addf %149, %150 : vector<2x128xf32>
    %152 = arith.mulf %139, %151 : vector<2x128xf32>
    %153 = arith.addf %148, %152 : vector<2x128xf32>
    %154 = math.tanh %153 : vector<2x128xf32>
    %cst_38 = arith.constant 1.000000e+00 : f32
    %155 = vector.broadcast %cst_38 : f32 to vector<2x128xf32>
    %156 = arith.subf %155, %147 : vector<2x128xf32>
    %157 = arith.mulf %156, %154 : vector<2x128xf32>
    %158 = arith.mulf %147, %128 : vector<2x128xf32>
    %159 = arith.addf %157, %158 : vector<2x128xf32>
    %c8_39 = arith.constant 8 : index
    %c0_40 = arith.constant 0 : index
    %160 = vector.load %arg5[%c8_39, %c0_40] : memref<16x128xf32, #tpu.memory_space<vmem>>, vector<2x128xf32>
    tpu.vector_store %arg5[%c8_39, %c0_40], %159 {strides = array<i32>} : memref<16x128xf32, #tpu.memory_space<vmem>>, vector<2x128xf32>,
    %c10 = arith.constant 10 : index
    %c0_41 = arith.constant 0 : index
    %161 = vector.load %arg2[%c10, %c0_41] : memref<16x384xf32, #tpu.memory_space<vmem>>, vector<2x384xf32>
    %cst_42 = arith.constant dense<0.000000e+00> : vector<2x384xf32>
    %162 = tpu.matmul %159, %3, %cst_42 {dimension_numbers = #tpu.dot_dimension_numbers<[1], [0], [0], [1], [0, 0, 1, 1], [], []>} : vector<2x128xf32>, vector<128x384xf32>, vector<2x384xf32> -> vector<2x384xf32>
    %163 = vector.extract_strided_slice %161 {offsets = [0, 0], sizes = [2, 128], strides = [1, 1]} : vector<2x384xf32> to vector<2x128xf32>
    %164 = vector.extract_strided_slice %162 {offsets = [0, 0], sizes = [2, 128], strides = [1, 1]} : vector<2x384xf32> to vector<2x128xf32>
    %165 = arith.addf %163, %164 : vector<2x128xf32>
    %166 = arith.negf %165 : vector<2x128xf32>
    %167 = math.exp %166 : vector<2x128xf32>
    %cst_43 = arith.constant 1.000000e+00 : f32
    %168 = vector.broadcast %cst_43 : f32 to vector<2x128xf32>
    %169 = arith.addf %168, %167 : vector<2x128xf32>
    %170 = arith.divf %168, %169 : vector<2x128xf32>
    %171 = vector.extract_strided_slice %161 {offsets = [0, 128], sizes = [2, 128], strides = [1, 1]} : vector<2x384xf32> to vector<2x128xf32>
    %172 = vector.extract_strided_slice %162 {offsets = [0, 128], sizes = [2, 128], strides = [1, 1]} : vector<2x384xf32> to vector<2x128xf32>
    %173 = arith.addf %171, %172 : vector<2x128xf32>
    %174 = arith.negf %173 : vector<2x128xf32>
    %175 = math.exp %174 : vector<2x128xf32>
    %cst_44 = arith.constant 1.000000e+00 : f32
    %176 = vector.broadcast %cst_44 : f32 to vector<2x128xf32>
    %177 = arith.addf %176, %175 : vector<2x128xf32>
    %178 = arith.divf %176, %177 : vector<2x128xf32>
    %179 = vector.extract_strided_slice %161 {offsets = [0, 256], sizes = [2, 128], strides = [1, 1]} : vector<2x384xf32> to vector<2x128xf32>
    %180 = vector.extract_strided_slice %162 {offsets = [0, 256], sizes = [2, 128], strides = [1, 1]} : vector<2x384xf32> to vector<2x128xf32>
    %181 = vector.broadcast %4 : vector<1x128xf32> to vector<2x128xf32>
    %182 = arith.addf %180, %181 : vector<2x128xf32>
    %183 = arith.mulf %170, %182 : vector<2x128xf32>
    %184 = arith.addf %179, %183 : vector<2x128xf32>
    %185 = math.tanh %184 : vector<2x128xf32>
    %cst_45 = arith.constant 1.000000e+00 : f32
    %186 = vector.broadcast %cst_45 : f32 to vector<2x128xf32>
    %187 = arith.subf %186, %178 : vector<2x128xf32>
    %188 = arith.mulf %187, %185 : vector<2x128xf32>
    %189 = arith.mulf %178, %159 : vector<2x128xf32>
    %190 = arith.addf %188, %189 : vector<2x128xf32>
    %c10_46 = arith.constant 10 : index
    %c0_47 = arith.constant 0 : index
    %191 = vector.load %arg5[%c10_46, %c0_47] : memref<16x128xf32, #tpu.memory_space<vmem>>, vector<2x128xf32>
    tpu.vector_store %arg5[%c10_46, %c0_47], %190 {strides = array<i32>} : memref<16x128xf32, #tpu.memory_space<vmem>>, vector<2x128xf32>,
    %c12 = arith.constant 12 : index
    %c0_48 = arith.constant 0 : index
    %192 = vector.load %arg2[%c12, %c0_48] : memref<16x384xf32, #tpu.memory_space<vmem>>, vector<2x384xf32>
    %cst_49 = arith.constant dense<0.000000e+00> : vector<2x384xf32>
    %193 = tpu.matmul %190, %3, %cst_49 {dimension_numbers = #tpu.dot_dimension_numbers<[1], [0], [0], [1], [0, 0, 1, 1], [], []>} : vector<2x128xf32>, vector<128x384xf32>, vector<2x384xf32> -> vector<2x384xf32>
    %194 = vector.extract_strided_slice %192 {offsets = [0, 0], sizes = [2, 128], strides = [1, 1]} : vector<2x384xf32> to vector<2x128xf32>
    %195 = vector.extract_strided_slice %193 {offsets = [0, 0], sizes = [2, 128], strides = [1, 1]} : vector<2x384xf32> to vector<2x128xf32>
    %196 = arith.addf %194, %195 : vector<2x128xf32>
    %197 = arith.negf %196 : vector<2x128xf32>
    %198 = math.exp %197 : vector<2x128xf32>
    %cst_50 = arith.constant 1.000000e+00 : f32
    %199 = vector.broadcast %cst_50 : f32 to vector<2x128xf32>
    %200 = arith.addf %199, %198 : vector<2x128xf32>
    %201 = arith.divf %199, %200 : vector<2x128xf32>
    %202 = vector.extract_strided_slice %192 {offsets = [0, 128], sizes = [2, 128], strides = [1, 1]} : vector<2x384xf32> to vector<2x128xf32>
    %203 = vector.extract_strided_slice %193 {offsets = [0, 128], sizes = [2, 128], strides = [1, 1]} : vector<2x384xf32> to vector<2x128xf32>
    %204 = arith.addf %202, %203 : vector<2x128xf32>
    %205 = arith.negf %204 : vector<2x128xf32>
    %206 = math.exp %205 : vector<2x128xf32>
    %cst_51 = arith.constant 1.000000e+00 : f32
    %207 = vector.broadcast %cst_51 : f32 to vector<2x128xf32>
    %208 = arith.addf %207, %206 : vector<2x128xf32>
    %209 = arith.divf %207, %208 : vector<2x128xf32>
    %210 = vector.extract_strided_slice %192 {offsets = [0, 256], sizes = [2, 128], strides = [1, 1]} : vector<2x384xf32> to vector<2x128xf32>
    %211 = vector.extract_strided_slice %193 {offsets = [0, 256], sizes = [2, 128], strides = [1, 1]} : vector<2x384xf32> to vector<2x128xf32>
    %212 = vector.broadcast %4 : vector<1x128xf32> to vector<2x128xf32>
    %213 = arith.addf %211, %212 : vector<2x128xf32>
    %214 = arith.mulf %201, %213 : vector<2x128xf32>
    %215 = arith.addf %210, %214 : vector<2x128xf32>
    %216 = math.tanh %215 : vector<2x128xf32>
    %cst_52 = arith.constant 1.000000e+00 : f32
    %217 = vector.broadcast %cst_52 : f32 to vector<2x128xf32>
    %218 = arith.subf %217, %209 : vector<2x128xf32>
    %219 = arith.mulf %218, %216 : vector<2x128xf32>
    %220 = arith.mulf %209, %190 : vector<2x128xf32>
    %221 = arith.addf %219, %220 : vector<2x128xf32>
    %c12_53 = arith.constant 12 : index
    %c0_54 = arith.constant 0 : index
    %222 = vector.load %arg5[%c12_53, %c0_54] : memref<16x128xf32, #tpu.memory_space<vmem>>, vector<2x128xf32>
    tpu.vector_store %arg5[%c12_53, %c0_54], %221 {strides = array<i32>} : memref<16x128xf32, #tpu.memory_space<vmem>>, vector<2x128xf32>,
    %c14 = arith.constant 14 : index
    %c0_55 = arith.constant 0 : index
    %223 = vector.load %arg2[%c14, %c0_55] : memref<16x384xf32, #tpu.memory_space<vmem>>, vector<2x384xf32>
    %cst_56 = arith.constant dense<0.000000e+00> : vector<2x384xf32>
    %224 = tpu.matmul %221, %3, %cst_56 {dimension_numbers = #tpu.dot_dimension_numbers<[1], [0], [0], [1], [0, 0, 1, 1], [], []>} : vector<2x128xf32>, vector<128x384xf32>, vector<2x384xf32> -> vector<2x384xf32>
    %225 = vector.extract_strided_slice %223 {offsets = [0, 0], sizes = [2, 128], strides = [1, 1]} : vector<2x384xf32> to vector<2x128xf32>
    %226 = vector.extract_strided_slice %224 {offsets = [0, 0], sizes = [2, 128], strides = [1, 1]} : vector<2x384xf32> to vector<2x128xf32>
    %227 = arith.addf %225, %226 : vector<2x128xf32>
    %228 = arith.negf %227 : vector<2x128xf32>
    %229 = math.exp %228 : vector<2x128xf32>
    %cst_57 = arith.constant 1.000000e+00 : f32
    %230 = vector.broadcast %cst_57 : f32 to vector<2x128xf32>
    %231 = arith.addf %230, %229 : vector<2x128xf32>
    %232 = arith.divf %230, %231 : vector<2x128xf32>
    %233 = vector.extract_strided_slice %223 {offsets = [0, 128], sizes = [2, 128], strides = [1, 1]} : vector<2x384xf32> to vector<2x128xf32>
    %234 = vector.extract_strided_slice %224 {offsets = [0, 128], sizes = [2, 128], strides = [1, 1]} : vector<2x384xf32> to vector<2x128xf32>
    %235 = arith.addf %233, %234 : vector<2x128xf32>
    %236 = arith.negf %235 : vector<2x128xf32>
    %237 = math.exp %236 : vector<2x128xf32>
    %cst_58 = arith.constant 1.000000e+00 : f32
    %238 = vector.broadcast %cst_58 : f32 to vector<2x128xf32>
    %239 = arith.addf %238, %237 : vector<2x128xf32>
    %240 = arith.divf %238, %239 : vector<2x128xf32>
    %241 = vector.extract_strided_slice %223 {offsets = [0, 256], sizes = [2, 128], strides = [1, 1]} : vector<2x384xf32> to vector<2x128xf32>
    %242 = vector.extract_strided_slice %224 {offsets = [0, 256], sizes = [2, 128], strides = [1, 1]} : vector<2x384xf32> to vector<2x128xf32>
    %243 = vector.broadcast %4 : vector<1x128xf32> to vector<2x128xf32>
    %244 = arith.addf %242, %243 : vector<2x128xf32>
    %245 = arith.mulf %232, %244 : vector<2x128xf32>
    %246 = arith.addf %241, %245 : vector<2x128xf32>
    %247 = math.tanh %246 : vector<2x128xf32>
    %cst_59 = arith.constant 1.000000e+00 : f32
    %248 = vector.broadcast %cst_59 : f32 to vector<2x128xf32>
    %249 = arith.subf %248, %240 : vector<2x128xf32>
    %250 = arith.mulf %249, %247 : vector<2x128xf32>
    %251 = arith.mulf %240, %221 : vector<2x128xf32>
    %252 = arith.addf %250, %251 : vector<2x128xf32>
    %c14_60 = arith.constant 14 : index
    %c0_61 = arith.constant 0 : index
    %253 = vector.load %arg5[%c14_60, %c0_61] : memref<16x128xf32, #tpu.memory_space<vmem>>, vector<2x128xf32>
    tpu.vector_store %arg5[%c14_60, %c0_61], %252 {strides = array<i32>} : memref<16x128xf32, #tpu.memory_space<vmem>>, vector<2x128xf32>,
    %c0_62 = arith.constant 0 : index
    %c0_63 = arith.constant 0 : index
    %254 = vector.load %arg6[%c0_62, %c0_63] : memref<2x128xf32, #tpu.memory_space<vmem>>, vector<2x128xf32>
    tpu.vector_store %arg6[%c0_62, %c0_63], %252 {strides = array<i32>} : memref<2x128xf32, #tpu.memory_space<vmem>>, vector<2x128xf32>,
    return
  }
  func.func @transform_0(%arg0: i32, %arg1: i32) -> (i32, i32) {
    %c1_i32 = arith.constant 1 : i32
    %0 = arith.muli %arg0, %c1_i32 : i32
    %1 = arith.addi %0, %arg1 : i32
    %c0_i32 = arith.constant 0 : i32
    %c0_i32_0 = arith.constant 0 : i32
    return %1, %c0_i32 : i32, i32
  }
  func.func @transform_1(%arg0: i32, %arg1: i32) -> (i32, i32) {
    %c0_i32 = arith.constant 0 : i32
    %c0_i32_0 = arith.constant 0 : i32
    %c0_i32_1 = arith.constant 0 : i32
    return %c0_i32, %c0_i32_0 : i32, i32
  }
  func.func @transform_2(%arg0: i32, %arg1: i32) -> (i32, i32) {
    %c0_i32 = arith.constant 0 : i32
    %c0_i32_0 = arith.constant 0 : i32
    %c0_i32_1 = arith.constant 0 : i32
    return %c0_i32, %c0_i32_0 : i32, i32
  }
  func.func @transform_3(%arg0: i32, %arg1: i32) -> (i32, i32) {
    %c1_i32 = arith.constant 1 : i32
    %0 = arith.muli %arg0, %c1_i32 : i32
    %1 = arith.addi %0, %arg1 : i32
    %c0_i32 = arith.constant 0 : i32
    %c0_i32_0 = arith.constant 0 : i32
    return %1, %c0_i32 : i32, i32
  }
}

module attributes {stable_mosaic.version = 11 : i64} {
  func.func @_gru_last_kernel(%arg0: i32, %arg1: i32, %arg2: memref<16x384xf32, #tpu.memory_space<vmem>>, %arg3: memref<128x384xf32, #tpu.memory_space<vmem>>, %arg4: memref<1x128xf32, #tpu.memory_space<vmem>>, %arg5: memref<128x4xf32, #tpu.memory_space<vmem>>, %arg6: memref<1x4xf32, #tpu.memory_space<vmem>>, %arg7: memref<2x4xf32, #tpu.memory_space<vmem>>, %arg8: memref<2x128xf32, #tpu.memory_space<vmem>>) attributes {dimension_semantics = [#tpu.dimension_semantics<parallel>, #tpu.dimension_semantics<arbitrary>], iteration_bounds = array<i64: 1, 1>, scalar_prefetch = 0 : i64, scratch_operands = 1 : i64, tpu.core_type = #tpu.core_type<tc>, window_params = [{transform_indices = @transform_0, window_bounds = array<i64: 16, 384>}, {pipeline_mode = #tpu.pipeline_mode<synchronous>, transform_indices = @transform_1, window_bounds = array<i64: 128, 384>}, {pipeline_mode = #tpu.pipeline_mode<synchronous>, transform_indices = @transform_2, window_bounds = array<i64: 1, 128>}, {pipeline_mode = #tpu.pipeline_mode<synchronous>, transform_indices = @transform_3, window_bounds = array<i64: 128, 4>}, {pipeline_mode = #tpu.pipeline_mode<synchronous>, transform_indices = @transform_4, window_bounds = array<i64: 1, 4>}, {transform_indices = @transform_5, window_bounds = array<i64: 2, 4>}]} {
    %c0_i32 = arith.constant 0 : i32
    %0 = arith.cmpi eq, %arg1, %c0_i32 : i32
    %1 = arith.extui %0 : i1 to i32
    %c0_i32_0 = arith.constant 0 : i32
    %2 = arith.cmpi ne, %1, %c0_i32_0 : i32
    scf.if %2 {
      %cst_50 = arith.constant 0.000000e+00 : f32
      %250 = vector.broadcast %cst_50 : f32 to vector<2x128xf32>
      %c0_51 = arith.constant 0 : index
      %c0_52 = arith.constant 0 : index
      %251 = vector.load %arg8[%c0_51, %c0_52] : memref<2x128xf32, #tpu.memory_space<vmem>>, vector<2x128xf32>
      tpu.vector_store %arg8[%c0_51, %c0_52], %250 {strides = array<i32>} : memref<2x128xf32, #tpu.memory_space<vmem>>, vector<2x128xf32>,
    } else {
    }
    %c0 = arith.constant 0 : index
    %c0_1 = arith.constant 0 : index
    %3 = vector.load %arg3[%c0, %c0_1] : memref<128x384xf32, #tpu.memory_space<vmem>>, vector<128x384xf32>
    %c0_2 = arith.constant 0 : index
    %c0_3 = arith.constant 0 : index
    %4 = vector.load %arg4[%c0_2, %c0_3] : memref<1x128xf32, #tpu.memory_space<vmem>>, vector<1x128xf32>
    %c0_4 = arith.constant 0 : index
    %c0_5 = arith.constant 0 : index
    %5 = vector.load %arg8[%c0_4, %c0_5] : memref<2x128xf32, #tpu.memory_space<vmem>>, vector<2x128xf32>
    %c0_6 = arith.constant 0 : index
    %c0_7 = arith.constant 0 : index
    %6 = vector.load %arg2[%c0_6, %c0_7] : memref<16x384xf32, #tpu.memory_space<vmem>>, vector<2x384xf32>
    %cst = arith.constant dense<0.000000e+00> : vector<2x384xf32>
    %7 = tpu.matmul %5, %3, %cst {dimension_numbers = #tpu.dot_dimension_numbers<[1], [0], [0], [1], [0, 0, 1, 1], [], []>} : vector<2x128xf32>, vector<128x384xf32>, vector<2x384xf32> -> vector<2x384xf32>
    %8 = vector.extract_strided_slice %6 {offsets = [0, 0], sizes = [2, 128], strides = [1, 1]} : vector<2x384xf32> to vector<2x128xf32>
    %9 = vector.extract_strided_slice %7 {offsets = [0, 0], sizes = [2, 128], strides = [1, 1]} : vector<2x384xf32> to vector<2x128xf32>
    %10 = arith.addf %8, %9 : vector<2x128xf32>
    %11 = arith.negf %10 : vector<2x128xf32>
    %12 = math.exp %11 : vector<2x128xf32>
    %cst_8 = arith.constant 1.000000e+00 : f32
    %13 = vector.broadcast %cst_8 : f32 to vector<2x128xf32>
    %14 = arith.addf %13, %12 : vector<2x128xf32>
    %15 = arith.divf %13, %14 : vector<2x128xf32>
    %16 = vector.extract_strided_slice %6 {offsets = [0, 128], sizes = [2, 128], strides = [1, 1]} : vector<2x384xf32> to vector<2x128xf32>
    %17 = vector.extract_strided_slice %7 {offsets = [0, 128], sizes = [2, 128], strides = [1, 1]} : vector<2x384xf32> to vector<2x128xf32>
    %18 = arith.addf %16, %17 : vector<2x128xf32>
    %19 = arith.negf %18 : vector<2x128xf32>
    %20 = math.exp %19 : vector<2x128xf32>
    %cst_9 = arith.constant 1.000000e+00 : f32
    %21 = vector.broadcast %cst_9 : f32 to vector<2x128xf32>
    %22 = arith.addf %21, %20 : vector<2x128xf32>
    %23 = arith.divf %21, %22 : vector<2x128xf32>
    %24 = vector.extract_strided_slice %6 {offsets = [0, 256], sizes = [2, 128], strides = [1, 1]} : vector<2x384xf32> to vector<2x128xf32>
    %25 = vector.extract_strided_slice %7 {offsets = [0, 256], sizes = [2, 128], strides = [1, 1]} : vector<2x384xf32> to vector<2x128xf32>
    %26 = vector.broadcast %4 : vector<1x128xf32> to vector<2x128xf32>
    %27 = arith.addf %25, %26 : vector<2x128xf32>
    %28 = arith.mulf %15, %27 : vector<2x128xf32>
    %29 = arith.addf %24, %28 : vector<2x128xf32>
    %30 = math.tanh %29 : vector<2x128xf32>
    %cst_10 = arith.constant 1.000000e+00 : f32
    %31 = vector.broadcast %cst_10 : f32 to vector<2x128xf32>
    %32 = arith.subf %31, %23 : vector<2x128xf32>
    %33 = arith.mulf %32, %30 : vector<2x128xf32>
    %34 = arith.mulf %23, %5 : vector<2x128xf32>
    %35 = arith.addf %33, %34 : vector<2x128xf32>
    %c2 = arith.constant 2 : index
    %c0_11 = arith.constant 0 : index
    %36 = vector.load %arg2[%c2, %c0_11] : memref<16x384xf32, #tpu.memory_space<vmem>>, vector<2x384xf32>
    %cst_12 = arith.constant dense<0.000000e+00> : vector<2x384xf32>
    %37 = tpu.matmul %35, %3, %cst_12 {dimension_numbers = #tpu.dot_dimension_numbers<[1], [0], [0], [1], [0, 0, 1, 1], [], []>} : vector<2x128xf32>, vector<128x384xf32>, vector<2x384xf32> -> vector<2x384xf32>
    %38 = vector.extract_strided_slice %36 {offsets = [0, 0], sizes = [2, 128], strides = [1, 1]} : vector<2x384xf32> to vector<2x128xf32>
    %39 = vector.extract_strided_slice %37 {offsets = [0, 0], sizes = [2, 128], strides = [1, 1]} : vector<2x384xf32> to vector<2x128xf32>
    %40 = arith.addf %38, %39 : vector<2x128xf32>
    %41 = arith.negf %40 : vector<2x128xf32>
    %42 = math.exp %41 : vector<2x128xf32>
    %cst_13 = arith.constant 1.000000e+00 : f32
    %43 = vector.broadcast %cst_13 : f32 to vector<2x128xf32>
    %44 = arith.addf %43, %42 : vector<2x128xf32>
    %45 = arith.divf %43, %44 : vector<2x128xf32>
    %46 = vector.extract_strided_slice %36 {offsets = [0, 128], sizes = [2, 128], strides = [1, 1]} : vector<2x384xf32> to vector<2x128xf32>
    %47 = vector.extract_strided_slice %37 {offsets = [0, 128], sizes = [2, 128], strides = [1, 1]} : vector<2x384xf32> to vector<2x128xf32>
    %48 = arith.addf %46, %47 : vector<2x128xf32>
    %49 = arith.negf %48 : vector<2x128xf32>
    %50 = math.exp %49 : vector<2x128xf32>
    %cst_14 = arith.constant 1.000000e+00 : f32
    %51 = vector.broadcast %cst_14 : f32 to vector<2x128xf32>
    %52 = arith.addf %51, %50 : vector<2x128xf32>
    %53 = arith.divf %51, %52 : vector<2x128xf32>
    %54 = vector.extract_strided_slice %36 {offsets = [0, 256], sizes = [2, 128], strides = [1, 1]} : vector<2x384xf32> to vector<2x128xf32>
    %55 = vector.extract_strided_slice %37 {offsets = [0, 256], sizes = [2, 128], strides = [1, 1]} : vector<2x384xf32> to vector<2x128xf32>
    %56 = vector.broadcast %4 : vector<1x128xf32> to vector<2x128xf32>
    %57 = arith.addf %55, %56 : vector<2x128xf32>
    %58 = arith.mulf %45, %57 : vector<2x128xf32>
    %59 = arith.addf %54, %58 : vector<2x128xf32>
    %60 = math.tanh %59 : vector<2x128xf32>
    %cst_15 = arith.constant 1.000000e+00 : f32
    %61 = vector.broadcast %cst_15 : f32 to vector<2x128xf32>
    %62 = arith.subf %61, %53 : vector<2x128xf32>
    %63 = arith.mulf %62, %60 : vector<2x128xf32>
    %64 = arith.mulf %53, %35 : vector<2x128xf32>
    %65 = arith.addf %63, %64 : vector<2x128xf32>
    %c4 = arith.constant 4 : index
    %c0_16 = arith.constant 0 : index
    %66 = vector.load %arg2[%c4, %c0_16] : memref<16x384xf32, #tpu.memory_space<vmem>>, vector<2x384xf32>
    %cst_17 = arith.constant dense<0.000000e+00> : vector<2x384xf32>
    %67 = tpu.matmul %65, %3, %cst_17 {dimension_numbers = #tpu.dot_dimension_numbers<[1], [0], [0], [1], [0, 0, 1, 1], [], []>} : vector<2x128xf32>, vector<128x384xf32>, vector<2x384xf32> -> vector<2x384xf32>
    %68 = vector.extract_strided_slice %66 {offsets = [0, 0], sizes = [2, 128], strides = [1, 1]} : vector<2x384xf32> to vector<2x128xf32>
    %69 = vector.extract_strided_slice %67 {offsets = [0, 0], sizes = [2, 128], strides = [1, 1]} : vector<2x384xf32> to vector<2x128xf32>
    %70 = arith.addf %68, %69 : vector<2x128xf32>
    %71 = arith.negf %70 : vector<2x128xf32>
    %72 = math.exp %71 : vector<2x128xf32>
    %cst_18 = arith.constant 1.000000e+00 : f32
    %73 = vector.broadcast %cst_18 : f32 to vector<2x128xf32>
    %74 = arith.addf %73, %72 : vector<2x128xf32>
    %75 = arith.divf %73, %74 : vector<2x128xf32>
    %76 = vector.extract_strided_slice %66 {offsets = [0, 128], sizes = [2, 128], strides = [1, 1]} : vector<2x384xf32> to vector<2x128xf32>
    %77 = vector.extract_strided_slice %67 {offsets = [0, 128], sizes = [2, 128], strides = [1, 1]} : vector<2x384xf32> to vector<2x128xf32>
    %78 = arith.addf %76, %77 : vector<2x128xf32>
    %79 = arith.negf %78 : vector<2x128xf32>
    %80 = math.exp %79 : vector<2x128xf32>
    %cst_19 = arith.constant 1.000000e+00 : f32
    %81 = vector.broadcast %cst_19 : f32 to vector<2x128xf32>
    %82 = arith.addf %81, %80 : vector<2x128xf32>
    %83 = arith.divf %81, %82 : vector<2x128xf32>
    %84 = vector.extract_strided_slice %66 {offsets = [0, 256], sizes = [2, 128], strides = [1, 1]} : vector<2x384xf32> to vector<2x128xf32>
    %85 = vector.extract_strided_slice %67 {offsets = [0, 256], sizes = [2, 128], strides = [1, 1]} : vector<2x384xf32> to vector<2x128xf32>
    %86 = vector.broadcast %4 : vector<1x128xf32> to vector<2x128xf32>
    %87 = arith.addf %85, %86 : vector<2x128xf32>
    %88 = arith.mulf %75, %87 : vector<2x128xf32>
    %89 = arith.addf %84, %88 : vector<2x128xf32>
    %90 = math.tanh %89 : vector<2x128xf32>
    %cst_20 = arith.constant 1.000000e+00 : f32
    %91 = vector.broadcast %cst_20 : f32 to vector<2x128xf32>
    %92 = arith.subf %91, %83 : vector<2x128xf32>
    %93 = arith.mulf %92, %90 : vector<2x128xf32>
    %94 = arith.mulf %83, %65 : vector<2x128xf32>
    %95 = arith.addf %93, %94 : vector<2x128xf32>
    %c6 = arith.constant 6 : index
    %c0_21 = arith.constant 0 : index
    %96 = vector.load %arg2[%c6, %c0_21] : memref<16x384xf32, #tpu.memory_space<vmem>>, vector<2x384xf32>
    %cst_22 = arith.constant dense<0.000000e+00> : vector<2x384xf32>
    %97 = tpu.matmul %95, %3, %cst_22 {dimension_numbers = #tpu.dot_dimension_numbers<[1], [0], [0], [1], [0, 0, 1, 1], [], []>} : vector<2x128xf32>, vector<128x384xf32>, vector<2x384xf32> -> vector<2x384xf32>
    %98 = vector.extract_strided_slice %96 {offsets = [0, 0], sizes = [2, 128], strides = [1, 1]} : vector<2x384xf32> to vector<2x128xf32>
    %99 = vector.extract_strided_slice %97 {offsets = [0, 0], sizes = [2, 128], strides = [1, 1]} : vector<2x384xf32> to vector<2x128xf32>
    %100 = arith.addf %98, %99 : vector<2x128xf32>
    %101 = arith.negf %100 : vector<2x128xf32>
    %102 = math.exp %101 : vector<2x128xf32>
    %cst_23 = arith.constant 1.000000e+00 : f32
    %103 = vector.broadcast %cst_23 : f32 to vector<2x128xf32>
    %104 = arith.addf %103, %102 : vector<2x128xf32>
    %105 = arith.divf %103, %104 : vector<2x128xf32>
    %106 = vector.extract_strided_slice %96 {offsets = [0, 128], sizes = [2, 128], strides = [1, 1]} : vector<2x384xf32> to vector<2x128xf32>
    %107 = vector.extract_strided_slice %97 {offsets = [0, 128], sizes = [2, 128], strides = [1, 1]} : vector<2x384xf32> to vector<2x128xf32>
    %108 = arith.addf %106, %107 : vector<2x128xf32>
    %109 = arith.negf %108 : vector<2x128xf32>
    %110 = math.exp %109 : vector<2x128xf32>
    %cst_24 = arith.constant 1.000000e+00 : f32
    %111 = vector.broadcast %cst_24 : f32 to vector<2x128xf32>
    %112 = arith.addf %111, %110 : vector<2x128xf32>
    %113 = arith.divf %111, %112 : vector<2x128xf32>
    %114 = vector.extract_strided_slice %96 {offsets = [0, 256], sizes = [2, 128], strides = [1, 1]} : vector<2x384xf32> to vector<2x128xf32>
    %115 = vector.extract_strided_slice %97 {offsets = [0, 256], sizes = [2, 128], strides = [1, 1]} : vector<2x384xf32> to vector<2x128xf32>
    %116 = vector.broadcast %4 : vector<1x128xf32> to vector<2x128xf32>
    %117 = arith.addf %115, %116 : vector<2x128xf32>
    %118 = arith.mulf %105, %117 : vector<2x128xf32>
    %119 = arith.addf %114, %118 : vector<2x128xf32>
    %120 = math.tanh %119 : vector<2x128xf32>
    %cst_25 = arith.constant 1.000000e+00 : f32
    %121 = vector.broadcast %cst_25 : f32 to vector<2x128xf32>
    %122 = arith.subf %121, %113 : vector<2x128xf32>
    %123 = arith.mulf %122, %120 : vector<2x128xf32>
    %124 = arith.mulf %113, %95 : vector<2x128xf32>
    %125 = arith.addf %123, %124 : vector<2x128xf32>
    %c8 = arith.constant 8 : index
    %c0_26 = arith.constant 0 : index
    %126 = vector.load %arg2[%c8, %c0_26] : memref<16x384xf32, #tpu.memory_space<vmem>>, vector<2x384xf32>
    %cst_27 = arith.constant dense<0.000000e+00> : vector<2x384xf32>
    %127 = tpu.matmul %125, %3, %cst_27 {dimension_numbers = #tpu.dot_dimension_numbers<[1], [0], [0], [1], [0, 0, 1, 1], [], []>} : vector<2x128xf32>, vector<128x384xf32>, vector<2x384xf32> -> vector<2x384xf32>
    %128 = vector.extract_strided_slice %126 {offsets = [0, 0], sizes = [2, 128], strides = [1, 1]} : vector<2x384xf32> to vector<2x128xf32>
    %129 = vector.extract_strided_slice %127 {offsets = [0, 0], sizes = [2, 128], strides = [1, 1]} : vector<2x384xf32> to vector<2x128xf32>
    %130 = arith.addf %128, %129 : vector<2x128xf32>
    %131 = arith.negf %130 : vector<2x128xf32>
    %132 = math.exp %131 : vector<2x128xf32>
    %cst_28 = arith.constant 1.000000e+00 : f32
    %133 = vector.broadcast %cst_28 : f32 to vector<2x128xf32>
    %134 = arith.addf %133, %132 : vector<2x128xf32>
    %135 = arith.divf %133, %134 : vector<2x128xf32>
    %136 = vector.extract_strided_slice %126 {offsets = [0, 128], sizes = [2, 128], strides = [1, 1]} : vector<2x384xf32> to vector<2x128xf32>
    %137 = vector.extract_strided_slice %127 {offsets = [0, 128], sizes = [2, 128], strides = [1, 1]} : vector<2x384xf32> to vector<2x128xf32>
    %138 = arith.addf %136, %137 : vector<2x128xf32>
    %139 = arith.negf %138 : vector<2x128xf32>
    %140 = math.exp %139 : vector<2x128xf32>
    %cst_29 = arith.constant 1.000000e+00 : f32
    %141 = vector.broadcast %cst_29 : f32 to vector<2x128xf32>
    %142 = arith.addf %141, %140 : vector<2x128xf32>
    %143 = arith.divf %141, %142 : vector<2x128xf32>
    %144 = vector.extract_strided_slice %126 {offsets = [0, 256], sizes = [2, 128], strides = [1, 1]} : vector<2x384xf32> to vector<2x128xf32>
    %145 = vector.extract_strided_slice %127 {offsets = [0, 256], sizes = [2, 128], strides = [1, 1]} : vector<2x384xf32> to vector<2x128xf32>
    %146 = vector.broadcast %4 : vector<1x128xf32> to vector<2x128xf32>
    %147 = arith.addf %145, %146 : vector<2x128xf32>
    %148 = arith.mulf %135, %147 : vector<2x128xf32>
    %149 = arith.addf %144, %148 : vector<2x128xf32>
    %150 = math.tanh %149 : vector<2x128xf32>
    %cst_30 = arith.constant 1.000000e+00 : f32
    %151 = vector.broadcast %cst_30 : f32 to vector<2x128xf32>
    %152 = arith.subf %151, %143 : vector<2x128xf32>
    %153 = arith.mulf %152, %150 : vector<2x128xf32>
    %154 = arith.mulf %143, %125 : vector<2x128xf32>
    %155 = arith.addf %153, %154 : vector<2x128xf32>
    %c10 = arith.constant 10 : index
    %c0_31 = arith.constant 0 : index
    %156 = vector.load %arg2[%c10, %c0_31] : memref<16x384xf32, #tpu.memory_space<vmem>>, vector<2x384xf32>
    %cst_32 = arith.constant dense<0.000000e+00> : vector<2x384xf32>
    %157 = tpu.matmul %155, %3, %cst_32 {dimension_numbers = #tpu.dot_dimension_numbers<[1], [0], [0], [1], [0, 0, 1, 1], [], []>} : vector<2x128xf32>, vector<128x384xf32>, vector<2x384xf32> -> vector<2x384xf32>
    %158 = vector.extract_strided_slice %156 {offsets = [0, 0], sizes = [2, 128], strides = [1, 1]} : vector<2x384xf32> to vector<2x128xf32>
    %159 = vector.extract_strided_slice %157 {offsets = [0, 0], sizes = [2, 128], strides = [1, 1]} : vector<2x384xf32> to vector<2x128xf32>
    %160 = arith.addf %158, %159 : vector<2x128xf32>
    %161 = arith.negf %160 : vector<2x128xf32>
    %162 = math.exp %161 : vector<2x128xf32>
    %cst_33 = arith.constant 1.000000e+00 : f32
    %163 = vector.broadcast %cst_33 : f32 to vector<2x128xf32>
    %164 = arith.addf %163, %162 : vector<2x128xf32>
    %165 = arith.divf %163, %164 : vector<2x128xf32>
    %166 = vector.extract_strided_slice %156 {offsets = [0, 128], sizes = [2, 128], strides = [1, 1]} : vector<2x384xf32> to vector<2x128xf32>
    %167 = vector.extract_strided_slice %157 {offsets = [0, 128], sizes = [2, 128], strides = [1, 1]} : vector<2x384xf32> to vector<2x128xf32>
    %168 = arith.addf %166, %167 : vector<2x128xf32>
    %169 = arith.negf %168 : vector<2x128xf32>
    %170 = math.exp %169 : vector<2x128xf32>
    %cst_34 = arith.constant 1.000000e+00 : f32
    %171 = vector.broadcast %cst_34 : f32 to vector<2x128xf32>
    %172 = arith.addf %171, %170 : vector<2x128xf32>
    %173 = arith.divf %171, %172 : vector<2x128xf32>
    %174 = vector.extract_strided_slice %156 {offsets = [0, 256], sizes = [2, 128], strides = [1, 1]} : vector<2x384xf32> to vector<2x128xf32>
    %175 = vector.extract_strided_slice %157 {offsets = [0, 256], sizes = [2, 128], strides = [1, 1]} : vector<2x384xf32> to vector<2x128xf32>
    %176 = vector.broadcast %4 : vector<1x128xf32> to vector<2x128xf32>
    %177 = arith.addf %175, %176 : vector<2x128xf32>
    %178 = arith.mulf %165, %177 : vector<2x128xf32>
    %179 = arith.addf %174, %178 : vector<2x128xf32>
    %180 = math.tanh %179 : vector<2x128xf32>
    %cst_35 = arith.constant 1.000000e+00 : f32
    %181 = vector.broadcast %cst_35 : f32 to vector<2x128xf32>
    %182 = arith.subf %181, %173 : vector<2x128xf32>
    %183 = arith.mulf %182, %180 : vector<2x128xf32>
    %184 = arith.mulf %173, %155 : vector<2x128xf32>
    %185 = arith.addf %183, %184 : vector<2x128xf32>
    %c12 = arith.constant 12 : index
    %c0_36 = arith.constant 0 : index
    %186 = vector.load %arg2[%c12, %c0_36] : memref<16x384xf32, #tpu.memory_space<vmem>>, vector<2x384xf32>
    %cst_37 = arith.constant dense<0.000000e+00> : vector<2x384xf32>
    %187 = tpu.matmul %185, %3, %cst_37 {dimension_numbers = #tpu.dot_dimension_numbers<[1], [0], [0], [1], [0, 0, 1, 1], [], []>} : vector<2x128xf32>, vector<128x384xf32>, vector<2x384xf32> -> vector<2x384xf32>
    %188 = vector.extract_strided_slice %186 {offsets = [0, 0], sizes = [2, 128], strides = [1, 1]} : vector<2x384xf32> to vector<2x128xf32>
    %189 = vector.extract_strided_slice %187 {offsets = [0, 0], sizes = [2, 128], strides = [1, 1]} : vector<2x384xf32> to vector<2x128xf32>
    %190 = arith.addf %188, %189 : vector<2x128xf32>
    %191 = arith.negf %190 : vector<2x128xf32>
    %192 = math.exp %191 : vector<2x128xf32>
    %cst_38 = arith.constant 1.000000e+00 : f32
    %193 = vector.broadcast %cst_38 : f32 to vector<2x128xf32>
    %194 = arith.addf %193, %192 : vector<2x128xf32>
    %195 = arith.divf %193, %194 : vector<2x128xf32>
    %196 = vector.extract_strided_slice %186 {offsets = [0, 128], sizes = [2, 128], strides = [1, 1]} : vector<2x384xf32> to vector<2x128xf32>
    %197 = vector.extract_strided_slice %187 {offsets = [0, 128], sizes = [2, 128], strides = [1, 1]} : vector<2x384xf32> to vector<2x128xf32>
    %198 = arith.addf %196, %197 : vector<2x128xf32>
    %199 = arith.negf %198 : vector<2x128xf32>
    %200 = math.exp %199 : vector<2x128xf32>
    %cst_39 = arith.constant 1.000000e+00 : f32
    %201 = vector.broadcast %cst_39 : f32 to vector<2x128xf32>
    %202 = arith.addf %201, %200 : vector<2x128xf32>
    %203 = arith.divf %201, %202 : vector<2x128xf32>
    %204 = vector.extract_strided_slice %186 {offsets = [0, 256], sizes = [2, 128], strides = [1, 1]} : vector<2x384xf32> to vector<2x128xf32>
    %205 = vector.extract_strided_slice %187 {offsets = [0, 256], sizes = [2, 128], strides = [1, 1]} : vector<2x384xf32> to vector<2x128xf32>
    %206 = vector.broadcast %4 : vector<1x128xf32> to vector<2x128xf32>
    %207 = arith.addf %205, %206 : vector<2x128xf32>
    %208 = arith.mulf %195, %207 : vector<2x128xf32>
    %209 = arith.addf %204, %208 : vector<2x128xf32>
    %210 = math.tanh %209 : vector<2x128xf32>
    %cst_40 = arith.constant 1.000000e+00 : f32
    %211 = vector.broadcast %cst_40 : f32 to vector<2x128xf32>
    %212 = arith.subf %211, %203 : vector<2x128xf32>
    %213 = arith.mulf %212, %210 : vector<2x128xf32>
    %214 = arith.mulf %203, %185 : vector<2x128xf32>
    %215 = arith.addf %213, %214 : vector<2x128xf32>
    %c14 = arith.constant 14 : index
    %c0_41 = arith.constant 0 : index
    %216 = vector.load %arg2[%c14, %c0_41] : memref<16x384xf32, #tpu.memory_space<vmem>>, vector<2x384xf32>
    %cst_42 = arith.constant dense<0.000000e+00> : vector<2x384xf32>
    %217 = tpu.matmul %215, %3, %cst_42 {dimension_numbers = #tpu.dot_dimension_numbers<[1], [0], [0], [1], [0, 0, 1, 1], [], []>} : vector<2x128xf32>, vector<128x384xf32>, vector<2x384xf32> -> vector<2x384xf32>
    %218 = vector.extract_strided_slice %216 {offsets = [0, 0], sizes = [2, 128], strides = [1, 1]} : vector<2x384xf32> to vector<2x128xf32>
    %219 = vector.extract_strided_slice %217 {offsets = [0, 0], sizes = [2, 128], strides = [1, 1]} : vector<2x384xf32> to vector<2x128xf32>
    %220 = arith.addf %218, %219 : vector<2x128xf32>
    %221 = arith.negf %220 : vector<2x128xf32>
    %222 = math.exp %221 : vector<2x128xf32>
    %cst_43 = arith.constant 1.000000e+00 : f32
    %223 = vector.broadcast %cst_43 : f32 to vector<2x128xf32>
    %224 = arith.addf %223, %222 : vector<2x128xf32>
    %225 = arith.divf %223, %224 : vector<2x128xf32>
    %226 = vector.extract_strided_slice %216 {offsets = [0, 128], sizes = [2, 128], strides = [1, 1]} : vector<2x384xf32> to vector<2x128xf32>
    %227 = vector.extract_strided_slice %217 {offsets = [0, 128], sizes = [2, 128], strides = [1, 1]} : vector<2x384xf32> to vector<2x128xf32>
    %228 = arith.addf %226, %227 : vector<2x128xf32>
    %229 = arith.negf %228 : vector<2x128xf32>
    %230 = math.exp %229 : vector<2x128xf32>
    %cst_44 = arith.constant 1.000000e+00 : f32
    %231 = vector.broadcast %cst_44 : f32 to vector<2x128xf32>
    %232 = arith.addf %231, %230 : vector<2x128xf32>
    %233 = arith.divf %231, %232 : vector<2x128xf32>
    %234 = vector.extract_strided_slice %216 {offsets = [0, 256], sizes = [2, 128], strides = [1, 1]} : vector<2x384xf32> to vector<2x128xf32>
    %235 = vector.extract_strided_slice %217 {offsets = [0, 256], sizes = [2, 128], strides = [1, 1]} : vector<2x384xf32> to vector<2x128xf32>
    %236 = vector.broadcast %4 : vector<1x128xf32> to vector<2x128xf32>
    %237 = arith.addf %235, %236 : vector<2x128xf32>
    %238 = arith.mulf %225, %237 : vector<2x128xf32>
    %239 = arith.addf %234, %238 : vector<2x128xf32>
    %240 = math.tanh %239 : vector<2x128xf32>
    %cst_45 = arith.constant 1.000000e+00 : f32
    %241 = vector.broadcast %cst_45 : f32 to vector<2x128xf32>
    %242 = arith.subf %241, %233 : vector<2x128xf32>
    %243 = arith.mulf %242, %240 : vector<2x128xf32>
    %244 = arith.mulf %233, %215 : vector<2x128xf32>
    %245 = arith.addf %243, %244 : vector<2x128xf32>
    %c0_46 = arith.constant 0 : index
    %c0_47 = arith.constant 0 : index
    %246 = vector.load %arg8[%c0_46, %c0_47] : memref<2x128xf32, #tpu.memory_space<vmem>>, vector<2x128xf32>
    tpu.vector_store %arg8[%c0_46, %c0_47], %245 {strides = array<i32>} : memref<2x128xf32, #tpu.memory_space<vmem>>, vector<2x128xf32>,
    %c0_i32_48 = arith.constant 0 : i32
    %247 = arith.cmpi eq, %arg1, %c0_i32_48 : i32
    %248 = arith.extui %247 : i1 to i32
    %c0_i32_49 = arith.constant 0 : i32
    %249 = arith.cmpi ne, %248, %c0_i32_49 : i32
    scf.if %249 {
      %c0_50 = arith.constant 0 : index
      %c0_51 = arith.constant 0 : index
      %250 = vector.load %arg5[%c0_50, %c0_51] : memref<128x4xf32, #tpu.memory_space<vmem>>, vector<128x4xf32>
      %cst_52 = arith.constant dense<0.000000e+00> : vector<2x4xf32>
      %251 = tpu.matmul %245, %250, %cst_52 {dimension_numbers = #tpu.dot_dimension_numbers<[1], [0], [0], [1], [0, 0, 1, 1], [], []>} : vector<2x128xf32>, vector<128x4xf32>, vector<2x4xf32> -> vector<2x4xf32>
      %c0_53 = arith.constant 0 : index
      %c0_54 = arith.constant 0 : index
      %252 = vector.load %arg6[%c0_53, %c0_54] : memref<1x4xf32, #tpu.memory_space<vmem>>, vector<1x4xf32>
      %253 = vector.broadcast %252 : vector<1x4xf32> to vector<2x4xf32>
      %254 = arith.addf %251, %253 : vector<2x4xf32>
      %c0_55 = arith.constant 0 : index
      %c0_56 = arith.constant 0 : index
      %255 = vector.load %arg7[%c0_55, %c0_56] : memref<2x4xf32, #tpu.memory_space<vmem>>, vector<2x4xf32>
      tpu.vector_store %arg7[%c0_55, %c0_56], %254 {strides = array<i32>} : memref<2x4xf32, #tpu.memory_space<vmem>>, vector<2x4xf32>,
    } else {
    }
    return
  }
  func.func @transform_0(%arg0: i32, %arg1: i32) -> (i32, i32) {
    %c1_i32 = arith.constant 1 : i32
    %0 = arith.muli %arg0, %c1_i32 : i32
    %1 = arith.addi %0, %arg1 : i32
    %c0_i32 = arith.constant 0 : i32
    %c0_i32_0 = arith.constant 0 : i32
    return %1, %c0_i32 : i32, i32
  }
  func.func @transform_1(%arg0: i32, %arg1: i32) -> (i32, i32) {
    %c0_i32 = arith.constant 0 : i32
    %c0_i32_0 = arith.constant 0 : i32
    %c0_i32_1 = arith.constant 0 : i32
    return %c0_i32, %c0_i32_0 : i32, i32
  }
  func.func @transform_2(%arg0: i32, %arg1: i32) -> (i32, i32) {
    %c0_i32 = arith.constant 0 : i32
    %c0_i32_0 = arith.constant 0 : i32
    %c0_i32_1 = arith.constant 0 : i32
    return %c0_i32, %c0_i32_0 : i32, i32
  }
  func.func @transform_3(%arg0: i32, %arg1: i32) -> (i32, i32) {
    %c0_i32 = arith.constant 0 : i32
    %c0_i32_0 = arith.constant 0 : i32
    %c0_i32_1 = arith.constant 0 : i32
    return %c0_i32, %c0_i32_0 : i32, i32
  }
  func.func @transform_4(%arg0: i32, %arg1: i32) -> (i32, i32) {
    %c0_i32 = arith.constant 0 : i32
    %c0_i32_0 = arith.constant 0 : i32
    %c0_i32_1 = arith.constant 0 : i32
    return %c0_i32, %c0_i32_0 : i32, i32
  }
  func.func @transform_5(%arg0: i32, %arg1: i32) -> (i32, i32) {
    %c0_i32 = arith.constant 0 : i32
    %c0_i32_0 = arith.constant 0 : i32
    return %arg0, %c0_i32 : i32, i32
  }
}

</mosaic_0001>

<llo_original>
// kernel: model_forward.3
$region0: #{model_forward.3}
  #allocation0 [shape = 'u32[]', space=smem, size = 0x4, offset = 0x4, fixed_abs, tag = 'smem constant byte address 0x4 - core index']
  #allocation1 [shape = 'u32[72,128]{1,0:T(1,128)}', space=vmem, size = 0x9000, scoped, tag = 'internal scratch']
  #allocation2 [shape = 'f32[2,128]{1,0:T(2,128)}', space=vmem, size = 0x400, scoped, tag = 'scratch operand']
  %s0 = inlined_call_operand.vmem [shape: f32[16,384], index: 0, kind: input, shape index: {}]
  %s1 = inlined_call_operand.vmem [shape: f32[128,384], index: 1, kind: input, shape index: {}]
  %s2 = inlined_call_operand.vmem [shape: f32[1,128], index: 2, kind: input, shape index: {}]
  %s3 = inlined_call_operand.vmem [shape: f32[128,4], index: 3, kind: input, shape index: {}]
  %s4 = inlined_call_operand.vmem [shape: f32[1,4], index: 4, kind: input, shape index: {}]
  %s5 = inlined_call_operand.hbm [shape: f32[2,4], index: 5, kind: output, shape index: {}]
  %s6 = sld [smem:[#allocation0]]
  $region38: #{model_forward.3} parent=0
    _
  %s8 = ssub.s32 1, %s6
  %s9 = scalar_select 0, %s8, %s6
  $region1: #{model_forward.3} parent=0
    #allocation3 [shape = 'u8[1024]{0}', space=vmem, size = 0x400, scoped, tag = 'output window, operand 0, single buffered']
    #allocation4 [shape = 's32[1]{0}', space=sflag, size = 0x4, scoped, tag = 'scoped memory for model_forward.3']
    %10 = vsyncpa [#allocation4], 0
    // Predicated region
    $region2: #{model_forward.3} parent=1 // pred_check
      _
    $region3: #{model_forward.3} parent=1 // pred_check_branch
      %12 = sbr.rel (0) target = $region5
    $region4: #{model_forward.3} parent=1 // pred_region
      %s13 = sadd.s32 0, 0
      %s14 = smul.u32 2, %s13
      %p15 = scmp.lt.s32.totalorder %s14, 1
      %s16 = scalar_select %p15, %s14, 1
      %s17 = smul.addr %s16, 3
      %s18 = smul.addr %s17, 8
      %s19 = scalar_lea.vmem %s0, %s18
      %s20 = sadd.s32 0, 0
      %s21 = smul.u32 2, %s20
    $region5: #{model_forward.3} parent=1 // pred_fallthru
      _
    // Predicated region
    $region6: #{model_forward.3} parent=1 // pred_check
      _
    $region7: #{model_forward.3} parent=1 // pred_check_branch
      %23 = sbr.rel (0) target = $region9
    $region8: #{model_forward.3} parent=1 // pred_region
      _
    $region9: #{model_forward.3} parent=1 // pred_fallthru
      _
    // Predicated region
    $region10: #{model_forward.3} parent=1 // pred_check
      _
    $region11: #{model_forward.3} parent=1 // pred_check_branch
      %25 = sbr.rel (0) target = $region13
    $region12: #{model_forward.3} parent=1 // pred_region
      _
    $region13: #{model_forward.3} parent=1 // pred_fallthru
      _
    // Predicated region
    $region14: #{model_forward.3} parent=1 // pred_check
      _
    $region15: #{model_forward.3} parent=1 // pred_check_branch
      %27 = sbr.rel (0) target = $region17
    $region16: #{model_forward.3} parent=1 // pred_region
      _
    $region17: #{model_forward.3} parent=1 // pred_fallthru
      _
    // Predicated region
    $region18: #{model_forward.3} parent=1 // pred_check
      _
    $region19: #{model_forward.3} parent=1 // pred_check_branch
      %29 = sbr.rel (0) target = $region21
    $region20: #{model_forward.3} parent=1 // pred_region
      _
    $region21: #{model_forward.3} parent=1 // pred_fallthru
      _
    %s30 = sadd.s32 0, 0
    %s31 = smul.u32 2, %s30
    %p32 = scmp.lt.s32.totalorder %s31, 1
    %s33 = scalar_select %p32, %s31, 1
    %s34 = smul.addr %s33, 3
    %s35 = smul.addr %s34, 8
    %s36 = scalar_lea.vmem %s0, %s35
    %s37 = sadd.s32 0, 0
    %s38 = smul.u32 2, %s37
    %p39 = scmp.lt.s32.totalorder %s38, 1
    %s40 = scalar_select %p39, %s38, 1
    %s41 = smul.addr %s40, 3
    %s42 = smul.addr %s41, 8
    %s43 = scalar_lea.vmem %s0, %s42
    %s44 = sadd.s32 0, 0
    %s45 = smul.u32 2, %s44
    %p46 = scmp.eq.s32.totalorder 0, 0
    // Predicated region
    $region22: #{model_forward.3} parent=1 // pred_check
      %p47 = pneg %p46
    $region23: #{model_forward.3} parent=1 // pred_check_branch
      %49 = sbr.rel (%p47) target = $region25
    $region24: #{model_forward.3} parent=1 // pred_region
      %50 = vst [vmem:[#allocation2] sm:$0x3] 0.0
    $region25: #{model_forward.3} parent=1 // pred_fallthru
      _
    %v51 = vld [vmem:[%s1] sm:$0xff]
    %v52 = vld [vmem:[%s1 + $0x8] sm:$0xff]
    %v53 = vld [vmem:[%s1 + $0x10] sm:$0xff]
    %v54 = vld [vmem:[%s1 + $0x18] sm:$0xff]
    %v55 = vld [vmem:[%s1 + $0x20] sm:$0xff]
    %v56 = vld [vmem:[%s1 + $0x28] sm:$0xff]
    %v57 = vld [vmem:[%s1 + $0x30] sm:$0xff]
    %v58 = vld [vmem:[%s1 + $0x38] sm:$0xff]
    %v59 = vld [vmem:[%s1 + $0x40] sm:$0xff]
    %v60 = vld [vmem:[%s1 + $0x48] sm:$0xff]
    %v61 = vld [vmem:[%s1 + $0x50] sm:$0xff]
    %v62 = vld [vmem:[%s1 + $0x58] sm:$0xff]
    %v63 = vld [vmem:[%s1 + $0x60] sm:$0xff]
    %v64 = vld [vmem:[%s1 + $0x68] sm:$0xff]
    %v65 = vld [vmem:[%s1 + $0x70] sm:$0xff]
    %v66 = vld [vmem:[%s1 + $0x78] sm:$0xff]
    %v67 = vld [vmem:[%s1 + $0x80] sm:$0xff]
    %v68 = vld [vmem:[%s1 + $0x88] sm:$0xff]
    %v69 = vld [vmem:[%s1 + $0x90] sm:$0xff]
    %v70 = vld [vmem:[%s1 + $0x98] sm:$0xff]
    %v71 = vld [vmem:[%s1 + $0xa0] sm:$0xff]
    %v72 = vld [vmem:[%s1 + $0xa8] sm:$0xff]
    %v73 = vld [vmem:[%s1 + $0xb0] sm:$0xff]
    %v74 = vld [vmem:[%s1 + $0xb8] sm:$0xff]
    %v75 = vld [vmem:[%s1 + $0xc0] sm:$0xff]
    %v76 = vld [vmem:[%s1 + $0xc8] sm:$0xff]
    %v77 = vld [vmem:[%s1 + $0xd0] sm:$0xff]
    %v78 = vld [vmem:[%s1 + $0xd8] sm:$0xff]
    %v79 = vld [vmem:[%s1 + $0xe0] sm:$0xff]
    %v80 = vld [vmem:[%s1 + $0xe8] sm:$0xff]
    %v81 = vld [vmem:[%s1 + $0xf0] sm:$0xff]
    %v82 = vld [vmem:[%s1 + $0xf8] sm:$0xff]
    %v83 = vld [vmem:[%s1 + $0x100] sm:$0xff]
    %v84 = vld [vmem:[%s1 + $0x108] sm:$0xff]
    %v85 = vld [vmem:[%s1 + $0x110] sm:$0xff]
    %v86 = vld [vmem:[%s1 + $0x118] sm:$0xff]
    %v87 = vld [vmem:[%s1 + $0x120] sm:$0xff]
    %v88 = vld [vmem:[%s1 + $0x128] sm:$0xff]
    %v89 = vld [vmem:[%s1 + $0x130] sm:$0xff]
    %v90 = vld [vmem:[%s1 + $0x138] sm:$0xff]
    %v91 = vld [vmem:[%s1 + $0x140] sm:$0xff]
    %v92 = vld [vmem:[%s1 + $0x148] sm:$0xff]
    %v93 = vld [vmem:[%s1 + $0x150] sm:$0xff]
    %v94 = vld [vmem:[%s1 + $0x158] sm:$0xff]
    %v95 = vld [vmem:[%s1 + $0x160] sm:$0xff]
    %v96 = vld [vmem:[%s1 + $0x168] sm:$0xff]
    %v97 = vld [vmem:[%s1 + $0x170] sm:$0xff]
    %v98 = vld [vmem:[%s1 + $0x178] sm:$0xff]
    %v99 = vld [vmem:[%s2] sm:$0x1]
    %v100 = vld [vmem:[#allocation2] sm:$0x3]
    %v101 = vld [vmem:[%s43] sm:$0x3]
    %v102 = vld [vmem:[%s43 + $0x8] sm:$0x3]
    %v103 = vld [vmem:[%s43 + $0x10] sm:$0x3]
    %104 = vmatpush.msra.mxu0 %v96
    %105 = vmatpush.msra.mxu0 %v93
    %106 = vmatpush.msra.mxu0 %v90
    %107 = vmatpush.msra.mxu0 %v87
    %108 = vmatpush.msra.mxu0 %v84
    %109 = vmatpush.msra.mxu0 %v81
    %110 = vmatpush.msra.mxu0 %v78
    %111 = vmatpush.msra.mxu0 %v75
    %112 = vmatpush.msra.mxu0 %v72
    %113 = vmatpush.msra.mxu0 %v69
    %114 = vmatpush.msra.mxu0 %v66
    %115 = vmatpush.msra.mxu0 %v63
    %116 = vmatpush.msra.mxu0 %v60
    %117 = vmatpush.msra.mxu0 %v57
    %118 = vmatpush.msra.mxu0 %v54
    %119 = vmatpush.msra.mxu0 %v51
    %120 = vmatmul.f32.gmra.mxu0 %v100
    %v121 = vpop.f32.mrf.mxu0
    %v122 = vadd.f32 0.0, %v121
    %123 = vdwg.mxu0
    %124 = vmatpush.msra.mxu0 %v97
    %125 = vmatpush.msra.mxu0 %v94
    %126 = vmatpush.msra.mxu0 %v91
    %127 = vmatpush.msra.mxu0 %v88
    %128 = vmatpush.msra.mxu0 %v85
    %129 = vmatpush.msra.mxu0 %v82
    %130 = vmatpush.msra.mxu0 %v79
    %131 = vmatpush.msra.mxu0 %v76
    %132 = vmatpush.msra.mxu0 %v73
    %133 = vmatpush.msra.mxu0 %v70
    %134 = vmatpush.msra.mxu0 %v67
    %135 = vmatpush.msra.mxu0 %v64
    %136 = vmatpush.msra.mxu0 %v61
    %137 = vmatpush.msra.mxu0 %v58
    %138 = vmatpush.msra.mxu0 %v55
    %139 = vmatpush.msra.mxu0 %v52
    %140 = vmatmul.f32.gmra.mxu0 %v100
    %v141 = vpop.f32.mrf.mxu0
    %v142 = vadd.f32 0.0, %v141
    %143 = vdwg.mxu0
    %144 = vmatpush.msra.mxu0 %v98
    %145 = vmatpush.msra.mxu0 %v95
    %146 = vmatpush.msra.mxu0 %v92
    %147 = vmatpush.msra.mxu0 %v89
    %148 = vmatpush.msra.mxu0 %v86
    %149 = vmatpush.msra.mxu0 %v83
    %150 = vmatpush.msra.mxu0 %v80
    %151 = vmatpush.msra.mxu0 %v77
    %152 = vmatpush.msra.mxu0 %v74
    %153 = vmatpush.msra.mxu0 %v71
    %154 = vmatpush.msra.mxu0 %v68
    %155 = vmatpush.msra.mxu0 %v65
    %156 = vmatpush.msra.mxu0 %v62
    %157 = vmatpush.msra.mxu0 %v59
    %158 = vmatpush.msra.mxu0 %v56
    %159 = vmatpush.msra.mxu0 %v53
    %160 = vmatmul.f32.gmra.mxu0 %v100
    %v161 = vpop.f32.mrf.mxu0
    %v162 = vadd.f32 0.0, %v161
    %163 = vdwg.mxu0
    %v164 = vadd.f32 %v101, %v122
    %v165 = vxor.u32 %v164, 2147483648
    %v166 = vmul.f32 %v165, 1.442695
    %v167 = vpow.pop %v166
    %v168 = vadd.f32 %v167, 1.0
    %v169 = vrcp.pop %v168
    %v170 = vmul.f32 %v168, %v169
    %v171 = vsub.f32 1.0, %v170
    %v172 = vmul.f32 %v169, %v171
    %v173 = vadd.f32 %v169, %v172
    %vm174 = vweird.f32 %v168
    %vm175 = vweird.f32 %v169
    %vm176 = vmor %vm174, %vm175
    %v177 = vsel %vm176, %v169, %v173
    %v178 = vand.u32 2147483647, %v168
    %vm179 = vcmp.eq.f32.partialorder %v178, 8.507059e+37
    %v180 = vand.u32 %v168, 2147483648
    %v181 = vor.u32 1.1754944e-38, %v180
    %v182 = vsel %vm179, %v181, %v177
    %v183 = vmul.f32 1.0, %v182
    %v184 = vadd.f32 %v102, %v142
    %v185 = vxor.u32 %v184, 2147483648
    %v186 = vmul.f32 %v185, 1.442695
    %v187 = vpow.pop %v186
    %v188 = vadd.f32 %v187, 1.0
    %v189 = vrcp.pop %v188
    %v190 = vmul.f32 %v188, %v189
    %v191 = vsub.f32 1.0, %v190
    %v192 = vmul.f32 %v189, %v191
    %v193 = vadd.f32 %v189, %v192
    %vm194 = vweird.f32 %v188
    %vm195 = vweird.f32 %v189
    %vm196 = vmor %vm194, %vm195
    %v197 = vsel %vm196, %v189, %v193
    %v198 = vand.u32 2147483647, %v188
    %vm199 = vcmp.eq.f32.partialorder %v198, 8.507059e+37
    %v200 = vand.u32 %v188, 2147483648
    %v201 = vor.u32 1.1754944e-38, %v200
    %v202 = vsel %vm199, %v201, %v197
    %v203 = vmul.f32 1.0, %v202
    %v205 = vperm.slane %v99, 0
    %v207 = vadd.f32 %v162, %v205
    %v208 = vmul.f32 %v183, %v207
    %v209 = vadd.f32 %v103, %v208
    %v210 = vtanh.pop %v209
    %v211 = vsub.f32 1.0, %v203
    %v212 = vmul.f32 %v211, %v210
    %v213 = vmul.f32 %v203, %v100
    %v214 = vadd.f32 %v212, %v213
    %v215 = vld [vmem:[%s43] sm:$0xc]
    %v216 = vld [vmem:[%s43 + $0x8] sm:$0xc]
    %v217 = vld [vmem:[%s43 + $0x10] sm:$0xc]
    %218 = vmatpush.msra.mxu0 %v96
    %219 = vmatpush.msra.mxu0 %v93
    %220 = vmatpush.msra.mxu0 %v90
    %221 = vmatpush.msra.mxu0 %v87
    %222 = vmatpush.msra.mxu0 %v84
    %223 = vmatpush.msra.mxu0 %v81
    %224 = vmatpush.msra.mxu0 %v78
    %225 = vmatpush.msra.mxu0 %v75
    %226 = vmatpush.msra.mxu0 %v72
    %227 = vmatpush.msra.mxu0 %v69
    %228 = vmatpush.msra.mxu0 %v66
    %229 = vmatpush.msra.mxu0 %v63
    %230 = vmatpush.msra.mxu0 %v60
    %231 = vmatpush.msra.mxu0 %v57
    %232 = vmatpush.msra.mxu0 %v54
    %233 = vmatpush.msra.mxu0 %v51
    %234 = vmatmul.f32.gmra.mxu0 %v214
    %v235 = vpop.f32.mrf.mxu0
    %v236 = vadd.f32 0.0, %v235
    %237 = vdwg.mxu0
    %238 = vmatpush.msra.mxu0 %v97
    %239 = vmatpush.msra.mxu0 %v94
    %240 = vmatpush.msra.mxu0 %v91
    %241 = vmatpush.msra.mxu0 %v88
    %242 = vmatpush.msra.mxu0 %v85
    %243 = vmatpush.msra.mxu0 %v82
    %244 = vmatpush.msra.mxu0 %v79
    %245 = vmatpush.msra.mxu0 %v76
    %246 = vmatpush.msra.mxu0 %v73
    %247 = vmatpush.msra.mxu0 %v70
    %248 = vmatpush.msra.mxu0 %v67
    %249 = vmatpush.msra.mxu0 %v64
    %250 = vmatpush.msra.mxu0 %v61
    %251 = vmatpush.msra.mxu0 %v58
    %252 = vmatpush.msra.mxu0 %v55
    %253 = vmatpush.msra.mxu0 %v52
    %254 = vmatmul.f32.gmra.mxu0 %v214
    %v255 = vpop.f32.mrf.mxu0
    %v256 = vadd.f32 0.0, %v255
    %257 = vdwg.mxu0
    %258 = vmatpush.msra.mxu0 %v98
    %259 = vmatpush.msra.mxu0 %v95
    %260 = vmatpush.msra.mxu0 %v92
    %261 = vmatpush.msra.mxu0 %v89
    %262 = vmatpush.msra.mxu0 %v86
    %263 = vmatpush.msra.mxu0 %v83
    %264 = vmatpush.msra.mxu0 %v80
    %265 = vmatpush.msra.mxu0 %v77
    %266 = vmatpush.msra.mxu0 %v74
    %267 = vmatpush.msra.mxu0 %v71
    %268 = vmatpush.msra.mxu0 %v68
    %269 = vmatpush.msra.mxu0 %v65
    %270 = vmatpush.msra.mxu0 %v62
    %271 = vmatpush.msra.mxu0 %v59
    %272 = vmatpush.msra.mxu0 %v56
    %273 = vmatpush.msra.mxu0 %v53
    %274 = vmatmul.f32.gmra.mxu0 %v214
    %v275 = vpop.f32.mrf.mxu0
    %v276 = vadd.f32 0.0, %v275
    %277 = vdwg.mxu0
    %v279 = vrot.slane %v236, 6
    %v281 = vadd.f32 %v215, %v279
    %v282 = vxor.u32 %v281, 2147483648
    %v283 = vmul.f32 %v282, 1.442695
    %v284 = vpow.pop %v283
    %v285 = vadd.f32 %v284, 1.0
    %v286 = vrcp.pop %v285
    %v287 = vmul.f32 %v285, %v286
    %v288 = vsub.f32 1.0, %v287
    %v289 = vmul.f32 %v286, %v288
    %v290 = vadd.f32 %v286, %v289
    %vm291 = vweird.f32 %v285
    %vm292 = vweird.f32 %v286
    %vm293 = vmor %vm291, %vm292
    %v294 = vsel %vm293, %v286, %v290
    %v295 = vand.u32 2147483647, %v285
    %vm296 = vcmp.eq.f32.partialorder %v295, 8.507059e+37
    %v297 = vand.u32 %v285, 2147483648
    %v298 = vor.u32 1.1754944e-38, %v297
    %v299 = vsel %vm296, %v298, %v294
    %v300 = vmul.f32 1.0, %v299
    %v302 = vrot.slane %v256, 6
    %v304 = vadd.f32 %v216, %v302
    %v305 = vxor.u32 %v304, 2147483648
    %v306 = vmul.f32 %v305, 1.442695
    %v307 = vpow.pop %v306
    %v308 = vadd.f32 %v307, 1.0
    %v309 = vrcp.pop %v308
    %v310 = vmul.f32 %v308, %v309
    %v311 = vsub.f32 1.0, %v310
    %v312 = vmul.f32 %v309, %v311
    %v313 = vadd.f32 %v309, %v312
    %vm314 = vweird.f32 %v308
    %vm315 = vweird.f32 %v309
    %vm316 = vmor %vm314, %vm315
    %v317 = vsel %vm316, %v309, %v313
    %v318 = vand.u32 2147483647, %v308
    %vm319 = vcmp.eq.f32.partialorder %v318, 8.507059e+37
    %v320 = vand.u32 %v308, 2147483648
    %v321 = vor.u32 1.1754944e-38, %v320
    %v322 = vsel %vm319, %v321, %v317
    %v323 = vmul.f32 1.0, %v322
    %v324 = vadd.f32 %v276, %v205
    %v326 = vrot.slane %v324, 6
    %v328 = vmul.f32 %v300, %v326
    %v329 = vadd.f32 %v217, %v328
    %v330 = vtanh.pop %v329
    %v331 = vsub.f32 1.0, %v323
    %v332 = vmul.f32 %v331, %v330
    %v334 = vrot.slane %v214, 6
    %v336 = vmul.f32 %v323, %v334
    %v337 = vadd.f32 %v332, %v336
    %v338 = vld [vmem:[%s43] sm:$0x30]
    %v339 = vld [vmem:[%s43 + $0x8] sm:$0x30]
    %v340 = vld [vmem:[%s43 + $0x10] sm:$0x30]
    %v342 = vrot.slane %v337, 2
    %344 = vmatpush.msra.mxu0 %v96
    %345 = vmatpush.msra.mxu0 %v93
    %346 = vmatpush.msra.mxu0 %v90
    %347 = vmatpush.msra.mxu0 %v87
    %348 = vmatpush.msra.mxu0 %v84
    %349 = vmatpush.msra.mxu0 %v81
    %350 = vmatpush.msra.mxu0 %v78
    %351 = vmatpush.msra.mxu0 %v75
    %352 = vmatpush.msra.mxu0 %v72
    %353 = vmatpush.msra.mxu0 %v69
    %354 = vmatpush.msra.mxu0 %v66
    %355 = vmatpush.msra.mxu0 %v63
    %356 = vmatpush.msra.mxu0 %v60
    %357 = vmatpush.msra.mxu0 %v57
    %358 = vmatpush.msra.mxu0 %v54
    %359 = vmatpush.msra.mxu0 %v51
    %360 = vmatmul.f32.gmra.mxu0 %v342
    %v361 = vpop.f32.mrf.mxu0
    %v362 = vadd.f32 0.0, %v361
    %363 = vdwg.mxu0
    %364 = vmatpush.msra.mxu0 %v97
    %365 = vmatpush.msra.mxu0 %v94
    %366 = vmatpush.msra.mxu0 %v91
    %367 = vmatpush.msra.mxu0 %v88
    %368 = vmatpush.msra.mxu0 %v85
    %369 = vmatpush.msra.mxu0 %v82
    %370 = vmatpush.msra.mxu0 %v79
    %371 = vmatpush.msra.mxu0 %v76
    %372 = vmatpush.msra.mxu0 %v73
    %373 = vmatpush.msra.mxu0 %v70
    %374 = vmatpush.msra.mxu0 %v67
    %375 = vmatpush.msra.mxu0 %v64
    %376 = vmatpush.msra.mxu0 %v61
    %377 = vmatpush.msra.mxu0 %v58
    %378 = vmatpush.msra.mxu0 %v55
    %379 = vmatpush.msra.mxu0 %v52
    %380 = vmatmul.f32.gmra.mxu0 %v342
    %v381 = vpop.f32.mrf.mxu0
    %v382 = vadd.f32 0.0, %v381
    %383 = vdwg.mxu0
    %384 = vmatpush.msra.mxu0 %v98
    %385 = vmatpush.msra.mxu0 %v95
    %386 = vmatpush.msra.mxu0 %v92
    %387 = vmatpush.msra.mxu0 %v89
    %388 = vmatpush.msra.mxu0 %v86
    %389 = vmatpush.msra.mxu0 %v83
    %390 = vmatpush.msra.mxu0 %v80
    %391 = vmatpush.msra.mxu0 %v77
    %392 = vmatpush.msra.mxu0 %v74
    %393 = vmatpush.msra.mxu0 %v71
    %394 = vmatpush.msra.mxu0 %v68
    %395 = vmatpush.msra.mxu0 %v65
    %396 = vmatpush.msra.mxu0 %v62
    %397 = vmatpush.msra.mxu0 %v59
    %398 = vmatpush.msra.mxu0 %v56
    %399 = vmatpush.msra.mxu0 %v53
    %400 = vmatmul.f32.gmra.mxu0 %v342
    %v401 = vpop.f32.mrf.mxu0
    %v402 = vadd.f32 0.0, %v401
    %403 = vdwg.mxu0
    %v405 = vrot.slane %v362, 4
    %v407 = vadd.f32 %v338, %v405
    %v408 = vxor.u32 %v407, 2147483648
    %v409 = vmul.f32 %v408, 1.442695
    %v410 = vpow.pop %v409
    %v411 = vadd.f32 %v410, 1.0
    %v412 = vrcp.pop %v411
    %v413 = vmul.f32 %v411, %v412
    %v414 = vsub.f32 1.0, %v413
    %v415 = vmul.f32 %v412, %v414
    %v416 = vadd.f32 %v412, %v415
    %vm417 = vweird.f32 %v411
    %vm418 = vweird.f32 %v412
    %vm419 = vmor %vm417, %vm418
    %v420 = vsel %vm419, %v412, %v416
    %v421 = vand.u32 2147483647, %v411
    %vm422 = vcmp.eq.f32.partialorder %v421, 8.507059e+37
    %v423 = vand.u32 %v411, 2147483648
    %v424 = vor.u32 1.1754944e-38, %v423
    %v425 = vsel %vm422, %v424, %v420
    %v426 = vmul.f32 1.0, %v425
    %v428 = vrot.slane %v382, 4
    %v430 = vadd.f32 %v339, %v428
    %v431 = vxor.u32 %v430, 2147483648
    %v432 = vmul.f32 %v431, 1.442695
    %v433 = vpow.pop %v432
    %v434 = vadd.f32 %v433, 1.0
    %v435 = vrcp.pop %v434
    %v436 = vmul.f32 %v434, %v435
    %v437 = vsub.f32 1.0, %v436
    %v438 = vmul.f32 %v435, %v437
    %v439 = vadd.f32 %v435, %v438
    %vm440 = vweird.f32 %v434
    %vm441 = vweird.f32 %v435
    %vm442 = vmor %vm440, %vm441
    %v443 = vsel %vm442, %v435, %v439
    %v444 = vand.u32 2147483647, %v434
    %vm445 = vcmp.eq.f32.partialorder %v444, 8.507059e+37
    %v446 = vand.u32 %v434, 2147483648
    %v447 = vor.u32 1.1754944e-38, %v446
    %v448 = vsel %vm445, %v447, %v443
    %v449 = vmul.f32 1.0, %v448
    %v450 = vadd.f32 %v402, %v205
    %v452 = vrot.slane %v450, 4
    %v454 = vmul.f32 %v426, %v452
    %v455 = vadd.f32 %v340, %v454
    %v456 = vtanh.pop %v455
    %v457 = vsub.f32 1.0, %v449
    %v458 = vmul.f32 %v457, %v456
    %v459 = vrot.slane %v337, 6
    %v461 = vmul.f32 %v449, %v459
    %v462 = vadd.f32 %v458, %v461
    %v463 = vld [vmem:[%s43] sm:$0xc0]
    %v464 = vld [vmem:[%s43 + $0x8] sm:$0xc0]
    %v465 = vld [vmem:[%s43 + $0x10] sm:$0xc0]
    %v467 = vrot.slane %v462, 4
    %469 = vmatpush.msra.mxu0 %v96
    %470 = vmatpush.msra.mxu0 %v93
    %471 = vmatpush.msra.mxu0 %v90
    %472 = vmatpush.msra.mxu0 %v87
    %473 = vmatpush.msra.mxu0 %v84
    %474 = vmatpush.msra.mxu0 %v81
    %475 = vmatpush.msra.mxu0 %v78
    %476 = vmatpush.msra.mxu0 %v75
    %477 = vmatpush.msra.mxu0 %v72
    %478 = vmatpush.msra.mxu0 %v69
    %479 = vmatpush.msra.mxu0 %v66
    %480 = vmatpush.msra.mxu0 %v63
    %481 = vmatpush.msra.mxu0 %v60
    %482 = vmatpush.msra.mxu0 %v57
    %483 = vmatpush.msra.mxu0 %v54
    %484 = vmatpush.msra.mxu0 %v51
    %485 = vmatmul.f32.gmra.mxu0 %v467
    %v486 = vpop.f32.mrf.mxu0
    %v487 = vadd.f32 0.0, %v486
    %488 = vdwg.mxu0
    %489 = vmatpush.msra.mxu0 %v97
    %490 = vmatpush.msra.mxu0 %v94
    %491 = vmatpush.msra.mxu0 %v91
    %492 = vmatpush.msra.mxu0 %v88
    %493 = vmatpush.msra.mxu0 %v85
    %494 = vmatpush.msra.mxu0 %v82
    %495 = vmatpush.msra.mxu0 %v79
    %496 = vmatpush.msra.mxu0 %v76
    %497 = vmatpush.msra.mxu0 %v73
    %498 = vmatpush.msra.mxu0 %v70
    %499 = vmatpush.msra.mxu0 %v67
    %500 = vmatpush.msra.mxu0 %v64
    %501 = vmatpush.msra.mxu0 %v61
    %502 = vmatpush.msra.mxu0 %v58
    %503 = vmatpush.msra.mxu0 %v55
    %504 = vmatpush.msra.mxu0 %v52
    %505 = vmatmul.f32.gmra.mxu0 %v467
    %v506 = vpop.f32.mrf.mxu0
    %v507 = vadd.f32 0.0, %v506
    %508 = vdwg.mxu0
    %509 = vmatpush.msra.mxu0 %v98
    %510 = vmatpush.msra.mxu0 %v95
    %511 = vmatpush.msra.mxu0 %v92
    %512 = vmatpush.msra.mxu0 %v89
    %513 = vmatpush.msra.mxu0 %v86
    %514 = vmatpush.msra.mxu0 %v83
    %515 = vmatpush.msra.mxu0 %v80
    %516 = vmatpush.msra.mxu0 %v77
    %517 = vmatpush.msra.mxu0 %v74
    %518 = vmatpush.msra.mxu0 %v71
    %519 = vmatpush.msra.mxu0 %v68
    %520 = vmatpush.msra.mxu0 %v65
    %521 = vmatpush.msra.mxu0 %v62
    %522 = vmatpush.msra.mxu0 %v59
    %523 = vmatpush.msra.mxu0 %v56
    %524 = vmatpush.msra.mxu0 %v53
    %525 = vmatmul.f32.gmra.mxu0 %v467
    %v526 = vpop.f32.mrf.mxu0
    %v527 = vadd.f32 0.0, %v526
    %528 = vdwg.mxu0
    %v530 = vrot.slane %v487, 2
    %v532 = vadd.f32 %v463, %v530
    %v533 = vxor.u32 %v532, 2147483648
    %v534 = vmul.f32 %v533, 1.442695
    %v535 = vpow.pop %v534
    %v536 = vadd.f32 %v535, 1.0
    %v537 = vrcp.pop %v536
    %v538 = vmul.f32 %v536, %v537
    %v539 = vsub.f32 1.0, %v538
    %v540 = vmul.f32 %v537, %v539
    %v541 = vadd.f32 %v537, %v540
    %vm542 = vweird.f32 %v536
    %vm543 = vweird.f32 %v537
    %vm544 = vmor %vm542, %vm543
    %v545 = vsel %vm544, %v537, %v541
    %v546 = vand.u32 2147483647, %v536
    %vm547 = vcmp.eq.f32.partialorder %v546, 8.507059e+37
    %v548 = vand.u32 %v536, 2147483648
    %v549 = vor.u32 1.1754944e-38, %v548
    %v550 = vsel %vm547, %v549, %v545
    %v551 = vmul.f32 1.0, %v550
    %v553 = vrot.slane %v507, 2
    %v555 = vadd.f32 %v464, %v553
    %v556 = vxor.u32 %v555, 2147483648
    %v557 = vmul.f32 %v556, 1.442695
    %v558 = vpow.pop %v557
    %v559 = vadd.f32 %v558, 1.0
    %v560 = vrcp.pop %v559
    %v561 = vmul.f32 %v559, %v560
    %v562 = vsub.f32 1.0, %v561
    %v563 = vmul.f32 %v560, %v562
    %v564 = vadd.f32 %v560, %v563
    %vm565 = vweird.f32 %v559
    %vm566 = vweird.f32 %v560
    %vm567 = vmor %vm565, %vm566
    %v568 = vsel %vm567, %v560, %v564
    %v569 = vand.u32 2147483647, %v559
    %vm570 = vcmp.eq.f32.partialorder %v569, 8.507059e+37
    %v571 = vand.u32 %v559, 2147483648
    %v572 = vor.u32 1.1754944e-38, %v571
    %v573 = vsel %vm570, %v572, %v568
    %v574 = vmul.f32 1.0, %v573
    %v575 = vadd.f32 %v527, %v205
    %v577 = vrot.slane %v575, 2
    %v579 = vmul.f32 %v551, %v577
    %v580 = vadd.f32 %v465, %v579
    %v581 = vtanh.pop %v580
    %v582 = vsub.f32 1.0, %v574
    %v583 = vmul.f32 %v582, %v581
    %v584 = vrot.slane %v462, 6
    %v586 = vmul.f32 %v574, %v584
    %v587 = vadd.f32 %v583, %v586
    %v588 = vld [vmem:[%s43 + $0x18] sm:$0x3]
    %v589 = vld [vmem:[%s43 + $0x20] sm:$0x3]
    %v590 = vld [vmem:[%s43 + $0x28] sm:$0x3]
    %v592 = vrot.slane %v587, 6
    %594 = vmatpush.msra.mxu0 %v96
    %595 = vmatpush.msra.mxu0 %v93
    %596 = vmatpush.msra.mxu0 %v90
    %597 = vmatpush.msra.mxu0 %v87
    %598 = vmatpush.msra.mxu0 %v84
    %599 = vmatpush.msra.mxu0 %v81
    %600 = vmatpush.msra.mxu0 %v78
    %601 = vmatpush.msra.mxu0 %v75
    %602 = vmatpush.msra.mxu0 %v72
    %603 = vmatpush.msra.mxu0 %v69
    %604 = vmatpush.msra.mxu0 %v66
    %605 = vmatpush.msra.mxu0 %v63
    %606 = vmatpush.msra.mxu0 %v60
    %607 = vmatpush.msra.mxu0 %v57
    %608 = vmatpush.msra.mxu0 %v54
    %609 = vmatpush.msra.mxu0 %v51
    %610 = vmatmul.f32.gmra.mxu0 %v592
    %v611 = vpop.f32.mrf.mxu0
    %v612 = vadd.f32 0.0, %v611
    %613 = vdwg.mxu0
    %614 = vmatpush.msra.mxu0 %v97
    %615 = vmatpush.msra.mxu0 %v94
    %616 = vmatpush.msra.mxu0 %v91
    %617 = vmatpush.msra.mxu0 %v88
    %618 = vmatpush.msra.mxu0 %v85
    %619 = vmatpush.msra.mxu0 %v82
    %620 = vmatpush.msra.mxu0 %v79
    %621 = vmatpush.msra.mxu0 %v76
    %622 = vmatpush.msra.mxu0 %v73
    %623 = vmatpush.msra.mxu0 %v70
    %624 = vmatpush.msra.mxu0 %v67
    %625 = vmatpush.msra.mxu0 %v64
    %626 = vmatpush.msra.mxu0 %v61
    %627 = vmatpush.msra.mxu0 %v58
    %628 = vmatpush.msra.mxu0 %v55
    %629 = vmatpush.msra.mxu0 %v52
    %630 = vmatmul.f32.gmra.mxu0 %v592
    %v631 = vpop.f32.mrf.mxu0
    %v632 = vadd.f32 0.0, %v631
    %633 = vdwg.mxu0
    %634 = vmatpush.msra.mxu0 %v98
    %635 = vmatpush.msra.mxu0 %v95
    %636 = vmatpush.msra.mxu0 %v92
    %637 = vmatpush.msra.mxu0 %v89
    %638 = vmatpush.msra.mxu0 %v86
    %639 = vmatpush.msra.mxu0 %v83
    %640 = vmatpush.msra.mxu0 %v80
    %641 = vmatpush.msra.mxu0 %v77
    %642 = vmatpush.msra.mxu0 %v74
    %643 = vmatpush.msra.mxu0 %v71
    %644 = vmatpush.msra.mxu0 %v68
    %645 = vmatpush.msra.mxu0 %v65
    %646 = vmatpush.msra.mxu0 %v62
    %647 = vmatpush.msra.mxu0 %v59
    %648 = vmatpush.msra.mxu0 %v56
    %649 = vmatpush.msra.mxu0 %v53
    %650 = vmatmul.f32.gmra.mxu0 %v592
    %v651 = vpop.f32.mrf.mxu0
    %v652 = vadd.f32 0.0, %v651
    %653 = vdwg.mxu0
    %v654 = vadd.f32 %v588, %v612
    %v655 = vxor.u32 %v654, 2147483648
    %v656 = vmul.f32 %v655, 1.442695
    %v657 = vpow.pop %v656
    %v658 = vadd.f32 %v657, 1.0
    %v659 = vrcp.pop %v658
    %v660 = vmul.f32 %v658, %v659
    %v661 = vsub.f32 1.0, %v660
    %v662 = vmul.f32 %v659, %v661
    %v663 = vadd.f32 %v659, %v662
    %vm664 = vweird.f32 %v658
    %vm665 = vweird.f32 %v659
    %vm666 = vmor %vm664, %vm665
    %v667 = vsel %vm666, %v659, %v663
    %v668 = vand.u32 2147483647, %v658
    %vm669 = vcmp.eq.f32.partialorder %v668, 8.507059e+37
    %v670 = vand.u32 %v658, 2147483648
    %v671 = vor.u32 1.1754944e-38, %v670
    %v672 = vsel %vm669, %v671, %v667
    %v673 = vmul.f32 1.0, %v672
    %v674 = vadd.f32 %v589, %v632
    %v675 = vxor.u32 %v674, 2147483648
    %v676 = vmul.f32 %v675, 1.442695
    %v677 = vpow.pop %v676
    %v678 = vadd.f32 %v677, 1.0
    %v679 = vrcp.pop %v678
    %v680 = vmul.f32 %v678, %v679
    %v681 = vsub.f32 1.0, %v680
    %v682 = vmul.f32 %v679, %v681
    %v683 = vadd.f32 %v679, %v682
    %vm684 = vweird.f32 %v678
    %vm685 = vweird.f32 %v679
    %vm686 = vmor %vm684, %vm685
    %v687 = vsel %vm686, %v679, %v683
    %v688 = vand.u32 2147483647, %v678
    %vm689 = vcmp.eq.f32.partialorder %v688, 8.507059e+37
    %v690 = vand.u32 %v678, 2147483648
    %v691 = vor.u32 1.1754944e-38, %v690
    %v692 = vsel %vm689, %v691, %v687
    %v693 = vmul.f32 1.0, %v692
    %v694 = vadd.f32 %v652, %v205
    %v695 = vmul.f32 %v673, %v694
    %v696 = vadd.f32 %v590, %v695
    %v697 = vtanh.pop %v696
    %v698 = vsub.f32 1.0, %v693
    %v699 = vmul.f32 %v698, %v697
    %v700 = vmul.f32 %v693, %v592
    %v701 = vadd.f32 %v699, %v700
    %v702 = vld [vmem:[%s43 + $0x18] sm:$0xc]
    %v703 = vld [vmem:[%s43 + $0x20] sm:$0xc]
    %v704 = vld [vmem:[%s43 + $0x28] sm:$0xc]
    %705 = vmatpush.msra.mxu0 %v96
    %706 = vmatpush.msra.mxu0 %v93
    %707 = vmatpush.msra.mxu0 %v90
    %708 = vmatpush.msra.mxu0 %v87
    %709 = vmatpush.msra.mxu0 %v84
    %710 = vmatpush.msra.mxu0 %v81
    %711 = vmatpush.msra.mxu0 %v78
    %712 = vmatpush.msra.mxu0 %v75
    %713 = vmatpush.msra.mxu0 %v72
    %714 = vmatpush.msra.mxu0 %v69
    %715 = vmatpush.msra.mxu0 %v66
    %716 = vmatpush.msra.mxu0 %v63
    %717 = vmatpush.msra.mxu0 %v60
    %718 = vmatpush.msra.mxu0 %v57
    %719 = vmatpush.msra.mxu0 %v54
    %720 = vmatpush.msra.mxu0 %v51
    %721 = vmatmul.f32.gmra.mxu0 %v701
    %v722 = vpop.f32.mrf.mxu0
    %v723 = vadd.f32 0.0, %v722
    %724 = vdwg.mxu0
    %725 = vmatpush.msra.mxu0 %v97
    %726 = vmatpush.msra.mxu0 %v94
    %727 = vmatpush.msra.mxu0 %v91
    %728 = vmatpush.msra.mxu0 %v88
    %729 = vmatpush.msra.mxu0 %v85
    %730 = vmatpush.msra.mxu0 %v82
    %731 = vmatpush.msra.mxu0 %v79
    %732 = vmatpush.msra.mxu0 %v76
    %733 = vmatpush.msra.mxu0 %v73
    %734 = vmatpush.msra.mxu0 %v70
    %735 = vmatpush.msra.mxu0 %v67
    %736 = vmatpush.msra.mxu0 %v64
    %737 = vmatpush.msra.mxu0 %v61
    %738 = vmatpush.msra.mxu0 %v58
    %739 = vmatpush.msra.mxu0 %v55
    %740 = vmatpush.msra.mxu0 %v52
    %741 = vmatmul.f32.gmra.mxu0 %v701
    %v742 = vpop.f32.mrf.mxu0
    %v743 = vadd.f32 0.0, %v742
    %744 = vdwg.mxu0
    %745 = vmatpush.msra.mxu0 %v98
    %746 = vmatpush.msra.mxu0 %v95
    %747 = vmatpush.msra.mxu0 %v92
    %748 = vmatpush.msra.mxu0 %v89
    %749 = vmatpush.msra.mxu0 %v86
    %750 = vmatpush.msra.mxu0 %v83
    %751 = vmatpush.msra.mxu0 %v80
    %752 = vmatpush.msra.mxu0 %v77
    %753 = vmatpush.msra.mxu0 %v74
    %754 = vmatpush.msra.mxu0 %v71
    %755 = vmatpush.msra.mxu0 %v68
    %756 = vmatpush.msra.mxu0 %v65
    %757 = vmatpush.msra.mxu0 %v62
    %758 = vmatpush.msra.mxu0 %v59
    %759 = vmatpush.msra.mxu0 %v56
    %760 = vmatpush.msra.mxu0 %v53
    %761 = vmatmul.f32.gmra.mxu0 %v701
    %v762 = vpop.f32.mrf.mxu0
    %v763 = vadd.f32 0.0, %v762
    %764 = vdwg.mxu0
    %v766 = vrot.slane %v723, 6
    %v768 = vadd.f32 %v702, %v766
    %v769 = vxor.u32 %v768, 2147483648
    %v770 = vmul.f32 %v769, 1.442695
    %v771 = vpow.pop %v770
    %v772 = vadd.f32 %v771, 1.0
    %v773 = vrcp.pop %v772
    %v774 = vmul.f32 %v772, %v773
    %v775 = vsub.f32 1.0, %v774
    %v776 = vmul.f32 %v773, %v775
    %v777 = vadd.f32 %v773, %v776
    %vm778 = vweird.f32 %v772
    %vm779 = vweird.f32 %v773
    %vm780 = vmor %vm778, %vm779
    %v781 = vsel %vm780, %v773, %v777
    %v782 = vand.u32 2147483647, %v772
    %vm783 = vcmp.eq.f32.partialorder %v782, 8.507059e+37
    %v784 = vand.u32 %v772, 2147483648
    %v785 = vor.u32 1.1754944e-38, %v784
    %v786 = vsel %vm783, %v785, %v781
    %v787 = vmul.f32 1.0, %v786
    %v789 = vrot.slane %v743, 6
    %v791 = vadd.f32 %v703, %v789
    %v792 = vxor.u32 %v791, 2147483648
    %v793 = vmul.f32 %v792, 1.442695
    %v794 = vpow.pop %v793
    %v795 = vadd.f32 %v794, 1.0
    %v796 = vrcp.pop %v795
    %v797 = vmul.f32 %v795, %v796
    %v798 = vsub.f32 1.0, %v797
    %v799 = vmul.f32 %v796, %v798
    %v800 = vadd.f32 %v796, %v799
    %vm801 = vweird.f32 %v795
    %vm802 = vweird.f32 %v796
    %vm803 = vmor %vm801, %vm802
    %v804 = vsel %vm803, %v796, %v800
    %v805 = vand.u32 2147483647, %v795
    %vm806 = vcmp.eq.f32.partialorder %v805, 8.507059e+37
    %v807 = vand.u32 %v795, 2147483648
    %v808 = vor.u32 1.1754944e-38, %v807
    %v809 = vsel %vm806, %v808, %v804
    %v810 = vmul.f32 1.0, %v809
    %v811 = vadd.f32 %v763, %v205
    %v813 = vrot.slane %v811, 6
    %v815 = vmul.f32 %v787, %v813
    %v816 = vadd.f32 %v704, %v815
    %v817 = vtanh.pop %v816
    %v818 = vsub.f32 1.0, %v810
    %v819 = vmul.f32 %v818, %v817
    %v821 = vrot.slane %v701, 6
    %v823 = vmul.f32 %v810, %v821
    %v824 = vadd.f32 %v819, %v823
    %v825 = vld [vmem:[%s43 + $0x18] sm:$0x30]
    %v826 = vld [vmem:[%s43 + $0x20] sm:$0x30]
    %v827 = vld [vmem:[%s43 + $0x28] sm:$0x30]
    %v829 = vrot.slane %v824, 2
    %831 = vmatpush.msra.mxu0 %v96
    %832 = vmatpush.msra.mxu0 %v93
    %833 = vmatpush.msra.mxu0 %v90
    %834 = vmatpush.msra.mxu0 %v87
    %835 = vmatpush.msra.mxu0 %v84
    %836 = vmatpush.msra.mxu0 %v81
    %837 = vmatpush.msra.mxu0 %v78
    %838 = vmatpush.msra.mxu0 %v75
    %839 = vmatpush.msra.mxu0 %v72
    %840 = vmatpush.msra.mxu0 %v69
    %841 = vmatpush.msra.mxu0 %v66
    %842 = vmatpush.msra.mxu0 %v63
    %843 = vmatpush.msra.mxu0 %v60
    %844 = vmatpush.msra.mxu0 %v57
    %845 = vmatpush.msra.mxu0 %v54
    %846 = vmatpush.msra.mxu0 %v51
    %847 = vmatmul.f32.gmra.mxu0 %v829
    %v848 = vpop.f32.mrf.mxu0
    %v849 = vadd.f32 0.0, %v848
    %850 = vdwg.mxu0
    %851 = vmatpush.msra.mxu0 %v97
    %852 = vmatpush.msra.mxu0 %v94
    %853 = vmatpush.msra.mxu0 %v91
    %854 = vmatpush.msra.mxu0 %v88
    %855 = vmatpush.msra.mxu0 %v85
    %856 = vmatpush.msra.mxu0 %v82
    %857 = vmatpush.msra.mxu0 %v79
    %858 = vmatpush.msra.mxu0 %v76
    %859 = vmatpush.msra.mxu0 %v73
    %860 = vmatpush.msra.mxu0 %v70
    %861 = vmatpush.msra.mxu0 %v67
    %862 = vmatpush.msra.mxu0 %v64
    %863 = vmatpush.msra.mxu0 %v61
    %864 = vmatpush.msra.mxu0 %v58
    %865 = vmatpush.msra.mxu0 %v55
    %866 = vmatpush.msra.mxu0 %v52
    %867 = vmatmul.f32.gmra.mxu0 %v829
    %v868 = vpop.f32.mrf.mxu0
    %v869 = vadd.f32 0.0, %v868
    %870 = vdwg.mxu0
    %871 = vmatpush.msra.mxu0 %v98
    %872 = vmatpush.msra.mxu0 %v95
    %873 = vmatpush.msra.mxu0 %v92
    %874 = vmatpush.msra.mxu0 %v89
    %875 = vmatpush.msra.mxu0 %v86
    %876 = vmatpush.msra.mxu0 %v83
    %877 = vmatpush.msra.mxu0 %v80
    %878 = vmatpush.msra.mxu0 %v77
    %879 = vmatpush.msra.mxu0 %v74
    %880 = vmatpush.msra.mxu0 %v71
    %881 = vmatpush.msra.mxu0 %v68
    %882 = vmatpush.msra.mxu0 %v65
    %883 = vmatpush.msra.mxu0 %v62
    %884 = vmatpush.msra.mxu0 %v59
    %885 = vmatpush.msra.mxu0 %v56
    %886 = vmatpush.msra.mxu0 %v53
    %887 = vmatmul.f32.gmra.mxu0 %v829
    %v888 = vpop.f32.mrf.mxu0
    %v889 = vadd.f32 0.0, %v888
    %890 = vdwg.mxu0
    %v892 = vrot.slane %v849, 4
    %v894 = vadd.f32 %v825, %v892
    %v895 = vxor.u32 %v894, 2147483648
    %v896 = vmul.f32 %v895, 1.442695
    %v897 = vpow.pop %v896
    %v898 = vadd.f32 %v897, 1.0
    %v899 = vrcp.pop %v898
    %v900 = vmul.f32 %v898, %v899
    %v901 = vsub.f32 1.0, %v900
    %v902 = vmul.f32 %v899, %v901
    %v903 = vadd.f32 %v899, %v902
    %vm904 = vweird.f32 %v898
    %vm905 = vweird.f32 %v899
    %vm906 = vmor %vm904, %vm905
    %v907 = vsel %vm906, %v899, %v903
    %v908 = vand.u32 2147483647, %v898
    %vm909 = vcmp.eq.f32.partialorder %v908, 8.507059e+37
    %v910 = vand.u32 %v898, 2147483648
    %v911 = vor.u32 1.1754944e-38, %v910
    %v912 = vsel %vm909, %v911, %v907
    %v913 = vmul.f32 1.0, %v912
    %v915 = vrot.slane %v869, 4
    %v917 = vadd.f32 %v826, %v915
    %v918 = vxor.u32 %v917, 2147483648
    %v919 = vmul.f32 %v918, 1.442695
    %v920 = vpow.pop %v919
    %v921 = vadd.f32 %v920, 1.0
    %v922 = vrcp.pop %v921
    %v923 = vmul.f32 %v921, %v922
    %v924 = vsub.f32 1.0, %v923
    %v925 = vmul.f32 %v922, %v924
    %v926 = vadd.f32 %v922, %v925
    %vm927 = vweird.f32 %v921
    %vm928 = vweird.f32 %v922
    %vm929 = vmor %vm927, %vm928
    %v930 = vsel %vm929, %v922, %v926
    %v931 = vand.u32 2147483647, %v921
    %vm932 = vcmp.eq.f32.partialorder %v931, 8.507059e+37
    %v933 = vand.u32 %v921, 2147483648
    %v934 = vor.u32 1.1754944e-38, %v933
    %v935 = vsel %vm932, %v934, %v930
    %v936 = vmul.f32 1.0, %v935
    %v937 = vadd.f32 %v889, %v205
    %v939 = vrot.slane %v937, 4
    %v941 = vmul.f32 %v913, %v939
    %v942 = vadd.f32 %v827, %v941
    %v943 = vtanh.pop %v942
    %v944 = vsub.f32 1.0, %v936
    %v945 = vmul.f32 %v944, %v943
    %v946 = vrot.slane %v824, 6
    %v948 = vmul.f32 %v936, %v946
    %v949 = vadd.f32 %v945, %v948
    %v950 = vld [vmem:[%s43 + $0x18] sm:$0xc0]
    %v951 = vld [vmem:[%s43 + $0x20] sm:$0xc0]
    %v952 = vld [vmem:[%s43 + $0x28] sm:$0xc0]
    %v954 = vrot.slane %v949, 4
    %956 = vmatpush.msra.mxu0 %v96
    %957 = vmatpush.msra.mxu0 %v93
    %958 = vmatpush.msra.mxu0 %v90
    %959 = vmatpush.msra.mxu0 %v87
    %960 = vmatpush.msra.mxu0 %v84
    %961 = vmatpush.msra.mxu0 %v81
    %962 = vmatpush.msra.mxu0 %v78
    %963 = vmatpush.msra.mxu0 %v75
    %964 = vmatpush.msra.mxu0 %v72
    %965 = vmatpush.msra.mxu0 %v69
    %966 = vmatpush.msra.mxu0 %v66
    %967 = vmatpush.msra.mxu0 %v63
    %968 = vmatpush.msra.mxu0 %v60
    %969 = vmatpush.msra.mxu0 %v57
    %970 = vmatpush.msra.mxu0 %v54
    %971 = vmatpush.msra.mxu0 %v51
    %972 = vmatmul.f32.gmra.mxu0 %v954
    %v973 = vpop.f32.mrf.mxu0
    %v974 = vadd.f32 0.0, %v973
    %975 = vdwg.mxu0
    %976 = vmatpush.msra.mxu0 %v97
    %977 = vmatpush.msra.mxu0 %v94
    %978 = vmatpush.msra.mxu0 %v91
    %979 = vmatpush.msra.mxu0 %v88
    %980 = vmatpush.msra.mxu0 %v85
    %981 = vmatpush.msra.mxu0 %v82
    %982 = vmatpush.msra.mxu0 %v79
    %983 = vmatpush.msra.mxu0 %v76
    %984 = vmatpush.msra.mxu0 %v73
    %985 = vmatpush.msra.mxu0 %v70
    %986 = vmatpush.msra.mxu0 %v67
    %987 = vmatpush.msra.mxu0 %v64
    %988 = vmatpush.msra.mxu0 %v61
    %989 = vmatpush.msra.mxu0 %v58
    %990 = vmatpush.msra.mxu0 %v55
    %991 = vmatpush.msra.mxu0 %v52
    %992 = vmatmul.f32.gmra.mxu0 %v954
    %v993 = vpop.f32.mrf.mxu0
    %v994 = vadd.f32 0.0, %v993
    %995 = vdwg.mxu0
    %996 = vmatpush.msra.mxu0 %v98
    %997 = vmatpush.msra.mxu0 %v95
    %998 = vmatpush.msra.mxu0 %v92
    %999 = vmatpush.msra.mxu0 %v89
    %1000 = vmatpush.msra.mxu0 %v86
    %1001 = vmatpush.msra.mxu0 %v83
    %1002 = vmatpush.msra.mxu0 %v80
    %1003 = vmatpush.msra.mxu0 %v77
    %1004 = vmatpush.msra.mxu0 %v74
    %1005 = vmatpush.msra.mxu0 %v71
    %1006 = vmatpush.msra.mxu0 %v68
    %1007 = vmatpush.msra.mxu0 %v65
    %1008 = vmatpush.msra.mxu0 %v62
    %1009 = vmatpush.msra.mxu0 %v59
    %1010 = vmatpush.msra.mxu0 %v56
    %1011 = vmatpush.msra.mxu0 %v53
    %1012 = vmatmul.f32.gmra.mxu0 %v954
    %v1013 = vpop.f32.mrf.mxu0
    %v1014 = vadd.f32 0.0, %v1013
    %1015 = vdwg.mxu0
    %v1017 = vrot.slane %v974, 2
    %v1019 = vadd.f32 %v950, %v1017
    %v1020 = vxor.u32 %v1019, 2147483648
    %v1021 = vmul.f32 %v1020, 1.442695
    %v1022 = vpow.pop %v1021
    %v1023 = vadd.f32 %v1022, 1.0
    %v1024 = vrcp.pop %v1023
    %v1025 = vmul.f32 %v1023, %v1024
    %v1026 = vsub.f32 1.0, %v1025
    %v1027 = vmul.f32 %v1024, %v1026
    %v1028 = vadd.f32 %v1024, %v1027
    %vm1029 = vweird.f32 %v1023
    %vm1030 = vweird.f32 %v1024
    %vm1031 = vmor %vm1029, %vm1030
    %v1032 = vsel %vm1031, %v1024, %v1028
    %v1033 = vand.u32 2147483647, %v1023
    %vm1034 = vcmp.eq.f32.partialorder %v1033, 8.507059e+37
    %v1035 = vand.u32 %v1023, 2147483648
    %v1036 = vor.u32 1.1754944e-38, %v1035
    %v1037 = vsel %vm1034, %v1036, %v1032
    %v1038 = vmul.f32 1.0, %v1037
    %v1040 = vrot.slane %v994, 2
    %v1042 = vadd.f32 %v951, %v1040
    %v1043 = vxor.u32 %v1042, 2147483648
    %v1044 = vmul.f32 %v1043, 1.442695
    %v1045 = vpow.pop %v1044
    %v1046 = vadd.f32 %v1045, 1.0
    %v1047 = vrcp.pop %v1046
    %v1048 = vmul.f32 %v1046, %v1047
    %v1049 = vsub.f32 1.0, %v1048
    %v1050 = vmul.f32 %v1047, %v1049
    %v1051 = vadd.f32 %v1047, %v1050
    %vm1052 = vweird.f32 %v1046
    %vm1053 = vweird.f32 %v1047
    %vm1054 = vmor %vm1052, %vm1053
    %v1055 = vsel %vm1054, %v1047, %v1051
    %v1056 = vand.u32 2147483647, %v1046
    %vm1057 = vcmp.eq.f32.partialorder %v1056, 8.507059e+37
    %v1058 = vand.u32 %v1046, 2147483648
    %v1059 = vor.u32 1.1754944e-38, %v1058
    %v1060 = vsel %vm1057, %v1059, %v1055
    %v1061 = vmul.f32 1.0, %v1060
    %v1062 = vadd.f32 %v1014, %v205
    %v1064 = vrot.slane %v1062, 2
    %v1066 = vmul.f32 %v1038, %v1064
    %v1067 = vadd.f32 %v952, %v1066
    %v1068 = vtanh.pop %v1067
    %v1069 = vsub.f32 1.0, %v1061
    %v1070 = vmul.f32 %v1069, %v1068
    %v1071 = vrot.slane %v949, 6
    %v1073 = vmul.f32 %v1061, %v1071
    %v1074 = vadd.f32 %v1070, %v1073
    %1075 = vst [vmem:[#allocation2 - $0x6] sm:$0xc0] %v1074
    // Predicated region
    $region26: #{model_forward.3} parent=1 // pred_check
      %p1076 = pneg %p46
    $region27: #{model_forward.3} parent=1 // pred_check_branch
      %1078 = sbr.rel (%p1076) target = $region29
    $region28: #{model_forward.3} parent=1 // pred_region
      %v1079 = vld [vmem:[%s3] sm:$0xff]
      %v1080 = vld [vmem:[%s3 + $0x8] sm:$0xff]
      %v1081 = vld [vmem:[%s3 + $0x10] sm:$0xff]
      %v1082 = vld [vmem:[%s3 + $0x18] sm:$0xff]
      %v1083 = vld [vmem:[%s3 + $0x20] sm:$0xff]
      %v1084 = vld [vmem:[%s3 + $0x28] sm:$0xff]
      %v1085 = vld [vmem:[%s3 + $0x30] sm:$0xff]
      %v1086 = vld [vmem:[%s3 + $0x38] sm:$0xff]
      %v1087 = vld [vmem:[%s3 + $0x40] sm:$0xff]
      %v1088 = vld [vmem:[%s3 + $0x48] sm:$0xff]
      %v1089 = vld [vmem:[%s3 + $0x50] sm:$0xff]
      %v1090 = vld [vmem:[%s3 + $0x58] sm:$0xff]
      %v1091 = vld [vmem:[%s3 + $0x60] sm:$0xff]
      %v1092 = vld [vmem:[%s3 + $0x68] sm:$0xff]
      %v1093 = vld [vmem:[%s3 + $0x70] sm:$0xff]
      %v1094 = vld [vmem:[%s3 + $0x78] sm:$0xff]
      %v1095 = vld [vmem:[%s4] sm:$0x1]
      %v1097 = vperm.slane %v1095, 0
      %v1100 = vrot.slane %v1074, 6
      %1102 = vmatpush.msra.mxu0 %v1094
      %1103 = vmatpush.msra.mxu0 %v1093
      %1104 = vmatpush.msra.mxu0 %v1092
      %1105 = vmatpush.msra.mxu0 %v1091
      %1106 = vmatpush.msra.mxu0 %v1090
      %1107 = vmatpush.msra.mxu0 %v1089
      %1108 = vmatpush.msra.mxu0 %v1088
      %1109 = vmatpush.msra.mxu0 %v1087
      %1110 = vmatpush.msra.mxu0 %v1086
      %1111 = vmatpush.msra.mxu0 %v1085
      %1112 = vmatpush.msra.mxu0 %v1084
      %1113 = vmatpush.msra.mxu0 %v1083
      %1114 = vmatpush.msra.mxu0 %v1082
      %1115 = vmatpush.msra.mxu0 %v1081
      %1116 = vmatpush.msra.mxu0 %v1080
      %1117 = vmatpush.msra.mxu0 %v1079
      %1118 = vmatmul.f32.gmra.mxu0 %v1100
      %v1119 = vpop.f32.mrf.mxu0
      %v1120 = vadd.f32 %v1097, %v1119
      %1121 = vdwg.mxu0
      %vm1122 = vcmask 25600
      %1123 = vst.msk [vmem:[#allocation3] sm:$0x3] %vm1122, %v1120
    $region29: #{model_forward.3} parent=1 // pred_fallthru
      _
    // Predicated region
    $region30: #{model_forward.3} parent=1 // pred_check
      _
    $region31: #{model_forward.3} parent=1 // pred_check_branch
      %1125 = sbr.rel (0) target = $region33
    $region32: #{model_forward.3} parent=1 // pred_region
      %1127 = vsyncadd [#allocation4], 0
      %s1129 = sshll.u32 [#allocation3], 4
      %s1130 = int_to_ptr.vmem [resolvable:$true] %s1129
      %s1131 = sshll.u32 %s5, 4
      %s1132 = int_to_ptr.hbm [resolvable:$true] %s1131
      %1134 = dma.vmem_to_hbm [thread:$0]  %s1130, 32, %s1132, [#allocation4]
    $region33: #{model_forward.3} parent=1 // pred_fallthru
      _
    // Predicated region
    $region34: #{model_forward.3} parent=1 // pred_check
      _
    $region35: #{model_forward.3} parent=1 // pred_check_branch
      %1136 = sbr.rel (0) target = $region37
    $region36: #{model_forward.3} parent=1 // pred_region
      %1138 = dma.done [#allocation4], 32
    $region37: #{model_forward.3} parent=1 // pred_fallthru
      _
    %1139 = vsyncpa [#allocation4], 1

// kernel: model_forward.2
$region0: #{model_forward.2}
  #allocation0 [shape = 'u32[]', space=smem, size = 0x4, offset = 0x4, fixed_abs, tag = 'smem constant byte address 0x4 - core index']
  #allocation1 [shape = 'u32[72,128]{1,0:T(1,128)}', space=vmem, size = 0x9000, scoped, tag = 'internal scratch']
  #allocation2 [shape = 'f32[2,128]{1,0:T(2,128)}', space=vmem, size = 0x400, scoped, tag = 'scratch operand']
  %s0 = inlined_call_operand.vmem [shape: f32[16,384], index: 0, kind: input, shape index: {}]
  %s1 = inlined_call_operand.hbm [shape: f32[128,384], index: 1, kind: input, shape index: {}]
  %s2 = inlined_call_operand.vmem [shape: f32[1,128], index: 2, kind: input, shape index: {}]
  %s3 = inlined_call_operand.vmem [shape: f32[16,128], index: 3, kind: output, shape index: {}]
  %s4 = sld [smem:[#allocation0]]
  $region30: #{model_forward.2} parent=0
    _
  %s6 = ssub.s32 1, %s4
  %s7 = scalar_select 0, %s6, %s4
  $region1: #{model_forward.2} parent=0
    #allocation3 [shape = 'u8[196608]{0}', space=vmem, size = 0x30000, scoped, tag = 'input window, operand 1, single buffered']
    #allocation4 [shape = 's32[1]{0}', space=sflag, size = 0x4, scoped, tag = 'scoped memory for model_forward.2']
    %8 = vsyncpa [#allocation4], 0
    // Predicated region
    $region2: #{model_forward.2} parent=1 // pred_check
      _
    $region3: #{model_forward.2} parent=1 // pred_check_branch
      %10 = sbr.rel (0) target = $region5
    $region4: #{model_forward.2} parent=1 // pred_region
      %s11 = sadd.s32 0, 0
      %s12 = smul.u32 2, %s11
      %p13 = scmp.lt.s32.totalorder %s12, 1
      %s14 = scalar_select %p13, %s12, 1
      %s15 = smul.addr %s14, 3
      %s16 = smul.addr %s15, 8
      %s17 = scalar_lea.vmem %s0, %s16
      %s18 = sadd.s32 0, 0
      %s19 = smul.u32 2, %s18
    $region5: #{model_forward.2} parent=1 // pred_fallthru
      _
    // Predicated region
    $region6: #{model_forward.2} parent=1 // pred_check
      _
    $region7: #{model_forward.2} parent=1 // pred_check_branch
      %21 = sbr.rel (0) target = $region9
    $region8: #{model_forward.2} parent=1 // pred_region
      %23 = vsyncadd [#allocation4], 0
      %s24 = sshll.u32 %s1, 4
      %s25 = int_to_ptr.hbm [resolvable:$true] %s24
      %s26 = sshll.u32 [#allocation3], 4
      %s27 = int_to_ptr.vmem [resolvable:$true] %s26
      %32 = dma.hbm_to_vmem [thread:$0]  %s25, 6144, %s27, [#allocation4], 384, 384, 24
    $region9: #{model_forward.2} parent=1 // pred_fallthru
      _
    // Predicated region
    $region10: #{model_forward.2} parent=1 // pred_check
      _
    $region11: #{model_forward.2} parent=1 // pred_check_branch
      %34 = sbr.rel (0) target = $region13
    $region12: #{model_forward.2} parent=1 // pred_region
      _
    $region13: #{model_forward.2} parent=1 // pred_fallthru
      _
    // Predicated region
    $region14: #{model_forward.2} parent=1 // pred_check
      _
    $region15: #{model_forward.2} parent=1 // pred_check_branch
      %36 = sbr.rel (0) target = $region17
    $region16: #{model_forward.2} parent=1 // pred_region
      %38 = dma.done [#allocation4], 6144
    $region17: #{model_forward.2} parent=1 // pred_fallthru
      _
    %s39 = sadd.s32 0, 0
    %s40 = smul.u32 2, %s39
    %p41 = scmp.lt.s32.totalorder %s40, 1
    %s42 = scalar_select %p41, %s40, 1
    %s43 = smul.addr %s42, 3
    %s44 = smul.addr %s43, 8
    %s45 = scalar_lea.vmem %s0, %s44
    %s46 = sadd.s32 0, 0
    %s47 = smul.u32 2, %s46
    %p48 = scmp.lt.s32.totalorder %s47, 1
    %s49 = scalar_select %p48, %s47, 1
    %s50 = smul.addr %s49, 8
    %s51 = scalar_lea.vmem %s3, %s50
    %s52 = sadd.s32 0, 0
    %s53 = smul.u32 2, %s52
    %p54 = scmp.lt.s32.totalorder %s53, 1
    %s55 = scalar_select %p54, %s53, 1
    %s56 = smul.addr %s55, 3
    %s57 = smul.addr %s56, 8
    %s58 = scalar_lea.vmem %s0, %s57
    %s59 = sadd.s32 0, 0
    %s60 = smul.u32 2, %s59
    %s61 = sadd.s32 0, 0
    %s62 = smul.u32 2, %s61
    %p63 = scmp.lt.s32.totalorder %s62, 1
    %s64 = scalar_select %p63, %s62, 1
    %s65 = smul.addr %s64, 8
    %s66 = scalar_lea.vmem %s3, %s65
    %s67 = sadd.s32 0, 0
    %s68 = smul.u32 2, %s67
    %p69 = scmp.eq.s32.totalorder 0, 0
    // Predicated region
    $region18: #{model_forward.2} parent=1 // pred_check
      %p70 = pneg %p69
    $region19: #{model_forward.2} parent=1 // pred_check_branch
      %72 = sbr.rel (%p70) target = $region21
    $region20: #{model_forward.2} parent=1 // pred_region
      %73 = vst [vmem:[#allocation2] sm:$0x3] 0.0
    $region21: #{model_forward.2} parent=1 // pred_fallthru
      _
    %v74 = vld [vmem:[#allocation3] sm:$0xff]
    %v75 = vld [vmem:[#allocation3 + $0x8] sm:$0xff]
    %v76 = vld [vmem:[#allocation3 + $0x10] sm:$0xff]
    %v77 = vld [vmem:[#allocation3 + $0x18] sm:$0xff]
    %v78 = vld [vmem:[#allocation3 + $0x20] sm:$0xff]
    %v79 = vld [vmem:[#allocation3 + $0x28] sm:$0xff]
    %v80 = vld [vmem:[#allocation3 + $0x30] sm:$0xff]
    %v81 = vld [vmem:[#allocation3 + $0x38] sm:$0xff]
    %v82 = vld [vmem:[#allocation3 + $0x40] sm:$0xff]
    %v83 = vld [vmem:[#allocation3 + $0x48] sm:$0xff]
    %v84 = vld [vmem:[#allocation3 + $0x50] sm:$0xff]
    %v85 = vld [vmem:[#allocation3 + $0x58] sm:$0xff]
    %v86 = vld [vmem:[#allocation3 + $0x60] sm:$0xff]
    %v87 = vld [vmem:[#allocation3 + $0x68] sm:$0xff]
    %v88 = vld [vmem:[#allocation3 + $0x70] sm:$0xff]
    %v89 = vld [vmem:[#allocation3 + $0x78] sm:$0xff]
    %v90 = vld [vmem:[#allocation3 + $0x80] sm:$0xff]
    %v91 = vld [vmem:[#allocation3 + $0x88] sm:$0xff]
    %v92 = vld [vmem:[#allocation3 + $0x90] sm:$0xff]
    %v93 = vld [vmem:[#allocation3 + $0x98] sm:$0xff]
    %v94 = vld [vmem:[#allocation3 + $0xa0] sm:$0xff]
    %v95 = vld [vmem:[#allocation3 + $0xa8] sm:$0xff]
    %v96 = vld [vmem:[#allocation3 + $0xb0] sm:$0xff]
    %v97 = vld [vmem:[#allocation3 + $0xb8] sm:$0xff]
    %v98 = vld [vmem:[#allocation3 + $0xc0] sm:$0xff]
    %v99 = vld [vmem:[#allocation3 + $0xc8] sm:$0xff]
    %v100 = vld [vmem:[#allocation3 + $0xd0] sm:$0xff]
    %v101 = vld [vmem:[#allocation3 + $0xd8] sm:$0xff]
    %v102 = vld [vmem:[#allocation3 + $0xe0] sm:$0xff]
    %v103 = vld [vmem:[#allocation3 + $0xe8] sm:$0xff]
    %v104 = vld [vmem:[#allocation3 + $0xf0] sm:$0xff]
    %v105 = vld [vmem:[#allocation3 + $0xf8] sm:$0xff]
    %v106 = vld [vmem:[#allocation3 + $0x100] sm:$0xff]
    %v107 = vld [vmem:[#allocation3 + $0x108] sm:$0xff]
    %v108 = vld [vmem:[#allocation3 + $0x110] sm:$0xff]
    %v109 = vld [vmem:[#allocation3 + $0x118] sm:$0xff]
    %v110 = vld [vmem:[#allocation3 + $0x120] sm:$0xff]
    %v111 = vld [vmem:[#allocation3 + $0x128] sm:$0xff]
    %v112 = vld [vmem:[#allocation3 + $0x130] sm:$0xff]
    %v113 = vld [vmem:[#allocation3 + $0x138] sm:$0xff]
    %v114 = vld [vmem:[#allocation3 + $0x140] sm:$0xff]
    %v115 = vld [vmem:[#allocation3 + $0x148] sm:$0xff]
    %v116 = vld [vmem:[#allocation3 + $0x150] sm:$0xff]
    %v117 = vld [vmem:[#allocation3 + $0x158] sm:$0xff]
    %v118 = vld [vmem:[#allocation3 + $0x160] sm:$0xff]
    %v119 = vld [vmem:[#allocation3 + $0x168] sm:$0xff]
    %v120 = vld [vmem:[#allocation3 + $0x170] sm:$0xff]
    %v121 = vld [vmem:[#allocation3 + $0x178] sm:$0xff]
    %v122 = vld [vmem:[%s2] sm:$0x1]
    %v123 = vld [vmem:[#allocation2] sm:$0x3]
    %v124 = vld [vmem:[%s58] sm:$0x3]
    %v125 = vld [vmem:[%s58 + $0x8] sm:$0x3]
    %v126 = vld [vmem:[%s58 + $0x10] sm:$0x3]
    %127 = vmatpush.msra.mxu0 %v119
    %128 = vmatpush.msra.mxu0 %v116
    %129 = vmatpush.msra.mxu0 %v113
    %130 = vmatpush.msra.mxu0 %v110
    %131 = vmatpush.msra.mxu0 %v107
    %132 = vmatpush.msra.mxu0 %v104
    %133 = vmatpush.msra.mxu0 %v101
    %134 = vmatpush.msra.mxu0 %v98
    %135 = vmatpush.msra.mxu0 %v95
    %136 = vmatpush.msra.mxu0 %v92
    %137 = vmatpush.msra.mxu0 %v89
    %138 = vmatpush.msra.mxu0 %v86
    %139 = vmatpush.msra.mxu0 %v83
    %140 = vmatpush.msra.mxu0 %v80
    %141 = vmatpush.msra.mxu0 %v77
    %142 = vmatpush.msra.mxu0 %v74
    %143 = vmatmul.f32.gmra.mxu0 %v123
    %v144 = vpop.f32.mrf.mxu0
    %v145 = vadd.f32 0.0, %v144
    %146 = vdwg.mxu0
    %147 = vmatpush.msra.mxu0 %v120
    %148 = vmatpush.msra.mxu0 %v117
    %149 = vmatpush.msra.mxu0 %v114
    %150 = vmatpush.msra.mxu0 %v111
    %151 = vmatpush.msra.mxu0 %v108
    %152 = vmatpush.msra.mxu0 %v105
    %153 = vmatpush.msra.mxu0 %v102
    %154 = vmatpush.msra.mxu0 %v99
    %155 = vmatpush.msra.mxu0 %v96
    %156 = vmatpush.msra.mxu0 %v93
    %157 = vmatpush.msra.mxu0 %v90
    %158 = vmatpush.msra.mxu0 %v87
    %159 = vmatpush.msra.mxu0 %v84
    %160 = vmatpush.msra.mxu0 %v81
    %161 = vmatpush.msra.mxu0 %v78
    %162 = vmatpush.msra.mxu0 %v75
    %163 = vmatmul.f32.gmra.mxu0 %v123
    %v164 = vpop.f32.mrf.mxu0
    %v165 = vadd.f32 0.0, %v164
    %166 = vdwg.mxu0
    %167 = vmatpush.msra.mxu0 %v121
    %168 = vmatpush.msra.mxu0 %v118
    %169 = vmatpush.msra.mxu0 %v115
    %170 = vmatpush.msra.mxu0 %v112
    %171 = vmatpush.msra.mxu0 %v109
    %172 = vmatpush.msra.mxu0 %v106
    %173 = vmatpush.msra.mxu0 %v103
    %174 = vmatpush.msra.mxu0 %v100
    %175 = vmatpush.msra.mxu0 %v97
    %176 = vmatpush.msra.mxu0 %v94
    %177 = vmatpush.msra.mxu0 %v91
    %178 = vmatpush.msra.mxu0 %v88
    %179 = vmatpush.msra.mxu0 %v85
    %180 = vmatpush.msra.mxu0 %v82
    %181 = vmatpush.msra.mxu0 %v79
    %182 = vmatpush.msra.mxu0 %v76
    %183 = vmatmul.f32.gmra.mxu0 %v123
    %v184 = vpop.f32.mrf.mxu0
    %v185 = vadd.f32 0.0, %v184
    %186 = vdwg.mxu0
    %v187 = vadd.f32 %v124, %v145
    %v188 = vxor.u32 %v187, 2147483648
    %v189 = vmul.f32 %v188, 1.442695
    %v190 = vpow.pop %v189
    %v191 = vadd.f32 %v190, 1.0
    %v192 = vrcp.pop %v191
    %v193 = vmul.f32 %v191, %v192
    %v194 = vsub.f32 1.0, %v193
    %v195 = vmul.f32 %v192, %v194
    %v196 = vadd.f32 %v192, %v195
    %vm197 = vweird.f32 %v191
    %vm198 = vweird.f32 %v192
    %vm199 = vmor %vm197, %vm198
    %v200 = vsel %vm199, %v192, %v196
    %v201 = vand.u32 2147483647, %v191
    %vm202 = vcmp.eq.f32.partialorder %v201, 8.507059e+37
    %v203 = vand.u32 %v191, 2147483648
    %v204 = vor.u32 1.1754944e-38, %v203
    %v205 = vsel %vm202, %v204, %v200
    %v206 = vmul.f32 1.0, %v205
    %v207 = vadd.f32 %v125, %v165
    %v208 = vxor.u32 %v207, 2147483648
    %v209 = vmul.f32 %v208, 1.442695
    %v210 = vpow.pop %v209
    %v211 = vadd.f32 %v210, 1.0
    %v212 = vrcp.pop %v211
    %v213 = vmul.f32 %v211, %v212
    %v214 = vsub.f32 1.0, %v213
    %v215 = vmul.f32 %v212, %v214
    %v216 = vadd.f32 %v212, %v215
    %vm217 = vweird.f32 %v211
    %vm218 = vweird.f32 %v212
    %vm219 = vmor %vm217, %vm218
    %v220 = vsel %vm219, %v212, %v216
    %v221 = vand.u32 2147483647, %v211
    %vm222 = vcmp.eq.f32.partialorder %v221, 8.507059e+37
    %v223 = vand.u32 %v211, 2147483648
    %v224 = vor.u32 1.1754944e-38, %v223
    %v225 = vsel %vm222, %v224, %v220
    %v226 = vmul.f32 1.0, %v225
    %v228 = vperm.slane %v122, 0
    %v230 = vadd.f32 %v185, %v228
    %v231 = vmul.f32 %v206, %v230
    %v232 = vadd.f32 %v126, %v231
    %v233 = vtanh.pop %v232
    %v234 = vsub.f32 1.0, %v226
    %v235 = vmul.f32 %v234, %v233
    %v236 = vmul.f32 %v226, %v123
    %v237 = vadd.f32 %v235, %v236
    %238 = vst [vmem:[%s66] sm:$0x3] %v237
    %v239 = vld [vmem:[%s58] sm:$0xc]
    %v240 = vld [vmem:[%s58 + $0x8] sm:$0xc]
    %v241 = vld [vmem:[%s58 + $0x10] sm:$0xc]
    %242 = vmatpush.msra.mxu0 %v119
    %243 = vmatpush.msra.mxu0 %v116
    %244 = vmatpush.msra.mxu0 %v113
    %245 = vmatpush.msra.mxu0 %v110
    %246 = vmatpush.msra.mxu0 %v107
    %247 = vmatpush.msra.mxu0 %v104
    %248 = vmatpush.msra.mxu0 %v101
    %249 = vmatpush.msra.mxu0 %v98
    %250 = vmatpush.msra.mxu0 %v95
    %251 = vmatpush.msra.mxu0 %v92
    %252 = vmatpush.msra.mxu0 %v89
    %253 = vmatpush.msra.mxu0 %v86
    %254 = vmatpush.msra.mxu0 %v83
    %255 = vmatpush.msra.mxu0 %v80
    %256 = vmatpush.msra.mxu0 %v77
    %257 = vmatpush.msra.mxu0 %v74
    %258 = vmatmul.f32.gmra.mxu0 %v237
    %v259 = vpop.f32.mrf.mxu0
    %v260 = vadd.f32 0.0, %v259
    %261 = vdwg.mxu0
    %262 = vmatpush.msra.mxu0 %v120
    %263 = vmatpush.msra.mxu0 %v117
    %264 = vmatpush.msra.mxu0 %v114
    %265 = vmatpush.msra.mxu0 %v111
    %266 = vmatpush.msra.mxu0 %v108
    %267 = vmatpush.msra.mxu0 %v105
    %268 = vmatpush.msra.mxu0 %v102
    %269 = vmatpush.msra.mxu0 %v99
    %270 = vmatpush.msra.mxu0 %v96
    %271 = vmatpush.msra.mxu0 %v93
    %272 = vmatpush.msra.mxu0 %v90
    %273 = vmatpush.msra.mxu0 %v87
    %274 = vmatpush.msra.mxu0 %v84
    %275 = vmatpush.msra.mxu0 %v81
    %276 = vmatpush.msra.mxu0 %v78
    %277 = vmatpush.msra.mxu0 %v75
    %278 = vmatmul.f32.gmra.mxu0 %v237
    %v279 = vpop.f32.mrf.mxu0
    %v280 = vadd.f32 0.0, %v279
    %281 = vdwg.mxu0
    %282 = vmatpush.msra.mxu0 %v121
    %283 = vmatpush.msra.mxu0 %v118
    %284 = vmatpush.msra.mxu0 %v115
    %285 = vmatpush.msra.mxu0 %v112
    %286 = vmatpush.msra.mxu0 %v109
    %287 = vmatpush.msra.mxu0 %v106
    %288 = vmatpush.msra.mxu0 %v103
    %289 = vmatpush.msra.mxu0 %v100
    %290 = vmatpush.msra.mxu0 %v97
    %291 = vmatpush.msra.mxu0 %v94
    %292 = vmatpush.msra.mxu0 %v91
    %293 = vmatpush.msra.mxu0 %v88
    %294 = vmatpush.msra.mxu0 %v85
    %295 = vmatpush.msra.mxu0 %v82
    %296 = vmatpush.msra.mxu0 %v79
    %297 = vmatpush.msra.mxu0 %v76
    %298 = vmatmul.f32.gmra.mxu0 %v237
    %v299 = vpop.f32.mrf.mxu0
    %v300 = vadd.f32 0.0, %v299
    %301 = vdwg.mxu0
    %v303 = vrot.slane %v260, 6
    %v305 = vadd.f32 %v239, %v303
    %v306 = vxor.u32 %v305, 2147483648
    %v307 = vmul.f32 %v306, 1.442695
    %v308 = vpow.pop %v307
    %v309 = vadd.f32 %v308, 1.0
    %v310 = vrcp.pop %v309
    %v311 = vmul.f32 %v309, %v310
    %v312 = vsub.f32 1.0, %v311
    %v313 = vmul.f32 %v310, %v312
    %v314 = vadd.f32 %v310, %v313
    %vm315 = vweird.f32 %v309
    %vm316 = vweird.f32 %v310
    %vm317 = vmor %vm315, %vm316
    %v318 = vsel %vm317, %v310, %v314
    %v319 = vand.u32 2147483647, %v309
    %vm320 = vcmp.eq.f32.partialorder %v319, 8.507059e+37
    %v321 = vand.u32 %v309, 2147483648
    %v322 = vor.u32 1.1754944e-38, %v321
    %v323 = vsel %vm320, %v322, %v318
    %v324 = vmul.f32 1.0, %v323
    %v326 = vrot.slane %v280, 6
    %v328 = vadd.f32 %v240, %v326
    %v329 = vxor.u32 %v328, 2147483648
    %v330 = vmul.f32 %v329, 1.442695
    %v331 = vpow.pop %v330
    %v332 = vadd.f32 %v331, 1.0
    %v333 = vrcp.pop %v332
    %v334 = vmul.f32 %v332, %v333
    %v335 = vsub.f32 1.0, %v334
    %v336 = vmul.f32 %v333, %v335
    %v337 = vadd.f32 %v333, %v336
    %vm338 = vweird.f32 %v332
    %vm339 = vweird.f32 %v333
    %vm340 = vmor %vm338, %vm339
    %v341 = vsel %vm340, %v333, %v337
    %v342 = vand.u32 2147483647, %v332
    %vm343 = vcmp.eq.f32.partialorder %v342, 8.507059e+37
    %v344 = vand.u32 %v332, 2147483648
    %v345 = vor.u32 1.1754944e-38, %v344
    %v346 = vsel %vm343, %v345, %v341
    %v347 = vmul.f32 1.0, %v346
    %v348 = vadd.f32 %v300, %v228
    %v350 = vrot.slane %v348, 6
    %v352 = vmul.f32 %v324, %v350
    %v353 = vadd.f32 %v241, %v352
    %v354 = vtanh.pop %v353
    %v355 = vsub.f32 1.0, %v347
    %v356 = vmul.f32 %v355, %v354
    %v358 = vrot.slane %v237, 6
    %v360 = vmul.f32 %v347, %v358
    %v361 = vadd.f32 %v356, %v360
    %362 = vst [vmem:[%s66] sm:$0xc] %v361
    %v363 = vld [vmem:[%s58] sm:$0x30]
    %v364 = vld [vmem:[%s58 + $0x8] sm:$0x30]
    %v365 = vld [vmem:[%s58 + $0x10] sm:$0x30]
    %v367 = vrot.slane %v361, 2
    %369 = vmatpush.msra.mxu0 %v119
    %370 = vmatpush.msra.mxu0 %v116
    %371 = vmatpush.msra.mxu0 %v113
    %372 = vmatpush.msra.mxu0 %v110
    %373 = vmatpush.msra.mxu0 %v107
    %374 = vmatpush.msra.mxu0 %v104
    %375 = vmatpush.msra.mxu0 %v101
    %376 = vmatpush.msra.mxu0 %v98
    %377 = vmatpush.msra.mxu0 %v95
    %378 = vmatpush.msra.mxu0 %v92
    %379 = vmatpush.msra.mxu0 %v89
    %380 = vmatpush.msra.mxu0 %v86
    %381 = vmatpush.msra.mxu0 %v83
    %382 = vmatpush.msra.mxu0 %v80
    %383 = vmatpush.msra.mxu0 %v77
    %384 = vmatpush.msra.mxu0 %v74
    %385 = vmatmul.f32.gmra.mxu0 %v367
    %v386 = vpop.f32.mrf.mxu0
    %v387 = vadd.f32 0.0, %v386
    %388 = vdwg.mxu0
    %389 = vmatpush.msra.mxu0 %v120
    %390 = vmatpush.msra.mxu0 %v117
    %391 = vmatpush.msra.mxu0 %v114
    %392 = vmatpush.msra.mxu0 %v111
    %393 = vmatpush.msra.mxu0 %v108
    %394 = vmatpush.msra.mxu0 %v105
    %395 = vmatpush.msra.mxu0 %v102
    %396 = vmatpush.msra.mxu0 %v99
    %397 = vmatpush.msra.mxu0 %v96
    %398 = vmatpush.msra.mxu0 %v93
    %399 = vmatpush.msra.mxu0 %v90
    %400 = vmatpush.msra.mxu0 %v87
    %401 = vmatpush.msra.mxu0 %v84
    %402 = vmatpush.msra.mxu0 %v81
    %403 = vmatpush.msra.mxu0 %v78
    %404 = vmatpush.msra.mxu0 %v75
    %405 = vmatmul.f32.gmra.mxu0 %v367
    %v406 = vpop.f32.mrf.mxu0
    %v407 = vadd.f32 0.0, %v406
    %408 = vdwg.mxu0
    %409 = vmatpush.msra.mxu0 %v121
    %410 = vmatpush.msra.mxu0 %v118
    %411 = vmatpush.msra.mxu0 %v115
    %412 = vmatpush.msra.mxu0 %v112
    %413 = vmatpush.msra.mxu0 %v109
    %414 = vmatpush.msra.mxu0 %v106
    %415 = vmatpush.msra.mxu0 %v103
    %416 = vmatpush.msra.mxu0 %v100
    %417 = vmatpush.msra.mxu0 %v97
    %418 = vmatpush.msra.mxu0 %v94
    %419 = vmatpush.msra.mxu0 %v91
    %420 = vmatpush.msra.mxu0 %v88
    %421 = vmatpush.msra.mxu0 %v85
    %422 = vmatpush.msra.mxu0 %v82
    %423 = vmatpush.msra.mxu0 %v79
    %424 = vmatpush.msra.mxu0 %v76
    %425 = vmatmul.f32.gmra.mxu0 %v367
    %v426 = vpop.f32.mrf.mxu0
    %v427 = vadd.f32 0.0, %v426
    %428 = vdwg.mxu0
    %v430 = vrot.slane %v387, 4
    %v432 = vadd.f32 %v363, %v430
    %v433 = vxor.u32 %v432, 2147483648
    %v434 = vmul.f32 %v433, 1.442695
    %v435 = vpow.pop %v434
    %v436 = vadd.f32 %v435, 1.0
    %v437 = vrcp.pop %v436
    %v438 = vmul.f32 %v436, %v437
    %v439 = vsub.f32 1.0, %v438
    %v440 = vmul.f32 %v437, %v439
    %v441 = vadd.f32 %v437, %v440
    %vm442 = vweird.f32 %v436
    %vm443 = vweird.f32 %v437
    %vm444 = vmor %vm442, %vm443
    %v445 = vsel %vm444, %v437, %v441
    %v446 = vand.u32 2147483647, %v436
    %vm447 = vcmp.eq.f32.partialorder %v446, 8.507059e+37
    %v448 = vand.u32 %v436, 2147483648
    %v449 = vor.u32 1.1754944e-38, %v448
    %v450 = vsel %vm447, %v449, %v445
    %v451 = vmul.f32 1.0, %v450
    %v453 = vrot.slane %v407, 4
    %v455 = vadd.f32 %v364, %v453
    %v456 = vxor.u32 %v455, 2147483648
    %v457 = vmul.f32 %v456, 1.442695
    %v458 = vpow.pop %v457
    %v459 = vadd.f32 %v458, 1.0
    %v460 = vrcp.pop %v459
    %v461 = vmul.f32 %v459, %v460
    %v462 = vsub.f32 1.0, %v461
    %v463 = vmul.f32 %v460, %v462
    %v464 = vadd.f32 %v460, %v463
    %vm465 = vweird.f32 %v459
    %vm466 = vweird.f32 %v460
    %vm467 = vmor %vm465, %vm466
    %v468 = vsel %vm467, %v460, %v464
    %v469 = vand.u32 2147483647, %v459
    %vm470 = vcmp.eq.f32.partialorder %v469, 8.507059e+37
    %v471 = vand.u32 %v459, 2147483648
    %v472 = vor.u32 1.1754944e-38, %v471
    %v473 = vsel %vm470, %v472, %v468
    %v474 = vmul.f32 1.0, %v473
    %v475 = vadd.f32 %v427, %v228
    %v477 = vrot.slane %v475, 4
    %v479 = vmul.f32 %v451, %v477
    %v480 = vadd.f32 %v365, %v479
    %v481 = vtanh.pop %v480
    %v482 = vsub.f32 1.0, %v474
    %v483 = vmul.f32 %v482, %v481
    %v484 = vrot.slane %v361, 6
    %v486 = vmul.f32 %v474, %v484
    %v487 = vadd.f32 %v483, %v486
    %488 = vst [vmem:[%s66] sm:$0x30] %v487
    %v489 = vld [vmem:[%s58] sm:$0xc0]
    %v490 = vld [vmem:[%s58 + $0x8] sm:$0xc0]
    %v491 = vld [vmem:[%s58 + $0x10] sm:$0xc0]
    %v493 = vrot.slane %v487, 4
    %495 = vmatpush.msra.mxu0 %v119
    %496 = vmatpush.msra.mxu0 %v116
    %497 = vmatpush.msra.mxu0 %v113
    %498 = vmatpush.msra.mxu0 %v110
    %499 = vmatpush.msra.mxu0 %v107
    %500 = vmatpush.msra.mxu0 %v104
    %501 = vmatpush.msra.mxu0 %v101
    %502 = vmatpush.msra.mxu0 %v98
    %503 = vmatpush.msra.mxu0 %v95
    %504 = vmatpush.msra.mxu0 %v92
    %505 = vmatpush.msra.mxu0 %v89
    %506 = vmatpush.msra.mxu0 %v86
    %507 = vmatpush.msra.mxu0 %v83
    %508 = vmatpush.msra.mxu0 %v80
    %509 = vmatpush.msra.mxu0 %v77
    %510 = vmatpush.msra.mxu0 %v74
    %511 = vmatmul.f32.gmra.mxu0 %v493
    %v512 = vpop.f32.mrf.mxu0
    %v513 = vadd.f32 0.0, %v512
    %514 = vdwg.mxu0
    %515 = vmatpush.msra.mxu0 %v120
    %516 = vmatpush.msra.mxu0 %v117
    %517 = vmatpush.msra.mxu0 %v114
    %518 = vmatpush.msra.mxu0 %v111
    %519 = vmatpush.msra.mxu0 %v108
    %520 = vmatpush.msra.mxu0 %v105
    %521 = vmatpush.msra.mxu0 %v102
    %522 = vmatpush.msra.mxu0 %v99
    %523 = vmatpush.msra.mxu0 %v96
    %524 = vmatpush.msra.mxu0 %v93
    %525 = vmatpush.msra.mxu0 %v90
    %526 = vmatpush.msra.mxu0 %v87
    %527 = vmatpush.msra.mxu0 %v84
    %528 = vmatpush.msra.mxu0 %v81
    %529 = vmatpush.msra.mxu0 %v78
    %530 = vmatpush.msra.mxu0 %v75
    %531 = vmatmul.f32.gmra.mxu0 %v493
    %v532 = vpop.f32.mrf.mxu0
    %v533 = vadd.f32 0.0, %v532
    %534 = vdwg.mxu0
    %535 = vmatpush.msra.mxu0 %v121
    %536 = vmatpush.msra.mxu0 %v118
    %537 = vmatpush.msra.mxu0 %v115
    %538 = vmatpush.msra.mxu0 %v112
    %539 = vmatpush.msra.mxu0 %v109
    %540 = vmatpush.msra.mxu0 %v106
    %541 = vmatpush.msra.mxu0 %v103
    %542 = vmatpush.msra.mxu0 %v100
    %543 = vmatpush.msra.mxu0 %v97
    %544 = vmatpush.msra.mxu0 %v94
    %545 = vmatpush.msra.mxu0 %v91
    %546 = vmatpush.msra.mxu0 %v88
    %547 = vmatpush.msra.mxu0 %v85
    %548 = vmatpush.msra.mxu0 %v82
    %549 = vmatpush.msra.mxu0 %v79
    %550 = vmatpush.msra.mxu0 %v76
    %551 = vmatmul.f32.gmra.mxu0 %v493
    %v552 = vpop.f32.mrf.mxu0
    %v553 = vadd.f32 0.0, %v552
    %554 = vdwg.mxu0
    %v556 = vrot.slane %v513, 2
    %v558 = vadd.f32 %v489, %v556
    %v559 = vxor.u32 %v558, 2147483648
    %v560 = vmul.f32 %v559, 1.442695
    %v561 = vpow.pop %v560
    %v562 = vadd.f32 %v561, 1.0
    %v563 = vrcp.pop %v562
    %v564 = vmul.f32 %v562, %v563
    %v565 = vsub.f32 1.0, %v564
    %v566 = vmul.f32 %v563, %v565
    %v567 = vadd.f32 %v563, %v566
    %vm568 = vweird.f32 %v562
    %vm569 = vweird.f32 %v563
    %vm570 = vmor %vm568, %vm569
    %v571 = vsel %vm570, %v563, %v567
    %v572 = vand.u32 2147483647, %v562
    %vm573 = vcmp.eq.f32.partialorder %v572, 8.507059e+37
    %v574 = vand.u32 %v562, 2147483648
    %v575 = vor.u32 1.1754944e-38, %v574
    %v576 = vsel %vm573, %v575, %v571
    %v577 = vmul.f32 1.0, %v576
    %v579 = vrot.slane %v533, 2
    %v581 = vadd.f32 %v490, %v579
    %v582 = vxor.u32 %v581, 2147483648
    %v583 = vmul.f32 %v582, 1.442695
    %v584 = vpow.pop %v583
    %v585 = vadd.f32 %v584, 1.0
    %v586 = vrcp.pop %v585
    %v587 = vmul.f32 %v585, %v586
    %v588 = vsub.f32 1.0, %v587
    %v589 = vmul.f32 %v586, %v588
    %v590 = vadd.f32 %v586, %v589
    %vm591 = vweird.f32 %v585
    %vm592 = vweird.f32 %v586
    %vm593 = vmor %vm591, %vm592
    %v594 = vsel %vm593, %v586, %v590
    %v595 = vand.u32 2147483647, %v585
    %vm596 = vcmp.eq.f32.partialorder %v595, 8.507059e+37
    %v597 = vand.u32 %v585, 2147483648
    %v598 = vor.u32 1.1754944e-38, %v597
    %v599 = vsel %vm596, %v598, %v594
    %v600 = vmul.f32 1.0, %v599
    %v601 = vadd.f32 %v553, %v228
    %v603 = vrot.slane %v601, 2
    %v605 = vmul.f32 %v577, %v603
    %v606 = vadd.f32 %v491, %v605
    %v607 = vtanh.pop %v606
    %v608 = vsub.f32 1.0, %v600
    %v609 = vmul.f32 %v608, %v607
    %v610 = vrot.slane %v487, 6
    %v612 = vmul.f32 %v600, %v610
    %v613 = vadd.f32 %v609, %v612
    %614 = vst [vmem:[%s66] sm:$0xc0] %v613
    %v615 = vld [vmem:[%s58 + $0x18] sm:$0x3]
    %v616 = vld [vmem:[%s58 + $0x20] sm:$0x3]
    %v617 = vld [vmem:[%s58 + $0x28] sm:$0x3]
    %v619 = vrot.slane %v613, 6
    %621 = vmatpush.msra.mxu0 %v119
    %622 = vmatpush.msra.mxu0 %v116
    %623 = vmatpush.msra.mxu0 %v113
    %624 = vmatpush.msra.mxu0 %v110
    %625 = vmatpush.msra.mxu0 %v107
    %626 = vmatpush.msra.mxu0 %v104
    %627 = vmatpush.msra.mxu0 %v101
    %628 = vmatpush.msra.mxu0 %v98
    %629 = vmatpush.msra.mxu0 %v95
    %630 = vmatpush.msra.mxu0 %v92
    %631 = vmatpush.msra.mxu0 %v89
    %632 = vmatpush.msra.mxu0 %v86
    %633 = vmatpush.msra.mxu0 %v83
    %634 = vmatpush.msra.mxu0 %v80
    %635 = vmatpush.msra.mxu0 %v77
    %636 = vmatpush.msra.mxu0 %v74
    %637 = vmatmul.f32.gmra.mxu0 %v619
    %v638 = vpop.f32.mrf.mxu0
    %v639 = vadd.f32 0.0, %v638
    %640 = vdwg.mxu0
    %641 = vmatpush.msra.mxu0 %v120
    %642 = vmatpush.msra.mxu0 %v117
    %643 = vmatpush.msra.mxu0 %v114
    %644 = vmatpush.msra.mxu0 %v111
    %645 = vmatpush.msra.mxu0 %v108
    %646 = vmatpush.msra.mxu0 %v105
    %647 = vmatpush.msra.mxu0 %v102
    %648 = vmatpush.msra.mxu0 %v99
    %649 = vmatpush.msra.mxu0 %v96
    %650 = vmatpush.msra.mxu0 %v93
    %651 = vmatpush.msra.mxu0 %v90
    %652 = vmatpush.msra.mxu0 %v87
    %653 = vmatpush.msra.mxu0 %v84
    %654 = vmatpush.msra.mxu0 %v81
    %655 = vmatpush.msra.mxu0 %v78
    %656 = vmatpush.msra.mxu0 %v75
    %657 = vmatmul.f32.gmra.mxu0 %v619
    %v658 = vpop.f32.mrf.mxu0
    %v659 = vadd.f32 0.0, %v658
    %660 = vdwg.mxu0
    %661 = vmatpush.msra.mxu0 %v121
    %662 = vmatpush.msra.mxu0 %v118
    %663 = vmatpush.msra.mxu0 %v115
    %664 = vmatpush.msra.mxu0 %v112
    %665 = vmatpush.msra.mxu0 %v109
    %666 = vmatpush.msra.mxu0 %v106
    %667 = vmatpush.msra.mxu0 %v103
    %668 = vmatpush.msra.mxu0 %v100
    %669 = vmatpush.msra.mxu0 %v97
    %670 = vmatpush.msra.mxu0 %v94
    %671 = vmatpush.msra.mxu0 %v91
    %672 = vmatpush.msra.mxu0 %v88
    %673 = vmatpush.msra.mxu0 %v85
    %674 = vmatpush.msra.mxu0 %v82
    %675 = vmatpush.msra.mxu0 %v79
    %676 = vmatpush.msra.mxu0 %v76
    %677 = vmatmul.f32.gmra.mxu0 %v619
    %v678 = vpop.f32.mrf.mxu0
    %v679 = vadd.f32 0.0, %v678
    %680 = vdwg.mxu0
    %v681 = vadd.f32 %v615, %v639
    %v682 = vxor.u32 %v681, 2147483648
    %v683 = vmul.f32 %v682, 1.442695
    %v684 = vpow.pop %v683
    %v685 = vadd.f32 %v684, 1.0
    %v686 = vrcp.pop %v685
    %v687 = vmul.f32 %v685, %v686
    %v688 = vsub.f32 1.0, %v687
    %v689 = vmul.f32 %v686, %v688
    %v690 = vadd.f32 %v686, %v689
    %vm691 = vweird.f32 %v685
    %vm692 = vweird.f32 %v686
    %vm693 = vmor %vm691, %vm692
    %v694 = vsel %vm693, %v686, %v690
    %v695 = vand.u32 2147483647, %v685
    %vm696 = vcmp.eq.f32.partialorder %v695, 8.507059e+37
    %v697 = vand.u32 %v685, 2147483648
    %v698 = vor.u32 1.1754944e-38, %v697
    %v699 = vsel %vm696, %v698, %v694
    %v700 = vmul.f32 1.0, %v699
    %v701 = vadd.f32 %v616, %v659
    %v702 = vxor.u32 %v701, 2147483648
    %v703 = vmul.f32 %v702, 1.442695
    %v704 = vpow.pop %v703
    %v705 = vadd.f32 %v704, 1.0
    %v706 = vrcp.pop %v705
    %v707 = vmul.f32 %v705, %v706
    %v708 = vsub.f32 1.0, %v707
    %v709 = vmul.f32 %v706, %v708
    %v710 = vadd.f32 %v706, %v709
    %vm711 = vweird.f32 %v705
    %vm712 = vweird.f32 %v706
    %vm713 = vmor %vm711, %vm712
    %v714 = vsel %vm713, %v706, %v710
    %v715 = vand.u32 2147483647, %v705
    %vm716 = vcmp.eq.f32.partialorder %v715, 8.507059e+37
    %v717 = vand.u32 %v705, 2147483648
    %v718 = vor.u32 1.1754944e-38, %v717
    %v719 = vsel %vm716, %v718, %v714
    %v720 = vmul.f32 1.0, %v719
    %v721 = vadd.f32 %v679, %v228
    %v722 = vmul.f32 %v700, %v721
    %v723 = vadd.f32 %v617, %v722
    %v724 = vtanh.pop %v723
    %v725 = vsub.f32 1.0, %v720
    %v726 = vmul.f32 %v725, %v724
    %v727 = vmul.f32 %v720, %v619
    %v728 = vadd.f32 %v726, %v727
    %729 = vst [vmem:[%s66 + $0x8] sm:$0x3] %v728
    %v730 = vld [vmem:[%s58 + $0x18] sm:$0xc]
    %v731 = vld [vmem:[%s58 + $0x20] sm:$0xc]
    %v732 = vld [vmem:[%s58 + $0x28] sm:$0xc]
    %733 = vmatpush.msra.mxu0 %v119
    %734 = vmatpush.msra.mxu0 %v116
    %735 = vmatpush.msra.mxu0 %v113
    %736 = vmatpush.msra.mxu0 %v110
    %737 = vmatpush.msra.mxu0 %v107
    %738 = vmatpush.msra.mxu0 %v104
    %739 = vmatpush.msra.mxu0 %v101
    %740 = vmatpush.msra.mxu0 %v98
    %741 = vmatpush.msra.mxu0 %v95
    %742 = vmatpush.msra.mxu0 %v92
    %743 = vmatpush.msra.mxu0 %v89
    %744 = vmatpush.msra.mxu0 %v86
    %745 = vmatpush.msra.mxu0 %v83
    %746 = vmatpush.msra.mxu0 %v80
    %747 = vmatpush.msra.mxu0 %v77
    %748 = vmatpush.msra.mxu0 %v74
    %749 = vmatmul.f32.gmra.mxu0 %v728
    %v750 = vpop.f32.mrf.mxu0
    %v751 = vadd.f32 0.0, %v750
    %752 = vdwg.mxu0
    %753 = vmatpush.msra.mxu0 %v120
    %754 = vmatpush.msra.mxu0 %v117
    %755 = vmatpush.msra.mxu0 %v114
    %756 = vmatpush.msra.mxu0 %v111
    %757 = vmatpush.msra.mxu0 %v108
    %758 = vmatpush.msra.mxu0 %v105
    %759 = vmatpush.msra.mxu0 %v102
    %760 = vmatpush.msra.mxu0 %v99
    %761 = vmatpush.msra.mxu0 %v96
    %762 = vmatpush.msra.mxu0 %v93
    %763 = vmatpush.msra.mxu0 %v90
    %764 = vmatpush.msra.mxu0 %v87
    %765 = vmatpush.msra.mxu0 %v84
    %766 = vmatpush.msra.mxu0 %v81
    %767 = vmatpush.msra.mxu0 %v78
    %768 = vmatpush.msra.mxu0 %v75
    %769 = vmatmul.f32.gmra.mxu0 %v728
    %v770 = vpop.f32.mrf.mxu0
    %v771 = vadd.f32 0.0, %v770
    %772 = vdwg.mxu0
    %773 = vmatpush.msra.mxu0 %v121
    %774 = vmatpush.msra.mxu0 %v118
    %775 = vmatpush.msra.mxu0 %v115
    %776 = vmatpush.msra.mxu0 %v112
    %777 = vmatpush.msra.mxu0 %v109
    %778 = vmatpush.msra.mxu0 %v106
    %779 = vmatpush.msra.mxu0 %v103
    %780 = vmatpush.msra.mxu0 %v100
    %781 = vmatpush.msra.mxu0 %v97
    %782 = vmatpush.msra.mxu0 %v94
    %783 = vmatpush.msra.mxu0 %v91
    %784 = vmatpush.msra.mxu0 %v88
    %785 = vmatpush.msra.mxu0 %v85
    %786 = vmatpush.msra.mxu0 %v82
    %787 = vmatpush.msra.mxu0 %v79
    %788 = vmatpush.msra.mxu0 %v76
    %789 = vmatmul.f32.gmra.mxu0 %v728
    %v790 = vpop.f32.mrf.mxu0
    %v791 = vadd.f32 0.0, %v790
    %792 = vdwg.mxu0
    %v794 = vrot.slane %v751, 6
    %v796 = vadd.f32 %v730, %v794
    %v797 = vxor.u32 %v796, 2147483648
    %v798 = vmul.f32 %v797, 1.442695
    %v799 = vpow.pop %v798
    %v800 = vadd.f32 %v799, 1.0
    %v801 = vrcp.pop %v800
    %v802 = vmul.f32 %v800, %v801
    %v803 = vsub.f32 1.0, %v802
    %v804 = vmul.f32 %v801, %v803
    %v805 = vadd.f32 %v801, %v804
    %vm806 = vweird.f32 %v800
    %vm807 = vweird.f32 %v801
    %vm808 = vmor %vm806, %vm807
    %v809 = vsel %vm808, %v801, %v805
    %v810 = vand.u32 2147483647, %v800
    %vm811 = vcmp.eq.f32.partialorder %v810, 8.507059e+37
    %v812 = vand.u32 %v800, 2147483648
    %v813 = vor.u32 1.1754944e-38, %v812
    %v814 = vsel %vm811, %v813, %v809
    %v815 = vmul.f32 1.0, %v814
    %v817 = vrot.slane %v771, 6
    %v819 = vadd.f32 %v731, %v817
    %v820 = vxor.u32 %v819, 2147483648
    %v821 = vmul.f32 %v820, 1.442695
    %v822 = vpow.pop %v821
    %v823 = vadd.f32 %v822, 1.0
    %v824 = vrcp.pop %v823
    %v825 = vmul.f32 %v823, %v824
    %v826 = vsub.f32 1.0, %v825
    %v827 = vmul.f32 %v824, %v826
    %v828 = vadd.f32 %v824, %v827
    %vm829 = vweird.f32 %v823
    %vm830 = vweird.f32 %v824
    %vm831 = vmor %vm829, %vm830
    %v832 = vsel %vm831, %v824, %v828
    %v833 = vand.u32 2147483647, %v823
    %vm834 = vcmp.eq.f32.partialorder %v833, 8.507059e+37
    %v835 = vand.u32 %v823, 2147483648
    %v836 = vor.u32 1.1754944e-38, %v835
    %v837 = vsel %vm834, %v836, %v832
    %v838 = vmul.f32 1.0, %v837
    %v839 = vadd.f32 %v791, %v228
    %v841 = vrot.slane %v839, 6
    %v843 = vmul.f32 %v815, %v841
    %v844 = vadd.f32 %v732, %v843
    %v845 = vtanh.pop %v844
    %v846 = vsub.f32 1.0, %v838
    %v847 = vmul.f32 %v846, %v845
    %v849 = vrot.slane %v728, 6
    %v851 = vmul.f32 %v838, %v849
    %v852 = vadd.f32 %v847, %v851
    %853 = vst [vmem:[%s66 + $0x8] sm:$0xc] %v852
    %v854 = vld [vmem:[%s58 + $0x18] sm:$0x30]
    %v855 = vld [vmem:[%s58 + $0x20] sm:$0x30]
    %v856 = vld [vmem:[%s58 + $0x28] sm:$0x30]
    %v858 = vrot.slane %v852, 2
    %860 = vmatpush.msra.mxu0 %v119
    %861 = vmatpush.msra.mxu0 %v116
    %862 = vmatpush.msra.mxu0 %v113
    %863 = vmatpush.msra.mxu0 %v110
    %864 = vmatpush.msra.mxu0 %v107
    %865 = vmatpush.msra.mxu0 %v104
    %866 = vmatpush.msra.mxu0 %v101
    %867 = vmatpush.msra.mxu0 %v98
    %868 = vmatpush.msra.mxu0 %v95
    %869 = vmatpush.msra.mxu0 %v92
    %870 = vmatpush.msra.mxu0 %v89
    %871 = vmatpush.msra.mxu0 %v86
    %872 = vmatpush.msra.mxu0 %v83
    %873 = vmatpush.msra.mxu0 %v80
    %874 = vmatpush.msra.mxu0 %v77
    %875 = vmatpush.msra.mxu0 %v74
    %876 = vmatmul.f32.gmra.mxu0 %v858
    %v877 = vpop.f32.mrf.mxu0
    %v878 = vadd.f32 0.0, %v877
    %879 = vdwg.mxu0
    %880 = vmatpush.msra.mxu0 %v120
    %881 = vmatpush.msra.mxu0 %v117
    %882 = vmatpush.msra.mxu0 %v114
    %883 = vmatpush.msra.mxu0 %v111
    %884 = vmatpush.msra.mxu0 %v108
    %885 = vmatpush.msra.mxu0 %v105
    %886 = vmatpush.msra.mxu0 %v102
    %887 = vmatpush.msra.mxu0 %v99
    %888 = vmatpush.msra.mxu0 %v96
    %889 = vmatpush.msra.mxu0 %v93
    %890 = vmatpush.msra.mxu0 %v90
    %891 = vmatpush.msra.mxu0 %v87
    %892 = vmatpush.msra.mxu0 %v84
    %893 = vmatpush.msra.mxu0 %v81
    %894 = vmatpush.msra.mxu0 %v78
    %895 = vmatpush.msra.mxu0 %v75
    %896 = vmatmul.f32.gmra.mxu0 %v858
    %v897 = vpop.f32.mrf.mxu0
    %v898 = vadd.f32 0.0, %v897
    %899 = vdwg.mxu0
    %900 = vmatpush.msra.mxu0 %v121
    %901 = vmatpush.msra.mxu0 %v118
    %902 = vmatpush.msra.mxu0 %v115
    %903 = vmatpush.msra.mxu0 %v112
    %904 = vmatpush.msra.mxu0 %v109
    %905 = vmatpush.msra.mxu0 %v106
    %906 = vmatpush.msra.mxu0 %v103
    %907 = vmatpush.msra.mxu0 %v100
    %908 = vmatpush.msra.mxu0 %v97
    %909 = vmatpush.msra.mxu0 %v94
    %910 = vmatpush.msra.mxu0 %v91
    %911 = vmatpush.msra.mxu0 %v88
    %912 = vmatpush.msra.mxu0 %v85
    %913 = vmatpush.msra.mxu0 %v82
    %914 = vmatpush.msra.mxu0 %v79
    %915 = vmatpush.msra.mxu0 %v76
    %916 = vmatmul.f32.gmra.mxu0 %v858
    %v917 = vpop.f32.mrf.mxu0
    %v918 = vadd.f32 0.0, %v917
    %919 = vdwg.mxu0
    %v921 = vrot.slane %v878, 4
    %v923 = vadd.f32 %v854, %v921
    %v924 = vxor.u32 %v923, 2147483648
    %v925 = vmul.f32 %v924, 1.442695
    %v926 = vpow.pop %v925
    %v927 = vadd.f32 %v926, 1.0
    %v928 = vrcp.pop %v927
    %v929 = vmul.f32 %v927, %v928
    %v930 = vsub.f32 1.0, %v929
    %v931 = vmul.f32 %v928, %v930
    %v932 = vadd.f32 %v928, %v931
    %vm933 = vweird.f32 %v927
    %vm934 = vweird.f32 %v928
    %vm935 = vmor %vm933, %vm934
    %v936 = vsel %vm935, %v928, %v932
    %v937 = vand.u32 2147483647, %v927
    %vm938 = vcmp.eq.f32.partialorder %v937, 8.507059e+37
    %v939 = vand.u32 %v927, 2147483648
    %v940 = vor.u32 1.1754944e-38, %v939
    %v941 = vsel %vm938, %v940, %v936
    %v942 = vmul.f32 1.0, %v941
    %v944 = vrot.slane %v898, 4
    %v946 = vadd.f32 %v855, %v944
    %v947 = vxor.u32 %v946, 2147483648
    %v948 = vmul.f32 %v947, 1.442695
    %v949 = vpow.pop %v948
    %v950 = vadd.f32 %v949, 1.0
    %v951 = vrcp.pop %v950
    %v952 = vmul.f32 %v950, %v951
    %v953 = vsub.f32 1.0, %v952
    %v954 = vmul.f32 %v951, %v953
    %v955 = vadd.f32 %v951, %v954
    %vm956 = vweird.f32 %v950
    %vm957 = vweird.f32 %v951
    %vm958 = vmor %vm956, %vm957
    %v959 = vsel %vm958, %v951, %v955
    %v960 = vand.u32 2147483647, %v950
    %vm961 = vcmp.eq.f32.partialorder %v960, 8.507059e+37
    %v962 = vand.u32 %v950, 2147483648
    %v963 = vor.u32 1.1754944e-38, %v962
    %v964 = vsel %vm961, %v963, %v959
    %v965 = vmul.f32 1.0, %v964
    %v966 = vadd.f32 %v918, %v228
    %v968 = vrot.slane %v966, 4
    %v970 = vmul.f32 %v942, %v968
    %v971 = vadd.f32 %v856, %v970
    %v972 = vtanh.pop %v971
    %v973 = vsub.f32 1.0, %v965
    %v974 = vmul.f32 %v973, %v972
    %v975 = vrot.slane %v852, 6
    %v977 = vmul.f32 %v965, %v975
    %v978 = vadd.f32 %v974, %v977
    %979 = vst [vmem:[%s66 + $0x8] sm:$0x30] %v978
    %v980 = vld [vmem:[%s58 + $0x18] sm:$0xc0]
    %v981 = vld [vmem:[%s58 + $0x20] sm:$0xc0]
    %v982 = vld [vmem:[%s58 + $0x28] sm:$0xc0]
    %v984 = vrot.slane %v978, 4
    %986 = vmatpush.msra.mxu0 %v119
    %987 = vmatpush.msra.mxu0 %v116
    %988 = vmatpush.msra.mxu0 %v113
    %989 = vmatpush.msra.mxu0 %v110
    %990 = vmatpush.msra.mxu0 %v107
    %991 = vmatpush.msra.mxu0 %v104
    %992 = vmatpush.msra.mxu0 %v101
    %993 = vmatpush.msra.mxu0 %v98
    %994 = vmatpush.msra.mxu0 %v95
    %995 = vmatpush.msra.mxu0 %v92
    %996 = vmatpush.msra.mxu0 %v89
    %997 = vmatpush.msra.mxu0 %v86
    %998 = vmatpush.msra.mxu0 %v83
    %999 = vmatpush.msra.mxu0 %v80
    %1000 = vmatpush.msra.mxu0 %v77
    %1001 = vmatpush.msra.mxu0 %v74
    %1002 = vmatmul.f32.gmra.mxu0 %v984
    %v1003 = vpop.f32.mrf.mxu0
    %v1004 = vadd.f32 0.0, %v1003
    %1005 = vdwg.mxu0
    %1006 = vmatpush.msra.mxu0 %v120
    %1007 = vmatpush.msra.mxu0 %v117
    %1008 = vmatpush.msra.mxu0 %v114
    %1009 = vmatpush.msra.mxu0 %v111
    %1010 = vmatpush.msra.mxu0 %v108
    %1011 = vmatpush.msra.mxu0 %v105
    %1012 = vmatpush.msra.mxu0 %v102
    %1013 = vmatpush.msra.mxu0 %v99
    %1014 = vmatpush.msra.mxu0 %v96
    %1015 = vmatpush.msra.mxu0 %v93
    %1016 = vmatpush.msra.mxu0 %v90
    %1017 = vmatpush.msra.mxu0 %v87
    %1018 = vmatpush.msra.mxu0 %v84
    %1019 = vmatpush.msra.mxu0 %v81
    %1020 = vmatpush.msra.mxu0 %v78
    %1021 = vmatpush.msra.mxu0 %v75
    %1022 = vmatmul.f32.gmra.mxu0 %v984
    %v1023 = vpop.f32.mrf.mxu0
    %v1024 = vadd.f32 0.0, %v1023
    %1025 = vdwg.mxu0
    %1026 = vmatpush.msra.mxu0 %v121
    %1027 = vmatpush.msra.mxu0 %v118
    %1028 = vmatpush.msra.mxu0 %v115
    %1029 = vmatpush.msra.mxu0 %v112
    %1030 = vmatpush.msra.mxu0 %v109
    %1031 = vmatpush.msra.mxu0 %v106
    %1032 = vmatpush.msra.mxu0 %v103
    %1033 = vmatpush.msra.mxu0 %v100
    %1034 = vmatpush.msra.mxu0 %v97
    %1035 = vmatpush.msra.mxu0 %v94
    %1036 = vmatpush.msra.mxu0 %v91
    %1037 = vmatpush.msra.mxu0 %v88
    %1038 = vmatpush.msra.mxu0 %v85
    %1039 = vmatpush.msra.mxu0 %v82
    %1040 = vmatpush.msra.mxu0 %v79
    %1041 = vmatpush.msra.mxu0 %v76
    %1042 = vmatmul.f32.gmra.mxu0 %v984
    %v1043 = vpop.f32.mrf.mxu0
    %v1044 = vadd.f32 0.0, %v1043
    %1045 = vdwg.mxu0
    %v1047 = vrot.slane %v1004, 2
    %v1049 = vadd.f32 %v980, %v1047
    %v1050 = vxor.u32 %v1049, 2147483648
    %v1051 = vmul.f32 %v1050, 1.442695
    %v1052 = vpow.pop %v1051
    %v1053 = vadd.f32 %v1052, 1.0
    %v1054 = vrcp.pop %v1053
    %v1055 = vmul.f32 %v1053, %v1054
    %v1056 = vsub.f32 1.0, %v1055
    %v1057 = vmul.f32 %v1054, %v1056
    %v1058 = vadd.f32 %v1054, %v1057
    %vm1059 = vweird.f32 %v1053
    %vm1060 = vweird.f32 %v1054
    %vm1061 = vmor %vm1059, %vm1060
    %v1062 = vsel %vm1061, %v1054, %v1058
    %v1063 = vand.u32 2147483647, %v1053
    %vm1064 = vcmp.eq.f32.partialorder %v1063, 8.507059e+37
    %v1065 = vand.u32 %v1053, 2147483648
    %v1066 = vor.u32 1.1754944e-38, %v1065
    %v1067 = vsel %vm1064, %v1066, %v1062
    %v1068 = vmul.f32 1.0, %v1067
    %v1070 = vrot.slane %v1024, 2
    %v1072 = vadd.f32 %v981, %v1070
    %v1073 = vxor.u32 %v1072, 2147483648
    %v1074 = vmul.f32 %v1073, 1.442695
    %v1075 = vpow.pop %v1074
    %v1076 = vadd.f32 %v1075, 1.0
    %v1077 = vrcp.pop %v1076
    %v1078 = vmul.f32 %v1076, %v1077
    %v1079 = vsub.f32 1.0, %v1078
    %v1080 = vmul.f32 %v1077, %v1079
    %v1081 = vadd.f32 %v1077, %v1080
    %vm1082 = vweird.f32 %v1076
    %vm1083 = vweird.f32 %v1077
    %vm1084 = vmor %vm1082, %vm1083
    %v1085 = vsel %vm1084, %v1077, %v1081
    %v1086 = vand.u32 2147483647, %v1076
    %vm1087 = vcmp.eq.f32.partialorder %v1086, 8.507059e+37
    %v1088 = vand.u32 %v1076, 2147483648
    %v1089 = vor.u32 1.1754944e-38, %v1088
    %v1090 = vsel %vm1087, %v1089, %v1085
    %v1091 = vmul.f32 1.0, %v1090
    %v1092 = vadd.f32 %v1044, %v228
    %v1094 = vrot.slane %v1092, 2
    %v1096 = vmul.f32 %v1068, %v1094
    %v1097 = vadd.f32 %v982, %v1096
    %v1098 = vtanh.pop %v1097
    %v1099 = vsub.f32 1.0, %v1091
    %v1100 = vmul.f32 %v1099, %v1098
    %v1101 = vrot.slane %v978, 6
    %v1103 = vmul.f32 %v1091, %v1101
    %v1104 = vadd.f32 %v1100, %v1103
    %1105 = vst [vmem:[%s66 + $0x8] sm:$0xc0] %v1104
    %1106 = vst [vmem:[#allocation2 - $0x6] sm:$0xc0] %v1104
    %s1107 = sadd.s32 0, 0
    %s1108 = smul.u32 2, %s1107
    %p1109 = scmp.lt.s32.totalorder %s1108, 1
    %s1110 = scalar_select %p1109, %s1108, 1
    %s1111 = smul.addr %s1110, 8
    %s1112 = scalar_lea.vmem %s3, %s1111
    // Predicated region
    $region22: #{model_forward.2} parent=1 // pred_check
      _
    $region23: #{model_forward.2} parent=1 // pred_check_branch
      %1114 = sbr.rel (0) target = $region25
    $region24: #{model_forward.2} parent=1 // pred_region
      %s1115 = sadd.s32 0, 0
      %s1116 = smul.u32 2, %s1115
    $region25: #{model_forward.2} parent=1 // pred_fallthru
      _
    // Predicated region
    $region26: #{model_forward.2} parent=1 // pred_check
      _
    $region27: #{model_forward.2} parent=1 // pred_check_branch
      %1118 = sbr.rel (0) target = $region29
    $region28: #{model_forward.2} parent=1 // pred_region
      %s1119 = sadd.s32 0, 0
      %s1120 = smul.u32 2, %s1119
      %p1121 = scmp.lt.s32.totalorder %s1120, 1
      %s1122 = scalar_select %p1121, %s1120, 1
      %s1123 = smul.addr %s1122, 8
      %s1124 = scalar_lea.vmem %s3, %s1123
    $region29: #{model_forward.2} parent=1 // pred_fallthru
      _
    %1125 = vsyncpa [#allocation4], 1

</llo_original>
